<compile_context>
chip_gen: v7x
topology: tpu7x:2x2x1
jax: 0.10.0
libtpu: 0.0.40
codegen_flags: <defaults>
</compile_context>

<pallas_src>
import functools

import jax
import jax.numpy as jnp
from jax.experimental import pallas as pl
from jax.experimental.pallas import tpu as pltpu


def _round_up(x, m):
    return (x + m - 1) // m * m


def _gauss_1d(filter_size, sigma):
    coords = jnp.arange(filter_size, dtype=jnp.float32) - (filter_size - 1) / 2.0
    g = jnp.exp(-(coords ** 2) / (2.0 * float(sigma) ** 2))
    return g / jnp.sum(g)


def _conv_mats(H, W, filter_size, sigma):
    """Band matrices implementing a VALID 1-D Gaussian conv along H and W."""
    g = _gauss_1d(filter_size, sigma)
    Hout = H - filter_size + 1
    Wout = W - filter_size + 1

    def band(n_out, n_in):
        rows = jnp.arange(n_out)[:, None]
        cols = jnp.arange(n_in)[None, :]
        taps = cols - rows
        valid = (taps >= 0) & (taps < filter_size)
        vals = g[jnp.clip(taps, 0, filter_size - 1)]
        return jnp.where(valid, vals, 0.0).astype(jnp.float32)

    A = band(Hout, H)          # (Hout, H)
    Bt = band(Wout, W).T       # (W, Wout)
    return A, Bt


def _vmem_capacity_bytes():
    """Generation-aware VMEM capacity; conservative fallback (v7x = 64 MiB)."""
    try:
        return int(pltpu.get_tpu_info().vmem_capacity_bytes)
    except Exception:
        return 64 * 1024 * 1024


def _step_vmem_bytes(B, H, W, Hout, Wout):
    """Per-grid-step VMEM footprint (f32), including double-buffering."""
    lw, ow = B * W, B * Wout
    lwp, owp = _round_up(lw, 128), _round_up(ow, 128)
    f = 4
    xy_blocks = 2 * 2 * B * H * W * f            # x, y blocks, double-buffered
    stacked = H * 5 * lwp * f                    # persistent stacked scratch
    mats = 2 * (Hout * H + lwp * owp) * f        # A and Btb (double-buffered)
    t1 = Hout * 5 * lwp * f                      # stage-1 result
    ew = 10 * Hout * owp * f                     # blurred + elementwise temps
    outs = 2 * (owp + lwp) * f                   # merged output block
    return xy_blocks + stacked + mats + t1 + ew + outs


def _choose_batch(NC, H, W, Hout, Wout):
    """Pick images-per-step B: lane-aligned, VMEM-safe, kron-waste bounded."""
    budget = max(8 << 20, _vmem_capacity_bytes() // 3)
    cands = []
    for b in range(1, NC + 1):
        if NC % b:
            continue
        if W >= 128 and b > 1:           # dense Bt already lane-rich: avoid kron waste
            continue
        if b * W > 512:                  # bound Btb footprint / redundant MACs
            continue
        if _step_vmem_bytes(b, H, W, Hout, Wout) > budget:
            continue
        cands.append(b)
    if not cands:
        return 1

    def score(b):
        aligned = (b * W) % 128 == 0     # dense lanes: biggest measured lever
        multi = (NC // b) >= 2           # G >= 2: lets v7x use both TensorCores
        return (aligned and multi, aligned, multi, b)

    return max(cands, key=score)


def _l1cssim_kernel(x_ref, y_ref, a_ref, btb_ref, out_ref, stk_ref, *,
                    B, W, H, lw, lwp, ow, owp, c1, c2):
    hi = jax.lax.Precision.HIGHEST

    # Zero the lane padding of the xi / yi segments (done every step: the
    # scratch is per-core, so a step-0-only init would be wrong on v7x).
    if lw != lwp:
        pad = jnp.zeros((H, lwp - lw), jnp.float32)
        stk_ref[:, lw:lwp] = pad
        stk_ref[:, lwp + lw:2 * lwp] = pad

    # Assemble the lane-concatenated (H, B*W) slabs directly in VMEM.  This
    # replaces the wrapper-side HBM transpose pass and the in-kernel concat.
    for b in range(B):
        stk_ref[:, b * W:(b + 1) * W] = x_ref[0, b]
        stk_ref[:, lwp + b * W:lwp + (b + 1) * W] = y_ref[0, b]

    xi = stk_ref[:, :lwp]          # (H, lwp)
    yi = stk_ref[:, lwp:2 * lwp]   # (H, lwp)
    stk_ref[:, 2 * lwp:3 * lwp] = xi * xi
    stk_ref[:, 3 * lwp:4 * lwp] = yi * yi
    stk_ref[:, 4 * lwp:5 * lwp] = xi * yi

    # Stage-1 blur (H direction): ONE fused matmul for all five operands.
    t1 = jnp.dot(a_ref[...], stk_ref[...],
                 preferred_element_type=jnp.float32, precision=hi)  # (Hout, 5*lwp)

    # Stage-2 blur (W direction) via zero-padded block-diagonal kron(I_B, Bt).
    btb = btb_ref[...]                                              # (lwp, owp)

    def blur2(q):
        return jnp.dot(t1[:, q * lwp:(q + 1) * lwp], btb,
                       preferred_element_type=jnp.float32, precision=hi)

    mu_x, mu_y, xx, yy, xy = [blur2(q) for q in range(5)]           # (Hout, owp)

    var_x = xx - mu_x * mu_x
    var_y = yy - mu_y * mu_y
    cov_xy = xy - mu_x * mu_y

    num = (2.0 * mu_x * mu_y + c1) * (2.0 * cov_xy + c2)
    den = (mu_x * mu_x + mu_y * mu_y + c1) * (var_x + var_y + c2)
    ssim_map = num * pl.reciprocal(den, approx=True)                # EUP slot

    # Padded output columns evaluate to ssim ~= 1 — mask them out of the sum.
    col = jax.lax.broadcasted_iota(jnp.int32, (1, owp), 1)
    valid = (col < ow).astype(jnp.float32)
    ssim_part = jnp.sum(ssim_map, axis=0, keepdims=True) * valid    # (1, owp)
    l1_part = jnp.sum(jnp.abs(xi - yi), axis=0, keepdims=True)      # (1, lwp)

    # Single merged, lane-dense output slab: both stores are 128-aligned.
    out_ref[0, :, :owp] = ssim_part
    out_ref[0, :, owp:] = l1_part


def l1cssim_pallas(x, y, *, l1_weight=0.5, max_val=1.0, filter_size=11,
                   sigma=1.5, k1=0.01, k2=0.03):
    """Pallas implementation of the SSIM+L1 loss (reduction='mean')."""
    N, C, H, W = x.shape
    NC = N * C
    Hout = H - filter_size + 1
    Wout = W - filter_size + 1
    assert Hout > 0 and Wout > 0, "spatial dims must be >= filter_size"

    C1 = float((k1 * max_val) ** 2)
    C2 = float((k2 * max_val) ** 2)

    B = _choose_batch(NC, H, W, Hout, Wout)   # images per grid step
    G = NC // B                               # grid length
    lw, ow = B * W, B * Wout
    lwp, owp = _round_up(lw, 128), _round_up(ow, 128)
    OW = owp + lwp                            # merged output slab width

    A, Bt = _conv_mats(H, W, filter_size, sigma)
    Btb = jnp.zeros((lwp, owp), dtype=jnp.float32)
    Btb = Btb.at[:lw, :ow].set(jnp.kron(jnp.eye(B, dtype=jnp.float32), Bt))

    # Free regrouping of the leading dims — no HBM relayout pass.
    xg = x.astype(jnp.float32).reshape(G, B, H, W)
    yg = y.astype(jnp.float32).reshape(G, B, H, W)

    kernel = functools.partial(_l1cssim_kernel, B=B, W=W, H=H, lw=lw, lwp=lwp,
                               ow=ow, owp=owp, c1=C1, c2=C2)

    cap = _vmem_capacity_bytes()
    vmem_limit = max(32 << 20, min(96 << 20, int(cap * 3 // 4)))

    flops_per_step = (2 * Hout * H * 5 * lwp          # stage-1 matmul
                      + 5 * 2 * Hout * lwp * owp      # stage-2 matmuls
                      + 40 * Hout * owp               # elementwise SSIM block
                      + 7 * H * lwp)                  # products + L1
    cost = pl.CostEstimate(
        flops=int(G * flops_per_step),
        transcendentals=int(G * Hout * owp),
        bytes_accessed=int(4 * (2 * NC * H * W
                                + G * (Hout * H + lwp * owp + OW))),
    )

    parts = pl.pallas_call(
        kernel,
        out_shape=jax.ShapeDtypeStruct((G, 1, OW), jnp.float32),
        grid_spec=pltpu.PrefetchScalarGridSpec(
            num_scalar_prefetch=0,
            grid=(G,),
            in_specs=[
                pl.BlockSpec((1, B, H, W), lambda g: (g, 0, 0, 0)),
                pl.BlockSpec((1, B, H, W), lambda g: (g, 0, 0, 0)),
                pl.BlockSpec((Hout, H), lambda g: (0, 0)),
                pl.BlockSpec((lwp, owp), lambda g: (0, 0)),
            ],
            out_specs=pl.BlockSpec((1, 1, OW), lambda g: (g, 0, 0)),
            scratch_shapes=[pltpu.VMEM((H, 5 * lwp), jnp.float32)],
        ),
        compiler_params=pltpu.CompilerParams(
            dimension_semantics=("parallel",),
            vmem_limit_bytes=int(vmem_limit),
        ),
        cost_estimate=cost,
    )(xg, yg, A, Btb)

    # Tiny final reduction / combine in plain JAX (keeps the grid parallel).
    ssim_mean = jnp.sum(parts[:, :, :owp]) / float(NC * Hout * Wout)
    l1_mean = jnp.sum(parts[:, :, owp:]) / float(NC * H * W)
    return (1.0 - ssim_mean) + float(l1_weight) * l1_mean


def l1cssim_reference(x, y, *, l1_weight=0.5, max_val=1.0, filter_size=11,
                      sigma=1.5, k1=0.01, k2=0.03):
    """Pure-JAX reference with identical semantics (for verification)."""
    N, C, H, W = x.shape
    A, Bt = _conv_mats(H, W, filter_size, sigma)
    xf = x.astype(jnp.float32)
    yf = y.astype(jnp.float32)

    def blur(img):
        t = jnp.einsum('ph,nchw->ncpw', A, img)
        return jnp.einsum('ncpw,wq->ncpq', t, Bt)

    C1 = (k1 * max_val) ** 2
    C2 = (k2 * max_val) ** 2
    mu_x, mu_y = blur(xf), blur(yf)
    var_x = blur(xf * xf) - mu_x * mu_x
    var_y = blur(yf * yf) - mu_y * mu_y
    cov = blur(xf * yf) - mu_x * mu_y
    ssim_map = ((2 * mu_x * mu_y + C1) * (2 * cov + C2)) / (
        (mu_x * mu_x + mu_y * mu_y + C1) * (var_x + var_y + C2))
    cssim = 1.0 - jnp.mean(ssim_map)
    l1 = jnp.mean(jnp.abs(xf - yf))
    return cssim + l1_weight * l1


if __name__ == "__main__":
    # Deterministic parameters (module __init__ args).
    l1_weight = 0.5
    max_val = 1.0
    filter_size = 11
    sigma = 1.5

    key = jax.random.PRNGKey(0)
    kx, ky = jax.random.split(key)
    # Small NCHW inputs consistent with an image loss.
    x = jax.random.uniform(kx, (2, 4, 16, 16), dtype=jnp.float32)
    y = jax.random.uniform(ky, (2, 4, 16, 16), dtype=jnp.float32)

    out = l1cssim_pallas(x, y, l1_weight=l1_weight, max_val=max_val,
                         filter_size=filter_size, sigma=sigma)
    out = jax.block_until_ready(out)

    ref = l1cssim_reference(x, y, l1_weight=l1_weight, max_val=max_val,
                            filter_size=filter_size, sigma=sigma)
    ref = jax.block_until_ready(ref)

    assert jnp.isfinite(out), "kernel produced non-finite output"
    assert abs(float(out) - float(ref)) < 5e-3, (float(out), float(ref))
    print("KERNEL_OK")
</pallas_src>

<mosaic_0001>
module attributes {stable_mosaic.version = 11 : i64} {
  func.func @_l1cssim_kernel(%arg0: i32, %arg1: memref<1x8x16x16xf32, #tpu.memory_space<vmem>>, %arg2: memref<1x8x16x16xf32, #tpu.memory_space<vmem>>, %arg3: memref<6x16xf32, #tpu.memory_space<vmem>>, %arg4: memref<128x128xf32, #tpu.memory_space<vmem>>, %arg5: memref<1x1x256xf32, #tpu.memory_space<vmem>>, %arg6: memref<16x640xf32, #tpu.memory_space<vmem>>) attributes {dimension_semantics = [#tpu.dimension_semantics<parallel>], iteration_bounds = array<i64: 1>, scalar_prefetch = 0 : i64, scratch_operands = 1 : i64, tpu.core_type = #tpu.core_type<tc>, window_params = [{transform_indices = @transform_0, window_bounds = array<i64: 1, 8, 16, 16>}, {transform_indices = @transform_1, window_bounds = array<i64: 1, 8, 16, 16>}, {pipeline_mode = #tpu.pipeline_mode<synchronous>, transform_indices = @transform_2, window_bounds = array<i64: 6, 16>}, {pipeline_mode = #tpu.pipeline_mode<synchronous>, transform_indices = @transform_3, window_bounds = array<i64: 128, 128>}, {transform_indices = @transform_4, window_bounds = array<i64: 1, 1, 256>}]} {
    %c0 = arith.constant 0 : index
    %c0_0 = arith.constant 0 : index
    %c0_1 = arith.constant 0 : index
    %c0_2 = arith.constant 0 : index
    %0 = vector.load %arg1[%c0, %c0_0, %c0_1, %c0_2] : memref<1x8x16x16xf32, #tpu.memory_space<vmem>>, vector<1x1x16x16xf32>
    %1 = vector.shape_cast %0 : vector<1x1x16x16xf32> to vector<16x16xf32>
    %c0_3 = arith.constant 0 : index
    %c0_4 = arith.constant 0 : index
    %2 = vector.load %arg6[%c0_3, %c0_4] : memref<16x640xf32, #tpu.memory_space<vmem>>, vector<16x16xf32>
    tpu.vector_store %arg6[%c0_3, %c0_4], %1 {strides = array<i32>} : memref<16x640xf32, #tpu.memory_space<vmem>>, vector<16x16xf32>,
    %c0_5 = arith.constant 0 : index
    %c0_6 = arith.constant 0 : index
    %c0_7 = arith.constant 0 : index
    %c0_8 = arith.constant 0 : index
    %3 = vector.load %arg2[%c0_5, %c0_6, %c0_7, %c0_8] : memref<1x8x16x16xf32, #tpu.memory_space<vmem>>, vector<1x1x16x16xf32>
    %4 = vector.shape_cast %3 : vector<1x1x16x16xf32> to vector<16x16xf32>
    %c0_9 = arith.constant 0 : index
    %c128 = arith.constant 128 : index
    %5 = vector.load %arg6[%c0_9, %c128] : memref<16x640xf32, #tpu.memory_space<vmem>>, vector<16x16xf32>
    tpu.vector_store %arg6[%c0_9, %c128], %4 {strides = array<i32>} : memref<16x640xf32, #tpu.memory_space<vmem>>, vector<16x16xf32>,
    %c0_10 = arith.constant 0 : index
    %c1 = arith.constant 1 : index
    %c0_11 = arith.constant 0 : index
    %c0_12 = arith.constant 0 : index
    %6 = vector.load %arg1[%c0_10, %c1, %c0_11, %c0_12] : memref<1x8x16x16xf32, #tpu.memory_space<vmem>>, vector<1x1x16x16xf32>
    %7 = vector.shape_cast %6 : vector<1x1x16x16xf32> to vector<16x16xf32>
    %c0_13 = arith.constant 0 : index
    %c16 = arith.constant 16 : index
    %8 = vector.load %arg6[%c0_13, %c16] : memref<16x640xf32, #tpu.memory_space<vmem>>, vector<16x16xf32>
    tpu.vector_store %arg6[%c0_13, %c16], %7 {strides = array<i32>} : memref<16x640xf32, #tpu.memory_space<vmem>>, vector<16x16xf32>,
    %c0_14 = arith.constant 0 : index
    %c1_15 = arith.constant 1 : index
    %c0_16 = arith.constant 0 : index
    %c0_17 = arith.constant 0 : index
    %9 = vector.load %arg2[%c0_14, %c1_15, %c0_16, %c0_17] : memref<1x8x16x16xf32, #tpu.memory_space<vmem>>, vector<1x1x16x16xf32>
    %10 = vector.shape_cast %9 : vector<1x1x16x16xf32> to vector<16x16xf32>
    %c0_18 = arith.constant 0 : index
    %c144 = arith.constant 144 : index
    %11 = vector.load %arg6[%c0_18, %c144] : memref<16x640xf32, #tpu.memory_space<vmem>>, vector<16x16xf32>
    tpu.vector_store %arg6[%c0_18, %c144], %10 {strides = array<i32>} : memref<16x640xf32, #tpu.memory_space<vmem>>, vector<16x16xf32>,
    %c0_19 = arith.constant 0 : index
    %c2 = arith.constant 2 : index
    %c0_20 = arith.constant 0 : index
    %c0_21 = arith.constant 0 : index
    %12 = vector.load %arg1[%c0_19, %c2, %c0_20, %c0_21] : memref<1x8x16x16xf32, #tpu.memory_space<vmem>>, vector<1x1x16x16xf32>
    %13 = vector.shape_cast %12 : vector<1x1x16x16xf32> to vector<16x16xf32>
    %c0_22 = arith.constant 0 : index
    %c32 = arith.constant 32 : index
    %14 = vector.load %arg6[%c0_22, %c32] : memref<16x640xf32, #tpu.memory_space<vmem>>, vector<16x16xf32>
    tpu.vector_store %arg6[%c0_22, %c32], %13 {strides = array<i32>} : memref<16x640xf32, #tpu.memory_space<vmem>>, vector<16x16xf32>,
    %c0_23 = arith.constant 0 : index
    %c2_24 = arith.constant 2 : index
    %c0_25 = arith.constant 0 : index
    %c0_26 = arith.constant 0 : index
    %15 = vector.load %arg2[%c0_23, %c2_24, %c0_25, %c0_26] : memref<1x8x16x16xf32, #tpu.memory_space<vmem>>, vector<1x1x16x16xf32>
    %16 = vector.shape_cast %15 : vector<1x1x16x16xf32> to vector<16x16xf32>
    %c0_27 = arith.constant 0 : index
    %c160 = arith.constant 160 : index
    %17 = vector.load %arg6[%c0_27, %c160] : memref<16x640xf32, #tpu.memory_space<vmem>>, vector<16x16xf32>
    tpu.vector_store %arg6[%c0_27, %c160], %16 {strides = array<i32>} : memref<16x640xf32, #tpu.memory_space<vmem>>, vector<16x16xf32>,
    %c0_28 = arith.constant 0 : index
    %c3 = arith.constant 3 : index
    %c0_29 = arith.constant 0 : index
    %c0_30 = arith.constant 0 : index
    %18 = vector.load %arg1[%c0_28, %c3, %c0_29, %c0_30] : memref<1x8x16x16xf32, #tpu.memory_space<vmem>>, vector<1x1x16x16xf32>
    %19 = vector.shape_cast %18 : vector<1x1x16x16xf32> to vector<16x16xf32>
    %c0_31 = arith.constant 0 : index
    %c48 = arith.constant 48 : index
    %20 = vector.load %arg6[%c0_31, %c48] : memref<16x640xf32, #tpu.memory_space<vmem>>, vector<16x16xf32>
    tpu.vector_store %arg6[%c0_31, %c48], %19 {strides = array<i32>} : memref<16x640xf32, #tpu.memory_space<vmem>>, vector<16x16xf32>,
    %c0_32 = arith.constant 0 : index
    %c3_33 = arith.constant 3 : index
    %c0_34 = arith.constant 0 : index
    %c0_35 = arith.constant 0 : index
    %21 = vector.load %arg2[%c0_32, %c3_33, %c0_34, %c0_35] : memref<1x8x16x16xf32, #tpu.memory_space<vmem>>, vector<1x1x16x16xf32>
    %22 = vector.shape_cast %21 : vector<1x1x16x16xf32> to vector<16x16xf32>
    %c0_36 = arith.constant 0 : index
    %c176 = arith.constant 176 : index
    %23 = vector.load %arg6[%c0_36, %c176] : memref<16x640xf32, #tpu.memory_space<vmem>>, vector<16x16xf32>
    tpu.vector_store %arg6[%c0_36, %c176], %22 {strides = array<i32>} : memref<16x640xf32, #tpu.memory_space<vmem>>, vector<16x16xf32>,
    %c0_37 = arith.constant 0 : index
    %c4 = arith.constant 4 : index
    %c0_38 = arith.constant 0 : index
    %c0_39 = arith.constant 0 : index
    %24 = vector.load %arg1[%c0_37, %c4, %c0_38, %c0_39] : memref<1x8x16x16xf32, #tpu.memory_space<vmem>>, vector<1x1x16x16xf32>
    %25 = vector.shape_cast %24 : vector<1x1x16x16xf32> to vector<16x16xf32>
    %c0_40 = arith.constant 0 : index
    %c64 = arith.constant 64 : index
    %26 = vector.load %arg6[%c0_40, %c64] : memref<16x640xf32, #tpu.memory_space<vmem>>, vector<16x16xf32>
    tpu.vector_store %arg6[%c0_40, %c64], %25 {strides = array<i32>} : memref<16x640xf32, #tpu.memory_space<vmem>>, vector<16x16xf32>,
    %c0_41 = arith.constant 0 : index
    %c4_42 = arith.constant 4 : index
    %c0_43 = arith.constant 0 : index
    %c0_44 = arith.constant 0 : index
    %27 = vector.load %arg2[%c0_41, %c4_42, %c0_43, %c0_44] : memref<1x8x16x16xf32, #tpu.memory_space<vmem>>, vector<1x1x16x16xf32>
    %28 = vector.shape_cast %27 : vector<1x1x16x16xf32> to vector<16x16xf32>
    %c0_45 = arith.constant 0 : index
    %c192 = arith.constant 192 : index
    %29 = vector.load %arg6[%c0_45, %c192] : memref<16x640xf32, #tpu.memory_space<vmem>>, vector<16x16xf32>
    tpu.vector_store %arg6[%c0_45, %c192], %28 {strides = array<i32>} : memref<16x640xf32, #tpu.memory_space<vmem>>, vector<16x16xf32>,
    %c0_46 = arith.constant 0 : index
    %c5 = arith.constant 5 : index
    %c0_47 = arith.constant 0 : index
    %c0_48 = arith.constant 0 : index
    %30 = vector.load %arg1[%c0_46, %c5, %c0_47, %c0_48] : memref<1x8x16x16xf32, #tpu.memory_space<vmem>>, vector<1x1x16x16xf32>
    %31 = vector.shape_cast %30 : vector<1x1x16x16xf32> to vector<16x16xf32>
    %c0_49 = arith.constant 0 : index
    %c80 = arith.constant 80 : index
    %32 = vector.load %arg6[%c0_49, %c80] : memref<16x640xf32, #tpu.memory_space<vmem>>, vector<16x16xf32>
    tpu.vector_store %arg6[%c0_49, %c80], %31 {strides = array<i32>} : memref<16x640xf32, #tpu.memory_space<vmem>>, vector<16x16xf32>,
    %c0_50 = arith.constant 0 : index
    %c5_51 = arith.constant 5 : index
    %c0_52 = arith.constant 0 : index
    %c0_53 = arith.constant 0 : index
    %33 = vector.load %arg2[%c0_50, %c5_51, %c0_52, %c0_53] : memref<1x8x16x16xf32, #tpu.memory_space<vmem>>, vector<1x1x16x16xf32>
    %34 = vector.shape_cast %33 : vector<1x1x16x16xf32> to vector<16x16xf32>
    %c0_54 = arith.constant 0 : index
    %c208 = arith.constant 208 : index
    %35 = vector.load %arg6[%c0_54, %c208] : memref<16x640xf32, #tpu.memory_space<vmem>>, vector<16x16xf32>
    tpu.vector_store %arg6[%c0_54, %c208], %34 {strides = array<i32>} : memref<16x640xf32, #tpu.memory_space<vmem>>, vector<16x16xf32>,
    %c0_55 = arith.constant 0 : index
    %c6 = arith.constant 6 : index
    %c0_56 = arith.constant 0 : index
    %c0_57 = arith.constant 0 : index
    %36 = vector.load %arg1[%c0_55, %c6, %c0_56, %c0_57] : memref<1x8x16x16xf32, #tpu.memory_space<vmem>>, vector<1x1x16x16xf32>
    %37 = vector.shape_cast %36 : vector<1x1x16x16xf32> to vector<16x16xf32>
    %c0_58 = arith.constant 0 : index
    %c96 = arith.constant 96 : index
    %38 = vector.load %arg6[%c0_58, %c96] : memref<16x640xf32, #tpu.memory_space<vmem>>, vector<16x16xf32>
    tpu.vector_store %arg6[%c0_58, %c96], %37 {strides = array<i32>} : memref<16x640xf32, #tpu.memory_space<vmem>>, vector<16x16xf32>,
    %c0_59 = arith.constant 0 : index
    %c6_60 = arith.constant 6 : index
    %c0_61 = arith.constant 0 : index
    %c0_62 = arith.constant 0 : index
    %39 = vector.load %arg2[%c0_59, %c6_60, %c0_61, %c0_62] : memref<1x8x16x16xf32, #tpu.memory_space<vmem>>, vector<1x1x16x16xf32>
    %40 = vector.shape_cast %39 : vector<1x1x16x16xf32> to vector<16x16xf32>
    %c0_63 = arith.constant 0 : index
    %c224 = arith.constant 224 : index
    %41 = vector.load %arg6[%c0_63, %c224] : memref<16x640xf32, #tpu.memory_space<vmem>>, vector<16x16xf32>
    tpu.vector_store %arg6[%c0_63, %c224], %40 {strides = array<i32>} : memref<16x640xf32, #tpu.memory_space<vmem>>, vector<16x16xf32>,
    %c0_64 = arith.constant 0 : index
    %c7 = arith.constant 7 : index
    %c0_65 = arith.constant 0 : index
    %c0_66 = arith.constant 0 : index
    %42 = vector.load %arg1[%c0_64, %c7, %c0_65, %c0_66] : memref<1x8x16x16xf32, #tpu.memory_space<vmem>>, vector<1x1x16x16xf32>
    %43 = vector.shape_cast %42 : vector<1x1x16x16xf32> to vector<16x16xf32>
    %c0_67 = arith.constant 0 : index
    %c112 = arith.constant 112 : index
    %44 = vector.load %arg6[%c0_67, %c112] : memref<16x640xf32, #tpu.memory_space<vmem>>, vector<16x16xf32>
    tpu.vector_store %arg6[%c0_67, %c112], %43 {strides = array<i32>} : memref<16x640xf32, #tpu.memory_space<vmem>>, vector<16x16xf32>,
    %c0_68 = arith.constant 0 : index
    %c7_69 = arith.constant 7 : index
    %c0_70 = arith.constant 0 : index
    %c0_71 = arith.constant 0 : index
    %45 = vector.load %arg2[%c0_68, %c7_69, %c0_70, %c0_71] : memref<1x8x16x16xf32, #tpu.memory_space<vmem>>, vector<1x1x16x16xf32>
    %46 = vector.shape_cast %45 : vector<1x1x16x16xf32> to vector<16x16xf32>
    %c0_72 = arith.constant 0 : index
    %c240 = arith.constant 240 : index
    %47 = vector.load %arg6[%c0_72, %c240] : memref<16x640xf32, #tpu.memory_space<vmem>>, vector<16x16xf32>
    tpu.vector_store %arg6[%c0_72, %c240], %46 {strides = array<i32>} : memref<16x640xf32, #tpu.memory_space<vmem>>, vector<16x16xf32>,
    %c0_73 = arith.constant 0 : index
    %c0_74 = arith.constant 0 : index
    %48 = vector.load %arg6[%c0_73, %c0_74] : memref<16x640xf32, #tpu.memory_space<vmem>>, vector<16x128xf32>
    %c0_75 = arith.constant 0 : index
    %c128_76 = arith.constant 128 : index
    %49 = vector.load %arg6[%c0_75, %c128_76] : memref<16x640xf32, #tpu.memory_space<vmem>>, vector<16x128xf32>
    %50 = arith.mulf %48, %48 : vector<16x128xf32>
    %c0_77 = arith.constant 0 : index
    %c256 = arith.constant 256 : index
    %51 = vector.load %arg6[%c0_77, %c256] : memref<16x640xf32, #tpu.memory_space<vmem>>, vector<16x128xf32>
    tpu.vector_store %arg6[%c0_77, %c256], %50 {strides = array<i32>} : memref<16x640xf32, #tpu.memory_space<vmem>>, vector<16x128xf32>,
    %52 = arith.mulf %49, %49 : vector<16x128xf32>
    %c0_78 = arith.constant 0 : index
    %c384 = arith.constant 384 : index
    %53 = vector.load %arg6[%c0_78, %c384] : memref<16x640xf32, #tpu.memory_space<vmem>>, vector<16x128xf32>
    tpu.vector_store %arg6[%c0_78, %c384], %52 {strides = array<i32>} : memref<16x640xf32, #tpu.memory_space<vmem>>, vector<16x128xf32>,
    %54 = arith.mulf %48, %49 : vector<16x128xf32>
    %c0_79 = arith.constant 0 : index
    %c512 = arith.constant 512 : index
    %55 = vector.load %arg6[%c0_79, %c512] : memref<16x640xf32, #tpu.memory_space<vmem>>, vector<16x128xf32>
    tpu.vector_store %arg6[%c0_79, %c512], %54 {strides = array<i32>} : memref<16x640xf32, #tpu.memory_space<vmem>>, vector<16x128xf32>,
    %c0_80 = arith.constant 0 : index
    %c0_81 = arith.constant 0 : index
    %56 = vector.load %arg3[%c0_80, %c0_81] : memref<6x16xf32, #tpu.memory_space<vmem>>, vector<6x16xf32>
    %c0_82 = arith.constant 0 : index
    %c0_83 = arith.constant 0 : index
    %57 = vector.load %arg6[%c0_82, %c0_83] : memref<16x640xf32, #tpu.memory_space<vmem>>, vector<16x640xf32>
    %cst = arith.constant dense<0.000000e+00> : vector<6x640xf32>
    %58 = tpu.matmul %56, %57, %cst {dimension_numbers = #tpu.dot_dimension_numbers<[1], [0], [0], [1], [0, 0, 1, 1], [], []>, precision = #tpu.contract_precision<fp32>} : vector<6x16xf32>, vector<16x640xf32>, vector<6x640xf32> -> vector<6x640xf32>
    %c0_84 = arith.constant 0 : index
    %c0_85 = arith.constant 0 : index
    %59 = vector.load %arg4[%c0_84, %c0_85] : memref<128x128xf32, #tpu.memory_space<vmem>>, vector<128x128xf32>
    %60 = vector.extract_strided_slice %58 {offsets = [0, 0], sizes = [6, 128], strides = [1, 1]} : vector<6x640xf32> to vector<6x128xf32>
    %cst_86 = arith.constant dense<0.000000e+00> : vector<6x128xf32>
    %61 = tpu.matmul %60, %59, %cst_86 {dimension_numbers = #tpu.dot_dimension_numbers<[1], [0], [0], [1], [0, 0, 1, 1], [], []>, precision = #tpu.contract_precision<fp32>} : vector<6x128xf32>, vector<128x128xf32>, vector<6x128xf32> -> vector<6x128xf32>
    %62 = vector.extract_strided_slice %58 {offsets = [0, 128], sizes = [6, 128], strides = [1, 1]} : vector<6x640xf32> to vector<6x128xf32>
    %cst_87 = arith.constant dense<0.000000e+00> : vector<6x128xf32>
    %63 = tpu.matmul %62, %59, %cst_87 {dimension_numbers = #tpu.dot_dimension_numbers<[1], [0], [0], [1], [0, 0, 1, 1], [], []>, precision = #tpu.contract_precision<fp32>} : vector<6x128xf32>, vector<128x128xf32>, vector<6x128xf32> -> vector<6x128xf32>
    %64 = vector.extract_strided_slice %58 {offsets = [0, 256], sizes = [6, 128], strides = [1, 1]} : vector<6x640xf32> to vector<6x128xf32>
    %cst_88 = arith.constant dense<0.000000e+00> : vector<6x128xf32>
    %65 = tpu.matmul %64, %59, %cst_88 {dimension_numbers = #tpu.dot_dimension_numbers<[1], [0], [0], [1], [0, 0, 1, 1], [], []>, precision = #tpu.contract_precision<fp32>} : vector<6x128xf32>, vector<128x128xf32>, vector<6x128xf32> -> vector<6x128xf32>
    %66 = vector.extract_strided_slice %58 {offsets = [0, 384], sizes = [6, 128], strides = [1, 1]} : vector<6x640xf32> to vector<6x128xf32>
    %cst_89 = arith.constant dense<0.000000e+00> : vector<6x128xf32>
    %67 = tpu.matmul %66, %59, %cst_89 {dimension_numbers = #tpu.dot_dimension_numbers<[1], [0], [0], [1], [0, 0, 1, 1], [], []>, precision = #tpu.contract_precision<fp32>} : vector<6x128xf32>, vector<128x128xf32>, vector<6x128xf32> -> vector<6x128xf32>
    %68 = vector.extract_strided_slice %58 {offsets = [0, 512], sizes = [6, 128], strides = [1, 1]} : vector<6x640xf32> to vector<6x128xf32>
    %cst_90 = arith.constant dense<0.000000e+00> : vector<6x128xf32>
    %69 = tpu.matmul %68, %59, %cst_90 {dimension_numbers = #tpu.dot_dimension_numbers<[1], [0], [0], [1], [0, 0, 1, 1], [], []>, precision = #tpu.contract_precision<fp32>} : vector<6x128xf32>, vector<128x128xf32>, vector<6x128xf32> -> vector<6x128xf32>
    %70 = arith.mulf %61, %61 : vector<6x128xf32>
    %71 = arith.subf %65, %70 : vector<6x128xf32>
    %72 = arith.mulf %63, %63 : vector<6x128xf32>
    %73 = arith.subf %67, %72 : vector<6x128xf32>
    %74 = arith.mulf %61, %63 : vector<6x128xf32>
    %75 = arith.subf %69, %74 : vector<6x128xf32>
    %cst_91 = arith.constant 2.000000e+00 : f32
    %76 = vector.broadcast %cst_91 : f32 to vector<6x128xf32>
    %77 = arith.mulf %76, %61 : vector<6x128xf32>
    %78 = arith.mulf %77, %63 : vector<6x128xf32>
    %cst_92 = arith.constant 9.99999974E-5 : f32
    %79 = vector.broadcast %cst_92 : f32 to vector<6x128xf32>
    %80 = arith.addf %78, %79 : vector<6x128xf32>
    %cst_93 = arith.constant 2.000000e+00 : f32
    %81 = vector.broadcast %cst_93 : f32 to vector<6x128xf32>
    %82 = arith.mulf %81, %75 : vector<6x128xf32>
    %cst_94 = arith.constant 8.99999984E-4 : f32
    %83 = vector.broadcast %cst_94 : f32 to vector<6x128xf32>
    %84 = arith.addf %82, %83 : vector<6x128xf32>
    %85 = arith.mulf %80, %84 : vector<6x128xf32>
    %86 = arith.mulf %61, %61 : vector<6x128xf32>
    %87 = arith.mulf %63, %63 : vector<6x128xf32>
    %88 = arith.addf %86, %87 : vector<6x128xf32>
    %cst_95 = arith.constant 9.99999974E-5 : f32
    %89 = vector.broadcast %cst_95 : f32 to vector<6x128xf32>
    %90 = arith.addf %88, %89 : vector<6x128xf32>
    %91 = arith.addf %71, %73 : vector<6x128xf32>
    %cst_96 = arith.constant 8.99999984E-4 : f32
    %92 = vector.broadcast %cst_96 : f32 to vector<6x128xf32>
    %93 = arith.addf %91, %92 : vector<6x128xf32>
    %94 = arith.mulf %90, %93 : vector<6x128xf32>
    %95 = tpu.reciprocal %94 {approx = true} : vector<6x128xf32> -> vector<6x128xf32>
    %96 = arith.mulf %85, %95 : vector<6x128xf32>
    %97 = tpu.iota {dimensions = array<i32: 1>} : vector<1x128xi32>
    %c48_i32 = arith.constant 48 : i32
    %98 = vector.broadcast %c48_i32 : i32 to vector<1x128xi32>
    %99 = arith.cmpi slt, %97, %98 : vector<1x128xi32>
    %100 = arith.extui %99 : vector<1x128xi1> to vector<1x128xi32>
    %101 = arith.sitofp %100 : vector<1x128xi32> to vector<1x128xf32>
    %cst_97 = arith.constant dense<0.000000e+00> : vector<128xf32>
    %102 = vector.multi_reduction <add>, %96, %cst_97 [0] : vector<6x128xf32> to vector<128xf32>
    %103 = vector.shape_cast %102 : vector<128xf32> to vector<1x128xf32>
    %104 = arith.mulf %103, %101 : vector<1x128xf32>
    %105 = arith.subf %48, %49 : vector<16x128xf32>
    %106 = math.absf %105 : vector<16x128xf32>
    %cst_98 = arith.constant dense<0.000000e+00> : vector<128xf32>
    %107 = vector.multi_reduction <add>, %106, %cst_98 [0] : vector<16x128xf32> to vector<128xf32>
    %108 = vector.shape_cast %107 : vector<128xf32> to vector<1x128xf32>
    %c0_99 = arith.constant 0 : index
    %c0_100 = arith.constant 0 : index
    %c0_101 = arith.constant 0 : index
    %109 = vector.load %arg5[%c0_99, %c0_100, %c0_101] : memref<1x1x256xf32, #tpu.memory_space<vmem>>, vector<1x1x128xf32>
    %110 = vector.shape_cast %109 : vector<1x1x128xf32> to vector<1x128xf32>
    %111 = vector.shape_cast %104 : vector<1x128xf32> to vector<1x1x128xf32>
    tpu.vector_store %arg5[%c0_99, %c0_100, %c0_101], %111 {strides = array<i32>} : memref<1x1x256xf32, #tpu.memory_space<vmem>>, vector<1x1x128xf32>,
    %c0_102 = arith.constant 0 : index
    %c0_103 = arith.constant 0 : index
    %c128_104 = arith.constant 128 : index
    %112 = vector.load %arg5[%c0_102, %c0_103, %c128_104] : memref<1x1x256xf32, #tpu.memory_space<vmem>>, vector<1x1x128xf32>
    %113 = vector.shape_cast %112 : vector<1x1x128xf32> to vector<1x128xf32>
    %114 = vector.shape_cast %108 : vector<1x128xf32> to vector<1x1x128xf32>
    tpu.vector_store %arg5[%c0_102, %c0_103, %c128_104], %114 {strides = array<i32>} : memref<1x1x256xf32, #tpu.memory_space<vmem>>, vector<1x1x128xf32>,
    return
  }
  func.func @transform_0(%arg0: i32) -> (i32, i32, i32, i32) {
    %c0_i32 = arith.constant 0 : i32
    %c0_i32_0 = arith.constant 0 : i32
    %c0_i32_1 = arith.constant 0 : i32
    %c0_i32_2 = arith.constant 0 : i32
    return %arg0, %c0_i32, %c0_i32_0, %c0_i32_1 : i32, i32, i32, i32
  }
  func.func @transform_1(%arg0: i32) -> (i32, i32, i32, i32) {
    %c0_i32 = arith.constant 0 : i32
    %c0_i32_0 = arith.constant 0 : i32
    %c0_i32_1 = arith.constant 0 : i32
    %c0_i32_2 = arith.constant 0 : i32
    return %arg0, %c0_i32, %c0_i32_0, %c0_i32_1 : i32, i32, i32, i32
  }
  func.func @transform_2(%arg0: i32) -> (i32, i32) {
    %c0_i32 = arith.constant 0 : i32
    %c0_i32_0 = arith.constant 0 : i32
    %c0_i32_1 = arith.constant 0 : i32
    return %c0_i32, %c0_i32_0 : i32, i32
  }
  func.func @transform_3(%arg0: i32) -> (i32, i32) {
    %c0_i32 = arith.constant 0 : i32
    %c0_i32_0 = arith.constant 0 : i32
    %c0_i32_1 = arith.constant 0 : i32
    return %c0_i32, %c0_i32_0 : i32, i32
  }
  func.func @transform_4(%arg0: i32) -> (i32, i32, i32) {
    %c0_i32 = arith.constant 0 : i32
    %c0_i32_0 = arith.constant 0 : i32
    %c0_i32_1 = arith.constant 0 : i32
    return %arg0, %c0_i32, %c0_i32_0 : i32, i32, i32
  }
}

</mosaic_0001>

<llo_original>
// kernel: tpu_custom_call.1
$region0: #{tpu_custom_call.1}
  #allocation0 [shape = 'u32[]', space=smem, size = 0x4, offset = 0x4, fixed_abs, tag = 'smem constant byte address 0x4 - core index']
  #allocation1 [shape = 'u32[144,128]{1,0:T(1,128)}', space=vmem, size = 0x12000, scoped, tag = 'internal scratch']
  #allocation2 [shape = 'f32[16,640]{1,0:T(8,128)}', space=vmem, size = 0xa000, scoped, tag = 'scratch operand']
  %s0 = inlined_call_operand.hbm [shape: f32[1,8,16,16], index: 0, kind: input, shape index: {}]
  %s1 = inlined_call_operand.hbm [shape: f32[1,8,16,16], index: 1, kind: input, shape index: {}]
  %s2 = inlined_call_operand.hbm [shape: f32[6,16], index: 2, kind: input, shape index: {}]
  %s3 = inlined_call_operand.hbm [shape: f32[128,128], index: 3, kind: input, shape index: {}]
  %s4 = inlined_call_operand.hbm [shape: f32[1,1,256], index: 4, kind: output, shape index: {}]
  %s5 = sld [smem:[#allocation0]]
  $region42: #{tpu_custom_call.1} parent=0
    _
  %s7 = ssub.s32 1, %s5
  %s8 = scalar_select 0, %s7, %s5
  $region1: #{tpu_custom_call.1} parent=0
    #allocation3 [shape = 'u8[65536]{0}', space=vmem, size = 0x10000, scoped, tag = 'input window, operand 0, single buffered']
    #allocation4 [shape = 's32[1]{0}', space=sflag, size = 0x4, scoped, tag = 'scoped memory for tpu_custom_call.1']
    #allocation5 [shape = 's32[1]{0}', space=sflag, size = 0x4, scoped, tag = 'scoped memory for tpu_custom_call.1']
    #allocation6 [shape = 'u8[65536]{0}', space=vmem, size = 0x10000, scoped, tag = 'input window, operand 1, single buffered']
    #allocation7 [shape = 's32[1]{0}', space=sflag, size = 0x4, scoped, tag = 'scoped memory for tpu_custom_call.1']
    #allocation8 [shape = 'u8[4096]{0}', space=vmem, size = 0x1000, scoped, tag = 'input window, operand 2, single buffered']
    #allocation9 [shape = 'u8[65536]{0}', space=vmem, size = 0x10000, scoped, tag = 'input window, operand 3, single buffered']
    #allocation10 [shape = 's32[1]{0}', space=sflag, size = 0x4, scoped, tag = 'scoped memory for tpu_custom_call.1']
    #allocation11 [shape = 'u8[1024]{0}', space=vmem, size = 0x400, scoped, tag = 'output window, operand 0, single buffered']
    %9 = vsyncpa [#allocation4], 0
    %10 = vsyncpa [#allocation7], 0
    %11 = vsyncpa [#allocation10], 0
    %12 = vsyncpa [#allocation5], 0
    // Predicated region
    $region2: #{tpu_custom_call.1} parent=1 // pred_check
      _
    $region3: #{tpu_custom_call.1} parent=1 // pred_check_branch
      %14 = sbr.rel (0) target = $region5
    $region4: #{tpu_custom_call.1} parent=1 // pred_region
      %s16 = ssub.s32 2048, 2048
      %17 = vsyncadd [#allocation4], %s16
      %s18 = sshll.u32 [#allocation3], 4
      %s19 = int_to_ptr.vmem [resolvable:$true] %s18
      %24 = dma.hbm_to_vmem [thread:$0]  %s0, 2048, %s19, [#allocation4], 128, 128, 8
    $region5: #{tpu_custom_call.1} parent=1 // pred_fallthru
      _
    // Predicated region
    $region6: #{tpu_custom_call.1} parent=1 // pred_check
      _
    $region7: #{tpu_custom_call.1} parent=1 // pred_check_branch
      %26 = sbr.rel (0) target = $region9
    $region8: #{tpu_custom_call.1} parent=1 // pred_region
      %s28 = ssub.s32 2048, 2048
      %29 = vsyncadd [#allocation7], %s28
      %s30 = sshll.u32 [#allocation6], 4
      %s31 = int_to_ptr.vmem [resolvable:$true] %s30
      %36 = dma.hbm_to_vmem [thread:$0]  %s1, 2048, %s31, [#allocation7], 128, 128, 8
    $region9: #{tpu_custom_call.1} parent=1 // pred_fallthru
      _
    // Predicated region
    $region10: #{tpu_custom_call.1} parent=1 // pred_check
      _
    $region11: #{tpu_custom_call.1} parent=1 // pred_check_branch
      %38 = sbr.rel (0) target = $region13
    $region12: #{tpu_custom_call.1} parent=1 // pred_region
      %s40 = ssub.s32 128, 128
      %41 = vsyncadd [#allocation7], %s40
      %s43 = sshll.u32 [#allocation8], 4
      %s44 = int_to_ptr.vmem [resolvable:$true] %s43
      %46 = dma.hbm_to_vmem [thread:$0]  %s2, 128, %s44, [#allocation7]
    $region13: #{tpu_custom_call.1} parent=1 // pred_fallthru
      _
    // Predicated region
    $region14: #{tpu_custom_call.1} parent=1 // pred_check
      _
    $region15: #{tpu_custom_call.1} parent=1 // pred_check_branch
      %48 = sbr.rel (0) target = $region17
    $region16: #{tpu_custom_call.1} parent=1 // pred_region
      %s50 = ssub.s32 2048, 2048
      %51 = vsyncadd [#allocation10], %s50
      %s52 = sshll.u32 [#allocation9], 4
      %s53 = int_to_ptr.vmem [resolvable:$true] %s52
      %58 = dma.hbm_to_vmem [thread:$0]  %s3, 2048, %s53, [#allocation10], 128, 128, 8
    $region17: #{tpu_custom_call.1} parent=1 // pred_fallthru
      _
    // Predicated region
    $region18: #{tpu_custom_call.1} parent=1 // pred_check
      _
    $region19: #{tpu_custom_call.1} parent=1 // pred_check_branch
      %60 = sbr.rel (0) target = $region21
    $region20: #{tpu_custom_call.1} parent=1 // pred_region
      %61 = dma.done [#allocation4], 2048
    $region21: #{tpu_custom_call.1} parent=1 // pred_fallthru
      _
    // Predicated region
    $region22: #{tpu_custom_call.1} parent=1 // pred_check
      _
    $region23: #{tpu_custom_call.1} parent=1 // pred_check_branch
      %63 = sbr.rel (0) target = $region25
    $region24: #{tpu_custom_call.1} parent=1 // pred_region
      %64 = dma.done [#allocation7], 2048
    $region25: #{tpu_custom_call.1} parent=1 // pred_fallthru
      _
    // Predicated region
    $region26: #{tpu_custom_call.1} parent=1 // pred_check
      _
    $region27: #{tpu_custom_call.1} parent=1 // pred_check_branch
      %66 = sbr.rel (0) target = $region29
    $region28: #{tpu_custom_call.1} parent=1 // pred_region
      %67 = dma.done [#allocation7], 128
    $region29: #{tpu_custom_call.1} parent=1 // pred_fallthru
      _
    // Predicated region
    $region30: #{tpu_custom_call.1} parent=1 // pred_check
      _
    $region31: #{tpu_custom_call.1} parent=1 // pred_check_branch
      %69 = sbr.rel (0) target = $region33
    $region32: #{tpu_custom_call.1} parent=1 // pred_region
      %70 = dma.done [#allocation10], 2048
    $region33: #{tpu_custom_call.1} parent=1 // pred_fallthru
      _
    %v71 = vld [vmem:[#allocation3] sm:$0xff]
    %v72 = vld [vmem:[#allocation3 + $0x8] sm:$0xff]
    %vm73 = vcmask 130048
    %74 = vst.msk [vmem:[#allocation2] sm:$0xff] %vm73, %v71
    %75 = vst.msk [vmem:[#allocation2 + $0x28] sm:$0xff] %vm73, %v72
    %v76 = vld [vmem:[#allocation6] sm:$0xff]
    %v77 = vld [vmem:[#allocation6 + $0x8] sm:$0xff]
    %78 = vst.msk [vmem:[#allocation2 + $0x8] sm:$0xff] %vm73, %v76
    %79 = vst.msk [vmem:[#allocation2 + $0x30] sm:$0xff] %vm73, %v77
    %s80 = scalar_lea.vmem [#allocation3], 16
    %v81 = vld [vmem:[%s80] sm:$0xff]
    %v82 = vld [vmem:[%s80 + $0x8] sm:$0xff]
    %85 = vrot.lane.b32.xlu0 %v81, 16
    %v86 = vpop.permute.xlu0 %85
    %87 = vrot.lane.b32.xlu0 %v82, 16
    %v88 = vpop.permute.xlu0 %87
    %vm91 = vcmask 261248
    %92 = vst.msk [vmem:[#allocation2] sm:$0xff] %vm91, %v86
    %93 = vst.msk [vmem:[#allocation2 + $0x28] sm:$0xff] %vm91, %v88
    %s94 = scalar_lea.vmem [#allocation6], 16
    %v95 = vld [vmem:[%s94] sm:$0xff]
    %v96 = vld [vmem:[%s94 + $0x8] sm:$0xff]
    %99 = vrot.lane.b32.xlu0 %v95, 16
    %v100 = vpop.permute.xlu0 %99
    %101 = vrot.lane.b32.xlu0 %v96, 16
    %v102 = vpop.permute.xlu0 %101
    %105 = vst.msk [vmem:[#allocation2 + $0x8] sm:$0xff] %vm91, %v100
    %106 = vst.msk [vmem:[#allocation2 + $0x30] sm:$0xff] %vm91, %v102
    %s107 = scalar_lea.vmem [#allocation3], 32
    %v108 = vld [vmem:[%s107] sm:$0xff]
    %v109 = vld [vmem:[%s107 + $0x8] sm:$0xff]
    %112 = vrot.lane.b32.xlu0 %v108, 32
    %v113 = vpop.permute.xlu0 %112
    %114 = vrot.lane.b32.xlu0 %v109, 32
    %v115 = vpop.permute.xlu0 %114
    %vm118 = vcmask 392448
    %119 = vst.msk [vmem:[#allocation2] sm:$0xff] %vm118, %v113
    %120 = vst.msk [vmem:[#allocation2 + $0x28] sm:$0xff] %vm118, %v115
    %s121 = scalar_lea.vmem [#allocation6], 32
    %v122 = vld [vmem:[%s121] sm:$0xff]
    %v123 = vld [vmem:[%s121 + $0x8] sm:$0xff]
    %126 = vrot.lane.b32.xlu0 %v122, 32
    %v127 = vpop.permute.xlu0 %126
    %128 = vrot.lane.b32.xlu0 %v123, 32
    %v129 = vpop.permute.xlu0 %128
    %132 = vst.msk [vmem:[#allocation2 + $0x8] sm:$0xff] %vm118, %v127
    %133 = vst.msk [vmem:[#allocation2 + $0x30] sm:$0xff] %vm118, %v129
    %s134 = scalar_lea.vmem [#allocation3], 48
    %v135 = vld [vmem:[%s134] sm:$0xff]
    %v136 = vld [vmem:[%s134 + $0x8] sm:$0xff]
    %139 = vrot.lane.b32.xlu0 %v135, 48
    %v140 = vpop.permute.xlu0 %139
    %141 = vrot.lane.b32.xlu0 %v136, 48
    %v142 = vpop.permute.xlu0 %141
    %vm145 = vcmask 523648
    %146 = vst.msk [vmem:[#allocation2] sm:$0xff] %vm145, %v140
    %147 = vst.msk [vmem:[#allocation2 + $0x28] sm:$0xff] %vm145, %v142
    %s148 = scalar_lea.vmem [#allocation6], 48
    %v149 = vld [vmem:[%s148] sm:$0xff]
    %v150 = vld [vmem:[%s148 + $0x8] sm:$0xff]
    %153 = vrot.lane.b32.xlu0 %v149, 48
    %v154 = vpop.permute.xlu0 %153
    %155 = vrot.lane.b32.xlu0 %v150, 48
    %v156 = vpop.permute.xlu0 %155
    %159 = vst.msk [vmem:[#allocation2 + $0x8] sm:$0xff] %vm145, %v154
    %160 = vst.msk [vmem:[#allocation2 + $0x30] sm:$0xff] %vm145, %v156
    %s161 = scalar_lea.vmem [#allocation3], 64
    %v162 = vld [vmem:[%s161] sm:$0xff]
    %v163 = vld [vmem:[%s161 + $0x8] sm:$0xff]
    %166 = vrot.lane.b32.xlu0 %v162, 64
    %v167 = vpop.permute.xlu0 %166
    %168 = vrot.lane.b32.xlu0 %v163, 64
    %v169 = vpop.permute.xlu0 %168
    %vm172 = vcmask 654848
    %173 = vst.msk [vmem:[#allocation2] sm:$0xff] %vm172, %v167
    %174 = vst.msk [vmem:[#allocation2 + $0x28] sm:$0xff] %vm172, %v169
    %s175 = scalar_lea.vmem [#allocation6], 64
    %v176 = vld [vmem:[%s175] sm:$0xff]
    %v177 = vld [vmem:[%s175 + $0x8] sm:$0xff]
    %180 = vrot.lane.b32.xlu0 %v176, 64
    %v181 = vpop.permute.xlu0 %180
    %182 = vrot.lane.b32.xlu0 %v177, 64
    %v183 = vpop.permute.xlu0 %182
    %186 = vst.msk [vmem:[#allocation2 + $0x8] sm:$0xff] %vm172, %v181
    %187 = vst.msk [vmem:[#allocation2 + $0x30] sm:$0xff] %vm172, %v183
    %s188 = scalar_lea.vmem [#allocation3], 80
    %v189 = vld [vmem:[%s188] sm:$0xff]
    %v190 = vld [vmem:[%s188 + $0x8] sm:$0xff]
    %193 = vrot.lane.b32.xlu0 %v189, 80
    %v194 = vpop.permute.xlu0 %193
    %195 = vrot.lane.b32.xlu0 %v190, 80
    %v196 = vpop.permute.xlu0 %195
    %vm199 = vcmask 786048
    %200 = vst.msk [vmem:[#allocation2] sm:$0xff] %vm199, %v194
    %201 = vst.msk [vmem:[#allocation2 + $0x28] sm:$0xff] %vm199, %v196
    %s202 = scalar_lea.vmem [#allocation6], 80
    %v203 = vld [vmem:[%s202] sm:$0xff]
    %v204 = vld [vmem:[%s202 + $0x8] sm:$0xff]
    %207 = vrot.lane.b32.xlu0 %v203, 80
    %v208 = vpop.permute.xlu0 %207
    %209 = vrot.lane.b32.xlu0 %v204, 80
    %v210 = vpop.permute.xlu0 %209
    %213 = vst.msk [vmem:[#allocation2 + $0x8] sm:$0xff] %vm199, %v208
    %214 = vst.msk [vmem:[#allocation2 + $0x30] sm:$0xff] %vm199, %v210
    %s215 = scalar_lea.vmem [#allocation3], 96
    %v216 = vld [vmem:[%s215] sm:$0xff]
    %v217 = vld [vmem:[%s215 + $0x8] sm:$0xff]
    %220 = vrot.lane.b32.xlu0 %v216, 96
    %v221 = vpop.permute.xlu0 %220
    %222 = vrot.lane.b32.xlu0 %v217, 96
    %v223 = vpop.permute.xlu0 %222
    %vm226 = vcmask 917248
    %227 = vst.msk [vmem:[#allocation2] sm:$0xff] %vm226, %v221
    %228 = vst.msk [vmem:[#allocation2 + $0x28] sm:$0xff] %vm226, %v223
    %s229 = scalar_lea.vmem [#allocation6], 96
    %v230 = vld [vmem:[%s229] sm:$0xff]
    %v231 = vld [vmem:[%s229 + $0x8] sm:$0xff]
    %234 = vrot.lane.b32.xlu0 %v230, 96
    %v235 = vpop.permute.xlu0 %234
    %236 = vrot.lane.b32.xlu0 %v231, 96
    %v237 = vpop.permute.xlu0 %236
    %240 = vst.msk [vmem:[#allocation2 + $0x8] sm:$0xff] %vm226, %v235
    %241 = vst.msk [vmem:[#allocation2 + $0x30] sm:$0xff] %vm226, %v237
    %s242 = scalar_lea.vmem [#allocation3], 112
    %v243 = vld [vmem:[%s242] sm:$0xff]
    %v244 = vld [vmem:[%s242 + $0x8] sm:$0xff]
    %247 = vrot.lane.b32.xlu0 %v243, 112
    %v248 = vpop.permute.xlu0 %247
    %249 = vrot.lane.b32.xlu0 %v244, 112
    %v250 = vpop.permute.xlu0 %249
    %vm253 = vcmask 1048448
    %254 = vst.msk [vmem:[#allocation2] sm:$0xff] %vm253, %v248
    %255 = vst.msk [vmem:[#allocation2 + $0x28] sm:$0xff] %vm253, %v250
    %s256 = scalar_lea.vmem [#allocation6], 112
    %v257 = vld [vmem:[%s256] sm:$0xff]
    %v258 = vld [vmem:[%s256 + $0x8] sm:$0xff]
    %261 = vrot.lane.b32.xlu0 %v257, 112
    %v262 = vpop.permute.xlu0 %261
    %263 = vrot.lane.b32.xlu0 %v258, 112
    %v264 = vpop.permute.xlu0 %263
    %267 = vst.msk [vmem:[#allocation2 + $0x8] sm:$0xff] %vm253, %v262
    %268 = vst.msk [vmem:[#allocation2 + $0x30] sm:$0xff] %vm253, %v264
    %v269 = vld [vmem:[#allocation2] sm:$0xff]
    %v270 = vld [vmem:[#allocation2 + $0x28] sm:$0xff]
    %v271 = vld [vmem:[#allocation2 + $0x8] sm:$0xff]
    %v272 = vld [vmem:[#allocation2 + $0x30] sm:$0xff]
    %v273 = vmul.f32 %v269, %v269
    %v274 = vmul.f32 %v270, %v270
    %275 = vst [vmem:[#allocation2 + $0x10] sm:$0xff] %v273
    %276 = vst [vmem:[#allocation2 + $0x38] sm:$0xff] %v274
    %v277 = vmul.f32 %v271, %v271
    %v278 = vmul.f32 %v272, %v272
    %279 = vst [vmem:[#allocation2 + $0x18] sm:$0xff] %v277
    %280 = vst [vmem:[#allocation2 + $0x40] sm:$0xff] %v278
    %v281 = vmul.f32 %v269, %v271
    %v282 = vmul.f32 %v270, %v272
    %283 = vst [vmem:[#allocation2 + $0x20] sm:$0xff] %v281
    %284 = vst [vmem:[#allocation2 + $0x48] sm:$0xff] %v282
    %v285 = vld [vmem:[#allocation8] sm:$0x3f]
    %v286 = vld [vmem:[#allocation2] sm:$0xff]
    %v287 = vld [vmem:[#allocation2 + $0x8] sm:$0xff]
    %v288 = vld [vmem:[#allocation2 + $0x10] sm:$0xff]
    %v289 = vld [vmem:[#allocation2 + $0x18] sm:$0xff]
    %v290 = vld [vmem:[#allocation2 + $0x20] sm:$0xff]
    %v291 = vld [vmem:[#allocation2 + $0x28] sm:$0xff]
    %v292 = vld [vmem:[#allocation2 + $0x30] sm:$0xff]
    %v293 = vld [vmem:[#allocation2 + $0x38] sm:$0xff]
    %v294 = vld [vmem:[#allocation2 + $0x40] sm:$0xff]
    %v295 = vld [vmem:[#allocation2 + $0x48] sm:$0xff]
    %v297 = vsel %vm73, %v285, 0
    %v299 = vand.u32 %v287, 4294901760
    %300 = vmatprep.subr.mxu0 %v299
    %v301 = vand.u32 %v286, 4294901760
    %302 = vmatpush1.msra.mxu0 %v301
    %v303 = vand.u32 %v292, 4294901760
    %304 = vmatprep.subr.mxu0 %v303
    %v305 = vand.u32 %v291, 4294901760
    %306 = vmatpush1.msra.mxu0 %v305
    %307 = vmatprep.subr.mxu0 0.0
    %308 = vmatpush1.msra.mxu0 0.0
    %309 = vmatprep.subr.mxu0 0.0
    %310 = vmatpush1.msra.mxu0 0.0
    %311 = vmatprep.subr.mxu0 0.0
    %312 = vmatpush1.msra.mxu0 0.0
    %313 = vmatprep.subr.mxu0 0.0
    %314 = vmatpush1.msra.mxu0 0.0
    %315 = vmatprep.subr.mxu0 0.0
    %316 = vmatpush1.msra.mxu0 0.0
    %317 = vmatprep.subr.mxu0 0.0
    %318 = vmatpush1.msra.mxu0 0.0
    %319 = vmatprep.subr.mxu0 0.0
    %320 = vmatpush1.msra.mxu0 0.0
    %321 = vmatprep.subr.mxu0 0.0
    %322 = vmatpush1.msra.mxu0 0.0
    %323 = vmatprep.subr.mxu0 0.0
    %324 = vmatpush1.msra.mxu0 0.0
    %325 = vmatprep.subr.mxu0 0.0
    %326 = vmatpush1.msra.mxu0 0.0
    %327 = vmatprep.subr.mxu0 0.0
    %328 = vmatpush1.msra.mxu0 0.0
    %329 = vmatprep.subr.mxu0 0.0
    %330 = vmatpush1.msra.mxu0 0.0
    %331 = vmatprep.subr.mxu0 0.0
    %332 = vmatpush1.msra.mxu0 0.0
    %333 = vmatprep.subr.mxu0 0.0
    %334 = vmatpush1.msra.mxu0 0.0
    %335 = vmatprep.subr.mxu0 0.0
    %336 = vmatpush1.msra.mxu0 0.0
    %337 = vmatprep.subr.mxu0 0.0
    %338 = vmatpush1.msra.mxu0 0.0
    %339 = vmatprep.subr.mxu0 0.0
    %340 = vmatpush1.msra.mxu0 0.0
    %341 = vmatprep.subr.mxu0 0.0
    %342 = vmatpush1.msra.mxu0 0.0
    %343 = vmatprep.subr.mxu0 0.0
    %344 = vmatpush1.msra.mxu0 0.0
    %345 = vmatprep.subr.mxu0 0.0
    %346 = vmatpush1.msra.mxu0 0.0
    %347 = vmatprep.subr.mxu0 0.0
    %348 = vmatpush1.msra.mxu0 0.0
    %349 = vmatprep.subr.mxu0 0.0
    %350 = vmatpush1.msra.mxu0 0.0
    %351 = vmatprep.subr.mxu0 0.0
    %352 = vmatpush1.msra.mxu0 0.0
    %353 = vmatprep.subr.mxu0 0.0
    %354 = vmatpush1.msra.mxu0 0.0
    %355 = vmatprep.subr.mxu0 0.0
    %356 = vmatpush1.msra.mxu0 0.0
    %357 = vmatprep.subr.mxu0 0.0
    %358 = vmatpush1.msra.mxu0 0.0
    %359 = vmatprep.subr.mxu0 0.0
    %360 = vmatpush1.msra.mxu0 0.0
    %361 = vmatprep.subr.mxu0 0.0
    %362 = vmatpush1.msra.mxu0 0.0
    %363 = vmatprep.subr.mxu0 0.0
    %364 = vmatpush1.msra.mxu0 0.0
    %365 = vmatprep.subr.mxu0 0.0
    %366 = vmatpush1.msra.mxu0 0.0
    %367 = vmatprep.mubr.f32.mxu0 0.0
    %v368 = vand.u32 %v297, 4294901760
    %v369 = vsub.f32 %v297, %v368
    %v370 = vand.u32 %v369, 4294901760
    %v371 = vsub.f32 %v369, %v370
    %v372 = vand.u32 %v371, 4294901760
    %373 = vmatmul.mubr.f32.gmra.mrb[0].mxu0 %v372
    %v374 = vpop.f32.mrb[0].mxu0
    %v375 = vadd.f32 0.0, %v374
    %v376 = vpop.f32.mrb[0].mxu0
    %v377 = vadd.f32 0.0, %v376
    %378 = vdwg.mxu0
    %v379 = vand.u32 %v287, 4294901760
    %v380 = vsub.f32 %v287, %v379
    %v381 = vand.u32 %v380, 4294901760
    %v382 = vsub.f32 %v380, %v381
    %v383 = vand.u32 %v382, 4294901760
    %384 = vmatprep.subr.mxu0 %v383
    %v385 = vand.u32 %v286, 4294901760
    %v386 = vsub.f32 %v286, %v385
    %v387 = vand.u32 %v386, 4294901760
    %v388 = vsub.f32 %v386, %v387
    %v389 = vand.u32 %v388, 4294901760
    %390 = vmatpush1.msra.mxu0 %v389
    %v391 = vand.u32 %v292, 4294901760
    %v392 = vsub.f32 %v292, %v391
    %v393 = vand.u32 %v392, 4294901760
    %v394 = vsub.f32 %v392, %v393
    %v395 = vand.u32 %v394, 4294901760
    %396 = vmatprep.subr.mxu0 %v395
    %v397 = vand.u32 %v291, 4294901760
    %v398 = vsub.f32 %v291, %v397
    %v399 = vand.u32 %v398, 4294901760
    %v400 = vsub.f32 %v398, %v399
    %v401 = vand.u32 %v400, 4294901760
    %402 = vmatpush1.msra.mxu0 %v401
    %403 = vmatprep.subr.mxu0 0.0
    %404 = vmatpush1.msra.mxu0 0.0
    %405 = vmatprep.subr.mxu0 0.0
    %406 = vmatpush1.msra.mxu0 0.0
    %407 = vmatprep.subr.mxu0 0.0
    %408 = vmatpush1.msra.mxu0 0.0
    %409 = vmatprep.subr.mxu0 0.0
    %410 = vmatpush1.msra.mxu0 0.0
    %411 = vmatprep.subr.mxu0 0.0
    %412 = vmatpush1.msra.mxu0 0.0
    %413 = vmatprep.subr.mxu0 0.0
    %414 = vmatpush1.msra.mxu0 0.0
    %415 = vmatprep.subr.mxu0 0.0
    %416 = vmatpush1.msra.mxu0 0.0
    %417 = vmatprep.subr.mxu0 0.0
    %418 = vmatpush1.msra.mxu0 0.0
    %419 = vmatprep.subr.mxu0 0.0
    %420 = vmatpush1.msra.mxu0 0.0
    %421 = vmatprep.subr.mxu0 0.0
    %422 = vmatpush1.msra.mxu0 0.0
    %423 = vmatprep.subr.mxu0 0.0
    %424 = vmatpush1.msra.mxu0 0.0
    %425 = vmatprep.subr.mxu0 0.0
    %426 = vmatpush1.msra.mxu0 0.0
    %427 = vmatprep.subr.mxu0 0.0
    %428 = vmatpush1.msra.mxu0 0.0
    %429 = vmatprep.subr.mxu0 0.0
    %430 = vmatpush1.msra.mxu0 0.0
    %431 = vmatprep.subr.mxu0 0.0
    %432 = vmatpush1.msra.mxu0 0.0
    %433 = vmatprep.subr.mxu0 0.0
    %434 = vmatpush1.msra.mxu0 0.0
    %435 = vmatprep.subr.mxu0 0.0
    %436 = vmatpush1.msra.mxu0 0.0
    %437 = vmatprep.subr.mxu0 0.0
    %438 = vmatpush1.msra.mxu0 0.0
    %439 = vmatprep.subr.mxu0 0.0
    %440 = vmatpush1.msra.mxu0 0.0
    %441 = vmatprep.subr.mxu0 0.0
    %442 = vmatpush1.msra.mxu0 0.0
    %443 = vmatprep.subr.mxu0 0.0
    %444 = vmatpush1.msra.mxu0 0.0
    %445 = vmatprep.subr.mxu0 0.0
    %446 = vmatpush1.msra.mxu0 0.0
    %447 = vmatprep.subr.mxu0 0.0
    %448 = vmatpush1.msra.mxu0 0.0
    %449 = vmatprep.subr.mxu0 0.0
    %450 = vmatpush1.msra.mxu0 0.0
    %451 = vmatprep.subr.mxu0 0.0
    %452 = vmatpush1.msra.mxu0 0.0
    %453 = vmatprep.subr.mxu0 0.0
    %454 = vmatpush1.msra.mxu0 0.0
    %455 = vmatprep.subr.mxu0 0.0
    %456 = vmatpush1.msra.mxu0 0.0
    %457 = vmatprep.subr.mxu0 0.0
    %458 = vmatpush1.msra.mxu0 0.0
    %459 = vmatprep.subr.mxu0 0.0
    %460 = vmatpush1.msra.mxu0 0.0
    %461 = vmatprep.subr.mxu0 0.0
    %462 = vmatpush1.msra.mxu0 0.0
    %463 = vmatprep.mubr.f32.mxu0 0.0
    %v464 = vand.u32 %v297, 4294901760
    %465 = vmatmul.mubr.f32.gmra.mrb[0].mxu0 %v464
    %v466 = vpop.f32.mrb[0].mxu0
    %v467 = vadd.f32 %v375, %v466
    %v468 = vpop.f32.mrb[0].mxu0
    %v469 = vadd.f32 %v377, %v468
    %470 = vdwg.mxu0
    %v471 = vand.u32 %v287, 4294901760
    %v472 = vsub.f32 %v287, %v471
    %473 = vmatprep.subr.mxu0 %v472
    %v474 = vand.u32 %v286, 4294901760
    %v475 = vsub.f32 %v286, %v474
    %476 = vmatpush1.msra.mxu0 %v475
    %v477 = vand.u32 %v292, 4294901760
    %v478 = vsub.f32 %v292, %v477
    %479 = vmatprep.subr.mxu0 %v478
    %v480 = vand.u32 %v291, 4294901760
    %v481 = vsub.f32 %v291, %v480
    %482 = vmatpush1.msra.mxu0 %v481
    %483 = vmatprep.subr.mxu0 0.0
    %484 = vmatpush1.msra.mxu0 0.0
    %485 = vmatprep.subr.mxu0 0.0
    %486 = vmatpush1.msra.mxu0 0.0
    %487 = vmatprep.subr.mxu0 0.0
    %488 = vmatpush1.msra.mxu0 0.0
    %489 = vmatprep.subr.mxu0 0.0
    %490 = vmatpush1.msra.mxu0 0.0
    %491 = vmatprep.subr.mxu0 0.0
    %492 = vmatpush1.msra.mxu0 0.0
    %493 = vmatprep.subr.mxu0 0.0
    %494 = vmatpush1.msra.mxu0 0.0
    %495 = vmatprep.subr.mxu0 0.0
    %496 = vmatpush1.msra.mxu0 0.0
    %497 = vmatprep.subr.mxu0 0.0
    %498 = vmatpush1.msra.mxu0 0.0
    %499 = vmatprep.subr.mxu0 0.0
    %500 = vmatpush1.msra.mxu0 0.0
    %501 = vmatprep.subr.mxu0 0.0
    %502 = vmatpush1.msra.mxu0 0.0
    %503 = vmatprep.subr.mxu0 0.0
    %504 = vmatpush1.msra.mxu0 0.0
    %505 = vmatprep.subr.mxu0 0.0
    %506 = vmatpush1.msra.mxu0 0.0
    %507 = vmatprep.subr.mxu0 0.0
    %508 = vmatpush1.msra.mxu0 0.0
    %509 = vmatprep.subr.mxu0 0.0
    %510 = vmatpush1.msra.mxu0 0.0
    %511 = vmatprep.subr.mxu0 0.0
    %512 = vmatpush1.msra.mxu0 0.0
    %513 = vmatprep.subr.mxu0 0.0
    %514 = vmatpush1.msra.mxu0 0.0
    %515 = vmatprep.subr.mxu0 0.0
    %516 = vmatpush1.msra.mxu0 0.0
    %517 = vmatprep.subr.mxu0 0.0
    %518 = vmatpush1.msra.mxu0 0.0
    %519 = vmatprep.subr.mxu0 0.0
    %520 = vmatpush1.msra.mxu0 0.0
    %521 = vmatprep.subr.mxu0 0.0
    %522 = vmatpush1.msra.mxu0 0.0
    %523 = vmatprep.subr.mxu0 0.0
    %524 = vmatpush1.msra.mxu0 0.0
    %525 = vmatprep.subr.mxu0 0.0
    %526 = vmatpush1.msra.mxu0 0.0
    %527 = vmatprep.subr.mxu0 0.0
    %528 = vmatpush1.msra.mxu0 0.0
    %529 = vmatprep.subr.mxu0 0.0
    %530 = vmatpush1.msra.mxu0 0.0
    %531 = vmatprep.subr.mxu0 0.0
    %532 = vmatpush1.msra.mxu0 0.0
    %533 = vmatprep.subr.mxu0 0.0
    %534 = vmatpush1.msra.mxu0 0.0
    %535 = vmatprep.subr.mxu0 0.0
    %536 = vmatpush1.msra.mxu0 0.0
    %537 = vmatprep.subr.mxu0 0.0
    %538 = vmatpush1.msra.mxu0 0.0
    %539 = vmatprep.subr.mxu0 0.0
    %540 = vmatpush1.msra.mxu0 0.0
    %541 = vmatprep.subr.mxu0 0.0
    %542 = vmatpush1.msra.mxu0 0.0
    %543 = vmatprep.mubr.f32.mxu0 0.0
    %v544 = vand.u32 %v297, 4294901760
    %v545 = vsub.f32 %v297, %v544
    %546 = vmatmul.mubr.f32.gmra.mrb[0].mxu0 %v545
    %v547 = vpop.f32.mrb[0].mxu0
    %v548 = vadd.f32 %v467, %v547
    %v549 = vpop.f32.mrb[0].mxu0
    %v550 = vadd.f32 %v469, %v549
    %551 = vdwg.mxu0
    %v552 = vand.u32 %v287, 4294901760
    %553 = vmatprep.subr.mxu0 %v552
    %v554 = vand.u32 %v286, 4294901760
    %555 = vmatpush1.msra.mxu0 %v554
    %v556 = vand.u32 %v292, 4294901760
    %557 = vmatprep.subr.mxu0 %v556
    %v558 = vand.u32 %v291, 4294901760
    %559 = vmatpush1.msra.mxu0 %v558
    %560 = vmatprep.subr.mxu0 0.0
    %561 = vmatpush1.msra.mxu0 0.0
    %562 = vmatprep.subr.mxu0 0.0
    %563 = vmatpush1.msra.mxu0 0.0
    %564 = vmatprep.subr.mxu0 0.0
    %565 = vmatpush1.msra.mxu0 0.0
    %566 = vmatprep.subr.mxu0 0.0
    %567 = vmatpush1.msra.mxu0 0.0
    %568 = vmatprep.subr.mxu0 0.0
    %569 = vmatpush1.msra.mxu0 0.0
    %570 = vmatprep.subr.mxu0 0.0
    %571 = vmatpush1.msra.mxu0 0.0
    %572 = vmatprep.subr.mxu0 0.0
    %573 = vmatpush1.msra.mxu0 0.0
    %574 = vmatprep.subr.mxu0 0.0
    %575 = vmatpush1.msra.mxu0 0.0
    %576 = vmatprep.subr.mxu0 0.0
    %577 = vmatpush1.msra.mxu0 0.0
    %578 = vmatprep.subr.mxu0 0.0
    %579 = vmatpush1.msra.mxu0 0.0
    %580 = vmatprep.subr.mxu0 0.0
    %581 = vmatpush1.msra.mxu0 0.0
    %582 = vmatprep.subr.mxu0 0.0
    %583 = vmatpush1.msra.mxu0 0.0
    %584 = vmatprep.subr.mxu0 0.0
    %585 = vmatpush1.msra.mxu0 0.0
    %586 = vmatprep.subr.mxu0 0.0
    %587 = vmatpush1.msra.mxu0 0.0
    %588 = vmatprep.subr.mxu0 0.0
    %589 = vmatpush1.msra.mxu0 0.0
    %590 = vmatprep.subr.mxu0 0.0
    %591 = vmatpush1.msra.mxu0 0.0
    %592 = vmatprep.subr.mxu0 0.0
    %593 = vmatpush1.msra.mxu0 0.0
    %594 = vmatprep.subr.mxu0 0.0
    %595 = vmatpush1.msra.mxu0 0.0
    %596 = vmatprep.subr.mxu0 0.0
    %597 = vmatpush1.msra.mxu0 0.0
    %598 = vmatprep.subr.mxu0 0.0
    %599 = vmatpush1.msra.mxu0 0.0
    %600 = vmatprep.subr.mxu0 0.0
    %601 = vmatpush1.msra.mxu0 0.0
    %602 = vmatprep.subr.mxu0 0.0
    %603 = vmatpush1.msra.mxu0 0.0
    %604 = vmatprep.subr.mxu0 0.0
    %605 = vmatpush1.msra.mxu0 0.0
    %606 = vmatprep.subr.mxu0 0.0
    %607 = vmatpush1.msra.mxu0 0.0
    %608 = vmatprep.subr.mxu0 0.0
    %609 = vmatpush1.msra.mxu0 0.0
    %610 = vmatprep.subr.mxu0 0.0
    %611 = vmatpush1.msra.mxu0 0.0
    %612 = vmatprep.subr.mxu0 0.0
    %613 = vmatpush1.msra.mxu0 0.0
    %614 = vmatprep.subr.mxu0 0.0
    %615 = vmatpush1.msra.mxu0 0.0
    %616 = vmatprep.subr.mxu0 0.0
    %617 = vmatpush1.msra.mxu0 0.0
    %618 = vmatprep.subr.mxu0 0.0
    %619 = vmatpush1.msra.mxu0 0.0
    %620 = vmatprep.mubr.f32.mxu0 0.0
    %v621 = vand.u32 %v297, 4294901760
    %v622 = vsub.f32 %v297, %v621
    %v623 = vand.u32 %v622, 4294901760
    %624 = vmatmul.mubr.f32.gmra.mrb[0].mxu0 %v623
    %v625 = vpop.f32.mrb[0].mxu0
    %v626 = vadd.f32 %v548, %v625
    %v627 = vpop.f32.mrb[0].mxu0
    %v628 = vadd.f32 %v550, %v627
    %629 = vdwg.mxu0
    %v630 = vand.u32 %v287, 4294901760
    %v631 = vsub.f32 %v287, %v630
    %v632 = vand.u32 %v631, 4294901760
    %633 = vmatprep.subr.mxu0 %v632
    %v634 = vand.u32 %v286, 4294901760
    %v635 = vsub.f32 %v286, %v634
    %v636 = vand.u32 %v635, 4294901760
    %637 = vmatpush1.msra.mxu0 %v636
    %v638 = vand.u32 %v292, 4294901760
    %v639 = vsub.f32 %v292, %v638
    %v640 = vand.u32 %v639, 4294901760
    %641 = vmatprep.subr.mxu0 %v640
    %v642 = vand.u32 %v291, 4294901760
    %v643 = vsub.f32 %v291, %v642
    %v644 = vand.u32 %v643, 4294901760
    %645 = vmatpush1.msra.mxu0 %v644
    %646 = vmatprep.subr.mxu0 0.0
    %647 = vmatpush1.msra.mxu0 0.0
    %648 = vmatprep.subr.mxu0 0.0
    %649 = vmatpush1.msra.mxu0 0.0
    %650 = vmatprep.subr.mxu0 0.0
    %651 = vmatpush1.msra.mxu0 0.0
    %652 = vmatprep.subr.mxu0 0.0
    %653 = vmatpush1.msra.mxu0 0.0
    %654 = vmatprep.subr.mxu0 0.0
    %655 = vmatpush1.msra.mxu0 0.0
    %656 = vmatprep.subr.mxu0 0.0
    %657 = vmatpush1.msra.mxu0 0.0
    %658 = vmatprep.subr.mxu0 0.0
    %659 = vmatpush1.msra.mxu0 0.0
    %660 = vmatprep.subr.mxu0 0.0
    %661 = vmatpush1.msra.mxu0 0.0
    %662 = vmatprep.subr.mxu0 0.0
    %663 = vmatpush1.msra.mxu0 0.0
    %664 = vmatprep.subr.mxu0 0.0
    %665 = vmatpush1.msra.mxu0 0.0
    %666 = vmatprep.subr.mxu0 0.0
    %667 = vmatpush1.msra.mxu0 0.0
    %668 = vmatprep.subr.mxu0 0.0
    %669 = vmatpush1.msra.mxu0 0.0
    %670 = vmatprep.subr.mxu0 0.0
    %671 = vmatpush1.msra.mxu0 0.0
    %672 = vmatprep.subr.mxu0 0.0
    %673 = vmatpush1.msra.mxu0 0.0
    %674 = vmatprep.subr.mxu0 0.0
    %675 = vmatpush1.msra.mxu0 0.0
    %676 = vmatprep.subr.mxu0 0.0
    %677 = vmatpush1.msra.mxu0 0.0
    %678 = vmatprep.subr.mxu0 0.0
    %679 = vmatpush1.msra.mxu0 0.0
    %680 = vmatprep.subr.mxu0 0.0
    %681 = vmatpush1.msra.mxu0 0.0
    %682 = vmatprep.subr.mxu0 0.0
    %683 = vmatpush1.msra.mxu0 0.0
    %684 = vmatprep.subr.mxu0 0.0
    %685 = vmatpush1.msra.mxu0 0.0
    %686 = vmatprep.subr.mxu0 0.0
    %687 = vmatpush1.msra.mxu0 0.0
    %688 = vmatprep.subr.mxu0 0.0
    %689 = vmatpush1.msra.mxu0 0.0
    %690 = vmatprep.subr.mxu0 0.0
    %691 = vmatpush1.msra.mxu0 0.0
    %692 = vmatprep.subr.mxu0 0.0
    %693 = vmatpush1.msra.mxu0 0.0
    %694 = vmatprep.subr.mxu0 0.0
    %695 = vmatpush1.msra.mxu0 0.0
    %696 = vmatprep.subr.mxu0 0.0
    %697 = vmatpush1.msra.mxu0 0.0
    %698 = vmatprep.subr.mxu0 0.0
    %699 = vmatpush1.msra.mxu0 0.0
    %700 = vmatprep.subr.mxu0 0.0
    %701 = vmatpush1.msra.mxu0 0.0
    %702 = vmatprep.subr.mxu0 0.0
    %703 = vmatpush1.msra.mxu0 0.0
    %704 = vmatprep.subr.mxu0 0.0
    %705 = vmatpush1.msra.mxu0 0.0
    %706 = vmatprep.mubr.f32.mxu0 0.0
    %v707 = vand.u32 %v297, 4294901760
    %708 = vmatmul.mubr.f32.gmra.mrb[0].mxu0 %v707
    %v709 = vpop.f32.mrb[0].mxu0
    %v710 = vadd.f32 %v626, %v709
    %v711 = vpop.f32.mrb[0].mxu0
    %v712 = vadd.f32 %v628, %v711
    %713 = vdwg.mxu0
    %v714 = vand.u32 %v287, 4294901760
    %715 = vmatprep.subr.mxu0 %v714
    %v716 = vand.u32 %v286, 4294901760
    %717 = vmatpush1.msra.mxu0 %v716
    %v718 = vand.u32 %v292, 4294901760
    %719 = vmatprep.subr.mxu0 %v718
    %v720 = vand.u32 %v291, 4294901760
    %721 = vmatpush1.msra.mxu0 %v720
    %722 = vmatprep.subr.mxu0 0.0
    %723 = vmatpush1.msra.mxu0 0.0
    %724 = vmatprep.subr.mxu0 0.0
    %725 = vmatpush1.msra.mxu0 0.0
    %726 = vmatprep.subr.mxu0 0.0
    %727 = vmatpush1.msra.mxu0 0.0
    %728 = vmatprep.subr.mxu0 0.0
    %729 = vmatpush1.msra.mxu0 0.0
    %730 = vmatprep.subr.mxu0 0.0
    %731 = vmatpush1.msra.mxu0 0.0
    %732 = vmatprep.subr.mxu0 0.0
    %733 = vmatpush1.msra.mxu0 0.0
    %734 = vmatprep.subr.mxu0 0.0
    %735 = vmatpush1.msra.mxu0 0.0
    %736 = vmatprep.subr.mxu0 0.0
    %737 = vmatpush1.msra.mxu0 0.0
    %738 = vmatprep.subr.mxu0 0.0
    %739 = vmatpush1.msra.mxu0 0.0
    %740 = vmatprep.subr.mxu0 0.0
    %741 = vmatpush1.msra.mxu0 0.0
    %742 = vmatprep.subr.mxu0 0.0
    %743 = vmatpush1.msra.mxu0 0.0
    %744 = vmatprep.subr.mxu0 0.0
    %745 = vmatpush1.msra.mxu0 0.0
    %746 = vmatprep.subr.mxu0 0.0
    %747 = vmatpush1.msra.mxu0 0.0
    %748 = vmatprep.subr.mxu0 0.0
    %749 = vmatpush1.msra.mxu0 0.0
    %750 = vmatprep.subr.mxu0 0.0
    %751 = vmatpush1.msra.mxu0 0.0
    %752 = vmatprep.subr.mxu0 0.0
    %753 = vmatpush1.msra.mxu0 0.0
    %754 = vmatprep.subr.mxu0 0.0
    %755 = vmatpush1.msra.mxu0 0.0
    %756 = vmatprep.subr.mxu0 0.0
    %757 = vmatpush1.msra.mxu0 0.0
    %758 = vmatprep.subr.mxu0 0.0
    %759 = vmatpush1.msra.mxu0 0.0
    %760 = vmatprep.subr.mxu0 0.0
    %761 = vmatpush1.msra.mxu0 0.0
    %762 = vmatprep.subr.mxu0 0.0
    %763 = vmatpush1.msra.mxu0 0.0
    %764 = vmatprep.subr.mxu0 0.0
    %765 = vmatpush1.msra.mxu0 0.0
    %766 = vmatprep.subr.mxu0 0.0
    %767 = vmatpush1.msra.mxu0 0.0
    %768 = vmatprep.subr.mxu0 0.0
    %769 = vmatpush1.msra.mxu0 0.0
    %770 = vmatprep.subr.mxu0 0.0
    %771 = vmatpush1.msra.mxu0 0.0
    %772 = vmatprep.subr.mxu0 0.0
    %773 = vmatpush1.msra.mxu0 0.0
    %774 = vmatprep.subr.mxu0 0.0
    %775 = vmatpush1.msra.mxu0 0.0
    %776 = vmatprep.subr.mxu0 0.0
    %777 = vmatpush1.msra.mxu0 0.0
    %778 = vmatprep.subr.mxu0 0.0
    %779 = vmatpush1.msra.mxu0 0.0
    %780 = vmatprep.subr.mxu0 0.0
    %781 = vmatpush1.msra.mxu0 0.0
    %782 = vmatprep.mubr.f32.mxu0 0.0
    %v783 = vand.u32 %v297, 4294901760
    %784 = vmatmul.mubr.f32.gmra.mrb[0].mxu0 %v783
    %v785 = vpop.f32.mrb[0].mxu0
    %v786 = vadd.f32 %v710, %v785
    %v787 = vpop.f32.mrb[0].mxu0
    %v788 = vadd.f32 %v712, %v787
    %789 = vdwg.mxu0
    %v790 = vand.u32 %v289, 4294901760
    %791 = vmatprep.subr.mxu0 %v790
    %v792 = vand.u32 %v288, 4294901760
    %793 = vmatpush1.msra.mxu0 %v792
    %v794 = vand.u32 %v294, 4294901760
    %795 = vmatprep.subr.mxu0 %v794
    %v796 = vand.u32 %v293, 4294901760
    %797 = vmatpush1.msra.mxu0 %v796
    %798 = vmatprep.subr.mxu0 0.0
    %799 = vmatpush1.msra.mxu0 0.0
    %800 = vmatprep.subr.mxu0 0.0
    %801 = vmatpush1.msra.mxu0 0.0
    %802 = vmatprep.subr.mxu0 0.0
    %803 = vmatpush1.msra.mxu0 0.0
    %804 = vmatprep.subr.mxu0 0.0
    %805 = vmatpush1.msra.mxu0 0.0
    %806 = vmatprep.subr.mxu0 0.0
    %807 = vmatpush1.msra.mxu0 0.0
    %808 = vmatprep.subr.mxu0 0.0
    %809 = vmatpush1.msra.mxu0 0.0
    %810 = vmatprep.subr.mxu0 0.0
    %811 = vmatpush1.msra.mxu0 0.0
    %812 = vmatprep.subr.mxu0 0.0
    %813 = vmatpush1.msra.mxu0 0.0
    %814 = vmatprep.subr.mxu0 0.0
    %815 = vmatpush1.msra.mxu0 0.0
    %816 = vmatprep.subr.mxu0 0.0
    %817 = vmatpush1.msra.mxu0 0.0
    %818 = vmatprep.subr.mxu0 0.0
    %819 = vmatpush1.msra.mxu0 0.0
    %820 = vmatprep.subr.mxu0 0.0
    %821 = vmatpush1.msra.mxu0 0.0
    %822 = vmatprep.subr.mxu0 0.0
    %823 = vmatpush1.msra.mxu0 0.0
    %824 = vmatprep.subr.mxu0 0.0
    %825 = vmatpush1.msra.mxu0 0.0
    %826 = vmatprep.subr.mxu0 0.0
    %827 = vmatpush1.msra.mxu0 0.0
    %828 = vmatprep.subr.mxu0 0.0
    %829 = vmatpush1.msra.mxu0 0.0
    %830 = vmatprep.subr.mxu0 0.0
    %831 = vmatpush1.msra.mxu0 0.0
    %832 = vmatprep.subr.mxu0 0.0
    %833 = vmatpush1.msra.mxu0 0.0
    %834 = vmatprep.subr.mxu0 0.0
    %835 = vmatpush1.msra.mxu0 0.0
    %836 = vmatprep.subr.mxu0 0.0
    %837 = vmatpush1.msra.mxu0 0.0
    %838 = vmatprep.subr.mxu0 0.0
    %839 = vmatpush1.msra.mxu0 0.0
    %840 = vmatprep.subr.mxu0 0.0
    %841 = vmatpush1.msra.mxu0 0.0
    %842 = vmatprep.subr.mxu0 0.0
    %843 = vmatpush1.msra.mxu0 0.0
    %844 = vmatprep.subr.mxu0 0.0
    %845 = vmatpush1.msra.mxu0 0.0
    %846 = vmatprep.subr.mxu0 0.0
    %847 = vmatpush1.msra.mxu0 0.0
    %848 = vmatprep.subr.mxu0 0.0
    %849 = vmatpush1.msra.mxu0 0.0
    %850 = vmatprep.subr.mxu0 0.0
    %851 = vmatpush1.msra.mxu0 0.0
    %852 = vmatprep.subr.mxu0 0.0
    %853 = vmatpush1.msra.mxu0 0.0
    %854 = vmatprep.subr.mxu0 0.0
    %855 = vmatpush1.msra.mxu0 0.0
    %856 = vmatprep.subr.mxu0 0.0
    %857 = vmatpush1.msra.mxu0 0.0
    %858 = vmatprep.mubr.f32.mxu0 0.0
    %v859 = vand.u32 %v297, 4294901760
    %v860 = vsub.f32 %v297, %v859
    %v861 = vand.u32 %v860, 4294901760
    %v862 = vsub.f32 %v860, %v861
    %v863 = vand.u32 %v862, 4294901760
    %864 = vmatmul.mubr.f32.gmra.mrb[0].mxu0 %v863
    %v865 = vpop.f32.mrb[0].mxu0
    %v866 = vadd.f32 0.0, %v865
    %v867 = vpop.f32.mrb[0].mxu0
    %v868 = vadd.f32 0.0, %v867
    %869 = vdwg.mxu0
    %v870 = vand.u32 %v289, 4294901760
    %v871 = vsub.f32 %v289, %v870
    %v872 = vand.u32 %v871, 4294901760
    %v873 = vsub.f32 %v871, %v872
    %v874 = vand.u32 %v873, 4294901760
    %875 = vmatprep.subr.mxu0 %v874
    %v876 = vand.u32 %v288, 4294901760
    %v877 = vsub.f32 %v288, %v876
    %v878 = vand.u32 %v877, 4294901760
    %v879 = vsub.f32 %v877, %v878
    %v880 = vand.u32 %v879, 4294901760
    %881 = vmatpush1.msra.mxu0 %v880
    %v882 = vand.u32 %v294, 4294901760
    %v883 = vsub.f32 %v294, %v882
    %v884 = vand.u32 %v883, 4294901760
    %v885 = vsub.f32 %v883, %v884
    %v886 = vand.u32 %v885, 4294901760
    %887 = vmatprep.subr.mxu0 %v886
    %v888 = vand.u32 %v293, 4294901760
    %v889 = vsub.f32 %v293, %v888
    %v890 = vand.u32 %v889, 4294901760
    %v891 = vsub.f32 %v889, %v890
    %v892 = vand.u32 %v891, 4294901760
    %893 = vmatpush1.msra.mxu0 %v892
    %894 = vmatprep.subr.mxu0 0.0
    %895 = vmatpush1.msra.mxu0 0.0
    %896 = vmatprep.subr.mxu0 0.0
    %897 = vmatpush1.msra.mxu0 0.0
    %898 = vmatprep.subr.mxu0 0.0
    %899 = vmatpush1.msra.mxu0 0.0
    %900 = vmatprep.subr.mxu0 0.0
    %901 = vmatpush1.msra.mxu0 0.0
    %902 = vmatprep.subr.mxu0 0.0
    %903 = vmatpush1.msra.mxu0 0.0
    %904 = vmatprep.subr.mxu0 0.0
    %905 = vmatpush1.msra.mxu0 0.0
    %906 = vmatprep.subr.mxu0 0.0
    %907 = vmatpush1.msra.mxu0 0.0
    %908 = vmatprep.subr.mxu0 0.0
    %909 = vmatpush1.msra.mxu0 0.0
    %910 = vmatprep.subr.mxu0 0.0
    %911 = vmatpush1.msra.mxu0 0.0
    %912 = vmatprep.subr.mxu0 0.0
    %913 = vmatpush1.msra.mxu0 0.0
    %914 = vmatprep.subr.mxu0 0.0
    %915 = vmatpush1.msra.mxu0 0.0
    %916 = vmatprep.subr.mxu0 0.0
    %917 = vmatpush1.msra.mxu0 0.0
    %918 = vmatprep.subr.mxu0 0.0
    %919 = vmatpush1.msra.mxu0 0.0
    %920 = vmatprep.subr.mxu0 0.0
    %921 = vmatpush1.msra.mxu0 0.0
    %922 = vmatprep.subr.mxu0 0.0
    %923 = vmatpush1.msra.mxu0 0.0
    %924 = vmatprep.subr.mxu0 0.0
    %925 = vmatpush1.msra.mxu0 0.0
    %926 = vmatprep.subr.mxu0 0.0
    %927 = vmatpush1.msra.mxu0 0.0
    %928 = vmatprep.subr.mxu0 0.0
    %929 = vmatpush1.msra.mxu0 0.0
    %930 = vmatprep.subr.mxu0 0.0
    %931 = vmatpush1.msra.mxu0 0.0
    %932 = vmatprep.subr.mxu0 0.0
    %933 = vmatpush1.msra.mxu0 0.0
    %934 = vmatprep.subr.mxu0 0.0
    %935 = vmatpush1.msra.mxu0 0.0
    %936 = vmatprep.subr.mxu0 0.0
    %937 = vmatpush1.msra.mxu0 0.0
    %938 = vmatprep.subr.mxu0 0.0
    %939 = vmatpush1.msra.mxu0 0.0
    %940 = vmatprep.subr.mxu0 0.0
    %941 = vmatpush1.msra.mxu0 0.0
    %942 = vmatprep.subr.mxu0 0.0
    %943 = vmatpush1.msra.mxu0 0.0
    %944 = vmatprep.subr.mxu0 0.0
    %945 = vmatpush1.msra.mxu0 0.0
    %946 = vmatprep.subr.mxu0 0.0
    %947 = vmatpush1.msra.mxu0 0.0
    %948 = vmatprep.subr.mxu0 0.0
    %949 = vmatpush1.msra.mxu0 0.0
    %950 = vmatprep.subr.mxu0 0.0
    %951 = vmatpush1.msra.mxu0 0.0
    %952 = vmatprep.subr.mxu0 0.0
    %953 = vmatpush1.msra.mxu0 0.0
    %954 = vmatprep.mubr.f32.mxu0 0.0
    %v955 = vand.u32 %v297, 4294901760
    %956 = vmatmul.mubr.f32.gmra.mrb[0].mxu0 %v955
    %v957 = vpop.f32.mrb[0].mxu0
    %v958 = vadd.f32 %v866, %v957
    %v959 = vpop.f32.mrb[0].mxu0
    %v960 = vadd.f32 %v868, %v959
    %961 = vdwg.mxu0
    %v962 = vand.u32 %v289, 4294901760
    %v963 = vsub.f32 %v289, %v962
    %964 = vmatprep.subr.mxu0 %v963
    %v965 = vand.u32 %v288, 4294901760
    %v966 = vsub.f32 %v288, %v965
    %967 = vmatpush1.msra.mxu0 %v966
    %v968 = vand.u32 %v294, 4294901760
    %v969 = vsub.f32 %v294, %v968
    %970 = vmatprep.subr.mxu0 %v969
    %v971 = vand.u32 %v293, 4294901760
    %v972 = vsub.f32 %v293, %v971
    %973 = vmatpush1.msra.mxu0 %v972
    %974 = vmatprep.subr.mxu0 0.0
    %975 = vmatpush1.msra.mxu0 0.0
    %976 = vmatprep.subr.mxu0 0.0
    %977 = vmatpush1.msra.mxu0 0.0
    %978 = vmatprep.subr.mxu0 0.0
    %979 = vmatpush1.msra.mxu0 0.0
    %980 = vmatprep.subr.mxu0 0.0
    %981 = vmatpush1.msra.mxu0 0.0
    %982 = vmatprep.subr.mxu0 0.0
    %983 = vmatpush1.msra.mxu0 0.0
    %984 = vmatprep.subr.mxu0 0.0
    %985 = vmatpush1.msra.mxu0 0.0
    %986 = vmatprep.subr.mxu0 0.0
    %987 = vmatpush1.msra.mxu0 0.0
    %988 = vmatprep.subr.mxu0 0.0
    %989 = vmatpush1.msra.mxu0 0.0
    %990 = vmatprep.subr.mxu0 0.0
    %991 = vmatpush1.msra.mxu0 0.0
    %992 = vmatprep.subr.mxu0 0.0
    %993 = vmatpush1.msra.mxu0 0.0
    %994 = vmatprep.subr.mxu0 0.0
    %995 = vmatpush1.msra.mxu0 0.0
    %996 = vmatprep.subr.mxu0 0.0
    %997 = vmatpush1.msra.mxu0 0.0
    %998 = vmatprep.subr.mxu0 0.0
    %999 = vmatpush1.msra.mxu0 0.0
    %1000 = vmatprep.subr.mxu0 0.0
    %1001 = vmatpush1.msra.mxu0 0.0
    %1002 = vmatprep.subr.mxu0 0.0
    %1003 = vmatpush1.msra.mxu0 0.0
    %1004 = vmatprep.subr.mxu0 0.0
    %1005 = vmatpush1.msra.mxu0 0.0
    %1006 = vmatprep.subr.mxu0 0.0
    %1007 = vmatpush1.msra.mxu0 0.0
    %1008 = vmatprep.subr.mxu0 0.0
    %1009 = vmatpush1.msra.mxu0 0.0
    %1010 = vmatprep.subr.mxu0 0.0
    %1011 = vmatpush1.msra.mxu0 0.0
    %1012 = vmatprep.subr.mxu0 0.0
    %1013 = vmatpush1.msra.mxu0 0.0
    %1014 = vmatprep.subr.mxu0 0.0
    %1015 = vmatpush1.msra.mxu0 0.0
    %1016 = vmatprep.subr.mxu0 0.0
    %1017 = vmatpush1.msra.mxu0 0.0
    %1018 = vmatprep.subr.mxu0 0.0
    %1019 = vmatpush1.msra.mxu0 0.0
    %1020 = vmatprep.subr.mxu0 0.0
    %1021 = vmatpush1.msra.mxu0 0.0
    %1022 = vmatprep.subr.mxu0 0.0
    %1023 = vmatpush1.msra.mxu0 0.0
    %1024 = vmatprep.subr.mxu0 0.0
    %1025 = vmatpush1.msra.mxu0 0.0
    %1026 = vmatprep.subr.mxu0 0.0
    %1027 = vmatpush1.msra.mxu0 0.0
    %1028 = vmatprep.subr.mxu0 0.0
    %1029 = vmatpush1.msra.mxu0 0.0
    %1030 = vmatprep.subr.mxu0 0.0
    %1031 = vmatpush1.msra.mxu0 0.0
    %1032 = vmatprep.subr.mxu0 0.0
    %1033 = vmatpush1.msra.mxu0 0.0
    %1034 = vmatprep.mubr.f32.mxu0 0.0
    %v1035 = vand.u32 %v297, 4294901760
    %v1036 = vsub.f32 %v297, %v1035
    %1037 = vmatmul.mubr.f32.gmra.mrb[0].mxu0 %v1036
    %v1038 = vpop.f32.mrb[0].mxu0
    %v1039 = vadd.f32 %v958, %v1038
    %v1040 = vpop.f32.mrb[0].mxu0
    %v1041 = vadd.f32 %v960, %v1040
    %1042 = vdwg.mxu0
    %v1043 = vand.u32 %v289, 4294901760
    %1044 = vmatprep.subr.mxu0 %v1043
    %v1045 = vand.u32 %v288, 4294901760
    %1046 = vmatpush1.msra.mxu0 %v1045
    %v1047 = vand.u32 %v294, 4294901760
    %1048 = vmatprep.subr.mxu0 %v1047
    %v1049 = vand.u32 %v293, 4294901760
    %1050 = vmatpush1.msra.mxu0 %v1049
    %1051 = vmatprep.subr.mxu0 0.0
    %1052 = vmatpush1.msra.mxu0 0.0
    %1053 = vmatprep.subr.mxu0 0.0
    %1054 = vmatpush1.msra.mxu0 0.0
    %1055 = vmatprep.subr.mxu0 0.0
    %1056 = vmatpush1.msra.mxu0 0.0
    %1057 = vmatprep.subr.mxu0 0.0
    %1058 = vmatpush1.msra.mxu0 0.0
    %1059 = vmatprep.subr.mxu0 0.0
    %1060 = vmatpush1.msra.mxu0 0.0
    %1061 = vmatprep.subr.mxu0 0.0
    %1062 = vmatpush1.msra.mxu0 0.0
    %1063 = vmatprep.subr.mxu0 0.0
    %1064 = vmatpush1.msra.mxu0 0.0
    %1065 = vmatprep.subr.mxu0 0.0
    %1066 = vmatpush1.msra.mxu0 0.0
    %1067 = vmatprep.subr.mxu0 0.0
    %1068 = vmatpush1.msra.mxu0 0.0
    %1069 = vmatprep.subr.mxu0 0.0
    %1070 = vmatpush1.msra.mxu0 0.0
    %1071 = vmatprep.subr.mxu0 0.0
    %1072 = vmatpush1.msra.mxu0 0.0
    %1073 = vmatprep.subr.mxu0 0.0
    %1074 = vmatpush1.msra.mxu0 0.0
    %1075 = vmatprep.subr.mxu0 0.0
    %1076 = vmatpush1.msra.mxu0 0.0
    %1077 = vmatprep.subr.mxu0 0.0
    %1078 = vmatpush1.msra.mxu0 0.0
    %1079 = vmatprep.subr.mxu0 0.0
    %1080 = vmatpush1.msra.mxu0 0.0
    %1081 = vmatprep.subr.mxu0 0.0
    %1082 = vmatpush1.msra.mxu0 0.0
    %1083 = vmatprep.subr.mxu0 0.0
    %1084 = vmatpush1.msra.mxu0 0.0
    %1085 = vmatprep.subr.mxu0 0.0
    %1086 = vmatpush1.msra.mxu0 0.0
    %1087 = vmatprep.subr.mxu0 0.0
    %1088 = vmatpush1.msra.mxu0 0.0
    %1089 = vmatprep.subr.mxu0 0.0
    %1090 = vmatpush1.msra.mxu0 0.0
    %1091 = vmatprep.subr.mxu0 0.0
    %1092 = vmatpush1.msra.mxu0 0.0
    %1093 = vmatprep.subr.mxu0 0.0
    %1094 = vmatpush1.msra.mxu0 0.0
    %1095 = vmatprep.subr.mxu0 0.0
    %1096 = vmatpush1.msra.mxu0 0.0
    %1097 = vmatprep.subr.mxu0 0.0
    %1098 = vmatpush1.msra.mxu0 0.0
    %1099 = vmatprep.subr.mxu0 0.0
    %1100 = vmatpush1.msra.mxu0 0.0
    %1101 = vmatprep.subr.mxu0 0.0
    %1102 = vmatpush1.msra.mxu0 0.0
    %1103 = vmatprep.subr.mxu0 0.0
    %1104 = vmatpush1.msra.mxu0 0.0
    %1105 = vmatprep.subr.mxu0 0.0
    %1106 = vmatpush1.msra.mxu0 0.0
    %1107 = vmatprep.subr.mxu0 0.0
    %1108 = vmatpush1.msra.mxu0 0.0
    %1109 = vmatprep.subr.mxu0 0.0
    %1110 = vmatpush1.msra.mxu0 0.0
    %1111 = vmatprep.mubr.f32.mxu0 0.0
    %v1112 = vand.u32 %v297, 4294901760
    %v1113 = vsub.f32 %v297, %v1112
    %v1114 = vand.u32 %v1113, 4294901760
    %1115 = vmatmul.mubr.f32.gmra.mrb[0].mxu0 %v1114
    %v1116 = vpop.f32.mrb[0].mxu0
    %v1117 = vadd.f32 %v1039, %v1116
    %v1118 = vpop.f32.mrb[0].mxu0
    %v1119 = vadd.f32 %v1041, %v1118
    %1120 = vdwg.mxu0
    %v1121 = vand.u32 %v289, 4294901760
    %v1122 = vsub.f32 %v289, %v1121
    %v1123 = vand.u32 %v1122, 4294901760
    %1124 = vmatprep.subr.mxu0 %v1123
    %v1125 = vand.u32 %v288, 4294901760
    %v1126 = vsub.f32 %v288, %v1125
    %v1127 = vand.u32 %v1126, 4294901760
    %1128 = vmatpush1.msra.mxu0 %v1127
    %v1129 = vand.u32 %v294, 4294901760
    %v1130 = vsub.f32 %v294, %v1129
    %v1131 = vand.u32 %v1130, 4294901760
    %1132 = vmatprep.subr.mxu0 %v1131
    %v1133 = vand.u32 %v293, 4294901760
    %v1134 = vsub.f32 %v293, %v1133
    %v1135 = vand.u32 %v1134, 4294901760
    %1136 = vmatpush1.msra.mxu0 %v1135
    %1137 = vmatprep.subr.mxu0 0.0
    %1138 = vmatpush1.msra.mxu0 0.0
    %1139 = vmatprep.subr.mxu0 0.0
    %1140 = vmatpush1.msra.mxu0 0.0
    %1141 = vmatprep.subr.mxu0 0.0
    %1142 = vmatpush1.msra.mxu0 0.0
    %1143 = vmatprep.subr.mxu0 0.0
    %1144 = vmatpush1.msra.mxu0 0.0
    %1145 = vmatprep.subr.mxu0 0.0
    %1146 = vmatpush1.msra.mxu0 0.0
    %1147 = vmatprep.subr.mxu0 0.0
    %1148 = vmatpush1.msra.mxu0 0.0
    %1149 = vmatprep.subr.mxu0 0.0
    %1150 = vmatpush1.msra.mxu0 0.0
    %1151 = vmatprep.subr.mxu0 0.0
    %1152 = vmatpush1.msra.mxu0 0.0
    %1153 = vmatprep.subr.mxu0 0.0
    %1154 = vmatpush1.msra.mxu0 0.0
    %1155 = vmatprep.subr.mxu0 0.0
    %1156 = vmatpush1.msra.mxu0 0.0
    %1157 = vmatprep.subr.mxu0 0.0
    %1158 = vmatpush1.msra.mxu0 0.0
    %1159 = vmatprep.subr.mxu0 0.0
    %1160 = vmatpush1.msra.mxu0 0.0
    %1161 = vmatprep.subr.mxu0 0.0
    %1162 = vmatpush1.msra.mxu0 0.0
    %1163 = vmatprep.subr.mxu0 0.0
    %1164 = vmatpush1.msra.mxu0 0.0
    %1165 = vmatprep.subr.mxu0 0.0
    %1166 = vmatpush1.msra.mxu0 0.0
    %1167 = vmatprep.subr.mxu0 0.0
    %1168 = vmatpush1.msra.mxu0 0.0
    %1169 = vmatprep.subr.mxu0 0.0
    %1170 = vmatpush1.msra.mxu0 0.0
    %1171 = vmatprep.subr.mxu0 0.0
    %1172 = vmatpush1.msra.mxu0 0.0
    %1173 = vmatprep.subr.mxu0 0.0
    %1174 = vmatpush1.msra.mxu0 0.0
    %1175 = vmatprep.subr.mxu0 0.0
    %1176 = vmatpush1.msra.mxu0 0.0
    %1177 = vmatprep.subr.mxu0 0.0
    %1178 = vmatpush1.msra.mxu0 0.0
    %1179 = vmatprep.subr.mxu0 0.0
    %1180 = vmatpush1.msra.mxu0 0.0
    %1181 = vmatprep.subr.mxu0 0.0
    %1182 = vmatpush1.msra.mxu0 0.0
    %1183 = vmatprep.subr.mxu0 0.0
    %1184 = vmatpush1.msra.mxu0 0.0
    %1185 = vmatprep.subr.mxu0 0.0
    %1186 = vmatpush1.msra.mxu0 0.0
    %1187 = vmatprep.subr.mxu0 0.0
    %1188 = vmatpush1.msra.mxu0 0.0
    %1189 = vmatprep.subr.mxu0 0.0
    %1190 = vmatpush1.msra.mxu0 0.0
    %1191 = vmatprep.subr.mxu0 0.0
    %1192 = vmatpush1.msra.mxu0 0.0
    %1193 = vmatprep.subr.mxu0 0.0
    %1194 = vmatpush1.msra.mxu0 0.0
    %1195 = vmatprep.subr.mxu0 0.0
    %1196 = vmatpush1.msra.mxu0 0.0
    %1197 = vmatprep.mubr.f32.mxu0 0.0
    %v1198 = vand.u32 %v297, 4294901760
    %1199 = vmatmul.mubr.f32.gmra.mrb[0].mxu0 %v1198
    %v1200 = vpop.f32.mrb[0].mxu0
    %v1201 = vadd.f32 %v1117, %v1200
    %v1202 = vpop.f32.mrb[0].mxu0
    %v1203 = vadd.f32 %v1119, %v1202
    %1204 = vdwg.mxu0
    %v1205 = vand.u32 %v289, 4294901760
    %1206 = vmatprep.subr.mxu0 %v1205
    %v1207 = vand.u32 %v288, 4294901760
    %1208 = vmatpush1.msra.mxu0 %v1207
    %v1209 = vand.u32 %v294, 4294901760
    %1210 = vmatprep.subr.mxu0 %v1209
    %v1211 = vand.u32 %v293, 4294901760
    %1212 = vmatpush1.msra.mxu0 %v1211
    %1213 = vmatprep.subr.mxu0 0.0
    %1214 = vmatpush1.msra.mxu0 0.0
    %1215 = vmatprep.subr.mxu0 0.0
    %1216 = vmatpush1.msra.mxu0 0.0
    %1217 = vmatprep.subr.mxu0 0.0
    %1218 = vmatpush1.msra.mxu0 0.0
    %1219 = vmatprep.subr.mxu0 0.0
    %1220 = vmatpush1.msra.mxu0 0.0
    %1221 = vmatprep.subr.mxu0 0.0
    %1222 = vmatpush1.msra.mxu0 0.0
    %1223 = vmatprep.subr.mxu0 0.0
    %1224 = vmatpush1.msra.mxu0 0.0
    %1225 = vmatprep.subr.mxu0 0.0
    %1226 = vmatpush1.msra.mxu0 0.0
    %1227 = vmatprep.subr.mxu0 0.0
    %1228 = vmatpush1.msra.mxu0 0.0
    %1229 = vmatprep.subr.mxu0 0.0
    %1230 = vmatpush1.msra.mxu0 0.0
    %1231 = vmatprep.subr.mxu0 0.0
    %1232 = vmatpush1.msra.mxu0 0.0
    %1233 = vmatprep.subr.mxu0 0.0
    %1234 = vmatpush1.msra.mxu0 0.0
    %1235 = vmatprep.subr.mxu0 0.0
    %1236 = vmatpush1.msra.mxu0 0.0
    %1237 = vmatprep.subr.mxu0 0.0
    %1238 = vmatpush1.msra.mxu0 0.0
    %1239 = vmatprep.subr.mxu0 0.0
    %1240 = vmatpush1.msra.mxu0 0.0
    %1241 = vmatprep.subr.mxu0 0.0
    %1242 = vmatpush1.msra.mxu0 0.0
    %1243 = vmatprep.subr.mxu0 0.0
    %1244 = vmatpush1.msra.mxu0 0.0
    %1245 = vmatprep.subr.mxu0 0.0
    %1246 = vmatpush1.msra.mxu0 0.0
    %1247 = vmatprep.subr.mxu0 0.0
    %1248 = vmatpush1.msra.mxu0 0.0
    %1249 = vmatprep.subr.mxu0 0.0
    %1250 = vmatpush1.msra.mxu0 0.0
    %1251 = vmatprep.subr.mxu0 0.0
    %1252 = vmatpush1.msra.mxu0 0.0
    %1253 = vmatprep.subr.mxu0 0.0
    %1254 = vmatpush1.msra.mxu0 0.0
    %1255 = vmatprep.subr.mxu0 0.0
    %1256 = vmatpush1.msra.mxu0 0.0
    %1257 = vmatprep.subr.mxu0 0.0
    %1258 = vmatpush1.msra.mxu0 0.0
    %1259 = vmatprep.subr.mxu0 0.0
    %1260 = vmatpush1.msra.mxu0 0.0
    %1261 = vmatprep.subr.mxu0 0.0
    %1262 = vmatpush1.msra.mxu0 0.0
    %1263 = vmatprep.subr.mxu0 0.0
    %1264 = vmatpush1.msra.mxu0 0.0
    %1265 = vmatprep.subr.mxu0 0.0
    %1266 = vmatpush1.msra.mxu0 0.0
    %1267 = vmatprep.subr.mxu0 0.0
    %1268 = vmatpush1.msra.mxu0 0.0
    %1269 = vmatprep.subr.mxu0 0.0
    %1270 = vmatpush1.msra.mxu0 0.0
    %1271 = vmatprep.subr.mxu0 0.0
    %1272 = vmatpush1.msra.mxu0 0.0
    %1273 = vmatprep.mubr.f32.mxu0 0.0
    %v1274 = vand.u32 %v297, 4294901760
    %1275 = vmatmul.mubr.f32.gmra.mrb[0].mxu0 %v1274
    %v1276 = vpop.f32.mrb[0].mxu0
    %v1277 = vadd.f32 %v1201, %v1276
    %v1278 = vpop.f32.mrb[0].mxu0
    %v1279 = vadd.f32 %v1203, %v1278
    %1280 = vdwg.mxu0
    %1281 = vmatprep.subr.mxu0 0.0
    %v1282 = vand.u32 %v290, 4294901760
    %1283 = vmatpush1.msra.mxu0 %v1282
    %1284 = vmatprep.subr.mxu0 0.0
    %v1285 = vand.u32 %v295, 4294901760
    %1286 = vmatpush1.msra.mxu0 %v1285
    %1287 = vmatprep.subr.mxu0 0.0
    %1288 = vmatpush1.msra.mxu0 0.0
    %1289 = vmatprep.subr.mxu0 0.0
    %1290 = vmatpush1.msra.mxu0 0.0
    %1291 = vmatprep.subr.mxu0 0.0
    %1292 = vmatpush1.msra.mxu0 0.0
    %1293 = vmatprep.subr.mxu0 0.0
    %1294 = vmatpush1.msra.mxu0 0.0
    %1295 = vmatprep.subr.mxu0 0.0
    %1296 = vmatpush1.msra.mxu0 0.0
    %1297 = vmatprep.subr.mxu0 0.0
    %1298 = vmatpush1.msra.mxu0 0.0
    %1299 = vmatprep.subr.mxu0 0.0
    %1300 = vmatpush1.msra.mxu0 0.0
    %1301 = vmatprep.subr.mxu0 0.0
    %1302 = vmatpush1.msra.mxu0 0.0
    %1303 = vmatprep.subr.mxu0 0.0
    %1304 = vmatpush1.msra.mxu0 0.0
    %1305 = vmatprep.subr.mxu0 0.0
    %1306 = vmatpush1.msra.mxu0 0.0
    %1307 = vmatprep.subr.mxu0 0.0
    %1308 = vmatpush1.msra.mxu0 0.0
    %1309 = vmatprep.subr.mxu0 0.0
    %1310 = vmatpush1.msra.mxu0 0.0
    %1311 = vmatprep.subr.mxu0 0.0
    %1312 = vmatpush1.msra.mxu0 0.0
    %1313 = vmatprep.subr.mxu0 0.0
    %1314 = vmatpush1.msra.mxu0 0.0
    %1315 = vmatprep.subr.mxu0 0.0
    %1316 = vmatpush1.msra.mxu0 0.0
    %1317 = vmatprep.subr.mxu0 0.0
    %1318 = vmatpush1.msra.mxu0 0.0
    %1319 = vmatprep.subr.mxu0 0.0
    %1320 = vmatpush1.msra.mxu0 0.0
    %1321 = vmatprep.subr.mxu0 0.0
    %1322 = vmatpush1.msra.mxu0 0.0
    %1323 = vmatprep.subr.mxu0 0.0
    %1324 = vmatpush1.msra.mxu0 0.0
    %1325 = vmatprep.subr.mxu0 0.0
    %1326 = vmatpush1.msra.mxu0 0.0
    %1327 = vmatprep.subr.mxu0 0.0
    %1328 = vmatpush1.msra.mxu0 0.0
    %1329 = vmatprep.subr.mxu0 0.0
    %1330 = vmatpush1.msra.mxu0 0.0
    %1331 = vmatprep.subr.mxu0 0.0
    %1332 = vmatpush1.msra.mxu0 0.0
    %1333 = vmatprep.subr.mxu0 0.0
    %1334 = vmatpush1.msra.mxu0 0.0
    %1335 = vmatprep.subr.mxu0 0.0
    %1336 = vmatpush1.msra.mxu0 0.0
    %1337 = vmatprep.subr.mxu0 0.0
    %1338 = vmatpush1.msra.mxu0 0.0
    %1339 = vmatprep.subr.mxu0 0.0
    %1340 = vmatpush1.msra.mxu0 0.0
    %1341 = vmatprep.subr.mxu0 0.0
    %1342 = vmatpush1.msra.mxu0 0.0
    %1343 = vmatprep.subr.mxu0 0.0
    %1344 = vmatpush1.msra.mxu0 0.0
    %1345 = vmatprep.subr.mxu0 0.0
    %1346 = vmatpush1.msra.mxu0 0.0
    %1347 = vmatprep.mubr.f32.mxu0 0.0
    %v1348 = vand.u32 %v297, 4294901760
    %v1349 = vsub.f32 %v297, %v1348
    %v1350 = vand.u32 %v1349, 4294901760
    %v1351 = vsub.f32 %v1349, %v1350
    %v1352 = vand.u32 %v1351, 4294901760
    %1353 = vmatmul.mubr.f32.gmra.mrb[0].mxu0 %v1352
    %v1354 = vpop.f32.mrb[0].mxu0
    %v1355 = vadd.f32 0.0, %v1354
    %v1356 = vpop.f32.mrb[0].mxu0
    %1357 = vdwg.mxu0
    %1358 = vmatprep.subr.mxu0 0.0
    %v1359 = vand.u32 %v290, 4294901760
    %v1360 = vsub.f32 %v290, %v1359
    %v1361 = vand.u32 %v1360, 4294901760
    %v1362 = vsub.f32 %v1360, %v1361
    %v1363 = vand.u32 %v1362, 4294901760
    %1364 = vmatpush1.msra.mxu0 %v1363
    %1365 = vmatprep.subr.mxu0 0.0
    %v1366 = vand.u32 %v295, 4294901760
    %v1367 = vsub.f32 %v295, %v1366
    %v1368 = vand.u32 %v1367, 4294901760
    %v1369 = vsub.f32 %v1367, %v1368
    %v1370 = vand.u32 %v1369, 4294901760
    %1371 = vmatpush1.msra.mxu0 %v1370
    %1372 = vmatprep.subr.mxu0 0.0
    %1373 = vmatpush1.msra.mxu0 0.0
    %1374 = vmatprep.subr.mxu0 0.0
    %1375 = vmatpush1.msra.mxu0 0.0
    %1376 = vmatprep.subr.mxu0 0.0
    %1377 = vmatpush1.msra.mxu0 0.0
    %1378 = vmatprep.subr.mxu0 0.0
    %1379 = vmatpush1.msra.mxu0 0.0
    %1380 = vmatprep.subr.mxu0 0.0
    %1381 = vmatpush1.msra.mxu0 0.0
    %1382 = vmatprep.subr.mxu0 0.0
    %1383 = vmatpush1.msra.mxu0 0.0
    %1384 = vmatprep.subr.mxu0 0.0
    %1385 = vmatpush1.msra.mxu0 0.0
    %1386 = vmatprep.subr.mxu0 0.0
    %1387 = vmatpush1.msra.mxu0 0.0
    %1388 = vmatprep.subr.mxu0 0.0
    %1389 = vmatpush1.msra.mxu0 0.0
    %1390 = vmatprep.subr.mxu0 0.0
    %1391 = vmatpush1.msra.mxu0 0.0
    %1392 = vmatprep.subr.mxu0 0.0
    %1393 = vmatpush1.msra.mxu0 0.0
    %1394 = vmatprep.subr.mxu0 0.0
    %1395 = vmatpush1.msra.mxu0 0.0
    %1396 = vmatprep.subr.mxu0 0.0
    %1397 = vmatpush1.msra.mxu0 0.0
    %1398 = vmatprep.subr.mxu0 0.0
    %1399 = vmatpush1.msra.mxu0 0.0
    %1400 = vmatprep.subr.mxu0 0.0
    %1401 = vmatpush1.msra.mxu0 0.0
    %1402 = vmatprep.subr.mxu0 0.0
    %1403 = vmatpush1.msra.mxu0 0.0
    %1404 = vmatprep.subr.mxu0 0.0
    %1405 = vmatpush1.msra.mxu0 0.0
    %1406 = vmatprep.subr.mxu0 0.0
    %1407 = vmatpush1.msra.mxu0 0.0
    %1408 = vmatprep.subr.mxu0 0.0
    %1409 = vmatpush1.msra.mxu0 0.0
    %1410 = vmatprep.subr.mxu0 0.0
    %1411 = vmatpush1.msra.mxu0 0.0
    %1412 = vmatprep.subr.mxu0 0.0
    %1413 = vmatpush1.msra.mxu0 0.0
    %1414 = vmatprep.subr.mxu0 0.0
    %1415 = vmatpush1.msra.mxu0 0.0
    %1416 = vmatprep.subr.mxu0 0.0
    %1417 = vmatpush1.msra.mxu0 0.0
    %1418 = vmatprep.subr.mxu0 0.0
    %1419 = vmatpush1.msra.mxu0 0.0
    %1420 = vmatprep.subr.mxu0 0.0
    %1421 = vmatpush1.msra.mxu0 0.0
    %1422 = vmatprep.subr.mxu0 0.0
    %1423 = vmatpush1.msra.mxu0 0.0
    %1424 = vmatprep.subr.mxu0 0.0
    %1425 = vmatpush1.msra.mxu0 0.0
    %1426 = vmatprep.subr.mxu0 0.0
    %1427 = vmatpush1.msra.mxu0 0.0
    %1428 = vmatprep.subr.mxu0 0.0
    %1429 = vmatpush1.msra.mxu0 0.0
    %1430 = vmatprep.subr.mxu0 0.0
    %1431 = vmatpush1.msra.mxu0 0.0
    %1432 = vmatprep.mubr.f32.mxu0 0.0
    %v1433 = vand.u32 %v297, 4294901760
    %1434 = vmatmul.mubr.f32.gmra.mrb[0].mxu0 %v1433
    %v1435 = vpop.f32.mrb[0].mxu0
    %v1436 = vadd.f32 %v1355, %v1435
    %v1437 = vpop.f32.mrb[0].mxu0
    %1438 = vdwg.mxu0
    %1439 = vmatprep.subr.mxu0 0.0
    %v1440 = vand.u32 %v290, 4294901760
    %v1441 = vsub.f32 %v290, %v1440
    %1442 = vmatpush1.msra.mxu0 %v1441
    %1443 = vmatprep.subr.mxu0 0.0
    %v1444 = vand.u32 %v295, 4294901760
    %v1445 = vsub.f32 %v295, %v1444
    %1446 = vmatpush1.msra.mxu0 %v1445
    %1447 = vmatprep.subr.mxu0 0.0
    %1448 = vmatpush1.msra.mxu0 0.0
    %1449 = vmatprep.subr.mxu0 0.0
    %1450 = vmatpush1.msra.mxu0 0.0
    %1451 = vmatprep.subr.mxu0 0.0
    %1452 = vmatpush1.msra.mxu0 0.0
    %1453 = vmatprep.subr.mxu0 0.0
    %1454 = vmatpush1.msra.mxu0 0.0
    %1455 = vmatprep.subr.mxu0 0.0
    %1456 = vmatpush1.msra.mxu0 0.0
    %1457 = vmatprep.subr.mxu0 0.0
    %1458 = vmatpush1.msra.mxu0 0.0
    %1459 = vmatprep.subr.mxu0 0.0
    %1460 = vmatpush1.msra.mxu0 0.0
    %1461 = vmatprep.subr.mxu0 0.0
    %1462 = vmatpush1.msra.mxu0 0.0
    %1463 = vmatprep.subr.mxu0 0.0
    %1464 = vmatpush1.msra.mxu0 0.0
    %1465 = vmatprep.subr.mxu0 0.0
    %1466 = vmatpush1.msra.mxu0 0.0
    %1467 = vmatprep.subr.mxu0 0.0
    %1468 = vmatpush1.msra.mxu0 0.0
    %1469 = vmatprep.subr.mxu0 0.0
    %1470 = vmatpush1.msra.mxu0 0.0
    %1471 = vmatprep.subr.mxu0 0.0
    %1472 = vmatpush1.msra.mxu0 0.0
    %1473 = vmatprep.subr.mxu0 0.0
    %1474 = vmatpush1.msra.mxu0 0.0
    %1475 = vmatprep.subr.mxu0 0.0
    %1476 = vmatpush1.msra.mxu0 0.0
    %1477 = vmatprep.subr.mxu0 0.0
    %1478 = vmatpush1.msra.mxu0 0.0
    %1479 = vmatprep.subr.mxu0 0.0
    %1480 = vmatpush1.msra.mxu0 0.0
    %1481 = vmatprep.subr.mxu0 0.0
    %1482 = vmatpush1.msra.mxu0 0.0
    %1483 = vmatprep.subr.mxu0 0.0
    %1484 = vmatpush1.msra.mxu0 0.0
    %1485 = vmatprep.subr.mxu0 0.0
    %1486 = vmatpush1.msra.mxu0 0.0
    %1487 = vmatprep.subr.mxu0 0.0
    %1488 = vmatpush1.msra.mxu0 0.0
    %1489 = vmatprep.subr.mxu0 0.0
    %1490 = vmatpush1.msra.mxu0 0.0
    %1491 = vmatprep.subr.mxu0 0.0
    %1492 = vmatpush1.msra.mxu0 0.0
    %1493 = vmatprep.subr.mxu0 0.0
    %1494 = vmatpush1.msra.mxu0 0.0
    %1495 = vmatprep.subr.mxu0 0.0
    %1496 = vmatpush1.msra.mxu0 0.0
    %1497 = vmatprep.subr.mxu0 0.0
    %1498 = vmatpush1.msra.mxu0 0.0
    %1499 = vmatprep.subr.mxu0 0.0
    %1500 = vmatpush1.msra.mxu0 0.0
    %1501 = vmatprep.subr.mxu0 0.0
    %1502 = vmatpush1.msra.mxu0 0.0
    %1503 = vmatprep.subr.mxu0 0.0
    %1504 = vmatpush1.msra.mxu0 0.0
    %1505 = vmatprep.subr.mxu0 0.0
    %1506 = vmatpush1.msra.mxu0 0.0
    %1507 = vmatprep.mubr.f32.mxu0 0.0
    %v1508 = vand.u32 %v297, 4294901760
    %v1509 = vsub.f32 %v297, %v1508
    %1510 = vmatmul.mubr.f32.gmra.mrb[0].mxu0 %v1509
    %v1511 = vpop.f32.mrb[0].mxu0
    %v1512 = vadd.f32 %v1436, %v1511
    %v1513 = vpop.f32.mrb[0].mxu0
    %1514 = vdwg.mxu0
    %1515 = vmatprep.subr.mxu0 0.0
    %v1516 = vand.u32 %v290, 4294901760
    %1517 = vmatpush1.msra.mxu0 %v1516
    %1518 = vmatprep.subr.mxu0 0.0
    %v1519 = vand.u32 %v295, 4294901760
    %1520 = vmatpush1.msra.mxu0 %v1519
    %1521 = vmatprep.subr.mxu0 0.0
    %1522 = vmatpush1.msra.mxu0 0.0
    %1523 = vmatprep.subr.mxu0 0.0
    %1524 = vmatpush1.msra.mxu0 0.0
    %1525 = vmatprep.subr.mxu0 0.0
    %1526 = vmatpush1.msra.mxu0 0.0
    %1527 = vmatprep.subr.mxu0 0.0
    %1528 = vmatpush1.msra.mxu0 0.0
    %1529 = vmatprep.subr.mxu0 0.0
    %1530 = vmatpush1.msra.mxu0 0.0
    %1531 = vmatprep.subr.mxu0 0.0
    %1532 = vmatpush1.msra.mxu0 0.0
    %1533 = vmatprep.subr.mxu0 0.0
    %1534 = vmatpush1.msra.mxu0 0.0
    %1535 = vmatprep.subr.mxu0 0.0
    %1536 = vmatpush1.msra.mxu0 0.0
    %1537 = vmatprep.subr.mxu0 0.0
    %1538 = vmatpush1.msra.mxu0 0.0
    %1539 = vmatprep.subr.mxu0 0.0
    %1540 = vmatpush1.msra.mxu0 0.0
    %1541 = vmatprep.subr.mxu0 0.0
    %1542 = vmatpush1.msra.mxu0 0.0
    %1543 = vmatprep.subr.mxu0 0.0
    %1544 = vmatpush1.msra.mxu0 0.0
    %1545 = vmatprep.subr.mxu0 0.0
    %1546 = vmatpush1.msra.mxu0 0.0
    %1547 = vmatprep.subr.mxu0 0.0
    %1548 = vmatpush1.msra.mxu0 0.0
    %1549 = vmatprep.subr.mxu0 0.0
    %1550 = vmatpush1.msra.mxu0 0.0
    %1551 = vmatprep.subr.mxu0 0.0
    %1552 = vmatpush1.msra.mxu0 0.0
    %1553 = vmatprep.subr.mxu0 0.0
    %1554 = vmatpush1.msra.mxu0 0.0
    %1555 = vmatprep.subr.mxu0 0.0
    %1556 = vmatpush1.msra.mxu0 0.0
    %1557 = vmatprep.subr.mxu0 0.0
    %1558 = vmatpush1.msra.mxu0 0.0
    %1559 = vmatprep.subr.mxu0 0.0
    %1560 = vmatpush1.msra.mxu0 0.0
    %1561 = vmatprep.subr.mxu0 0.0
    %1562 = vmatpush1.msra.mxu0 0.0
    %1563 = vmatprep.subr.mxu0 0.0
    %1564 = vmatpush1.msra.mxu0 0.0
    %1565 = vmatprep.subr.mxu0 0.0
    %1566 = vmatpush1.msra.mxu0 0.0
    %1567 = vmatprep.subr.mxu0 0.0
    %1568 = vmatpush1.msra.mxu0 0.0
    %1569 = vmatprep.subr.mxu0 0.0
    %1570 = vmatpush1.msra.mxu0 0.0
    %1571 = vmatprep.subr.mxu0 0.0
    %1572 = vmatpush1.msra.mxu0 0.0
    %1573 = vmatprep.subr.mxu0 0.0
    %1574 = vmatpush1.msra.mxu0 0.0
    %1575 = vmatprep.subr.mxu0 0.0
    %1576 = vmatpush1.msra.mxu0 0.0
    %1577 = vmatprep.subr.mxu0 0.0
    %1578 = vmatpush1.msra.mxu0 0.0
    %1579 = vmatprep.subr.mxu0 0.0
    %1580 = vmatpush1.msra.mxu0 0.0
    %1581 = vmatprep.mubr.f32.mxu0 0.0
    %v1582 = vand.u32 %v297, 4294901760
    %v1583 = vsub.f32 %v297, %v1582
    %v1584 = vand.u32 %v1583, 4294901760
    %1585 = vmatmul.mubr.f32.gmra.mrb[0].mxu0 %v1584
    %v1586 = vpop.f32.mrb[0].mxu0
    %v1587 = vadd.f32 %v1512, %v1586
    %v1588 = vpop.f32.mrb[0].mxu0
    %1589 = vdwg.mxu0
    %1590 = vmatprep.subr.mxu0 0.0
    %v1591 = vand.u32 %v290, 4294901760
    %v1592 = vsub.f32 %v290, %v1591
    %v1593 = vand.u32 %v1592, 4294901760
    %1594 = vmatpush1.msra.mxu0 %v1593
    %1595 = vmatprep.subr.mxu0 0.0
    %v1596 = vand.u32 %v295, 4294901760
    %v1597 = vsub.f32 %v295, %v1596
    %v1598 = vand.u32 %v1597, 4294901760
    %1599 = vmatpush1.msra.mxu0 %v1598
    %1600 = vmatprep.subr.mxu0 0.0
    %1601 = vmatpush1.msra.mxu0 0.0
    %1602 = vmatprep.subr.mxu0 0.0
    %1603 = vmatpush1.msra.mxu0 0.0
    %1604 = vmatprep.subr.mxu0 0.0
    %1605 = vmatpush1.msra.mxu0 0.0
    %1606 = vmatprep.subr.mxu0 0.0
    %1607 = vmatpush1.msra.mxu0 0.0
    %1608 = vmatprep.subr.mxu0 0.0
    %1609 = vmatpush1.msra.mxu0 0.0
    %1610 = vmatprep.subr.mxu0 0.0
    %1611 = vmatpush1.msra.mxu0 0.0
    %1612 = vmatprep.subr.mxu0 0.0
    %1613 = vmatpush1.msra.mxu0 0.0
    %1614 = vmatprep.subr.mxu0 0.0
    %1615 = vmatpush1.msra.mxu0 0.0
    %1616 = vmatprep.subr.mxu0 0.0
    %1617 = vmatpush1.msra.mxu0 0.0
    %1618 = vmatprep.subr.mxu0 0.0
    %1619 = vmatpush1.msra.mxu0 0.0
    %1620 = vmatprep.subr.mxu0 0.0
    %1621 = vmatpush1.msra.mxu0 0.0
    %1622 = vmatprep.subr.mxu0 0.0
    %1623 = vmatpush1.msra.mxu0 0.0
    %1624 = vmatprep.subr.mxu0 0.0
    %1625 = vmatpush1.msra.mxu0 0.0
    %1626 = vmatprep.subr.mxu0 0.0
    %1627 = vmatpush1.msra.mxu0 0.0
    %1628 = vmatprep.subr.mxu0 0.0
    %1629 = vmatpush1.msra.mxu0 0.0
    %1630 = vmatprep.subr.mxu0 0.0
    %1631 = vmatpush1.msra.mxu0 0.0
    %1632 = vmatprep.subr.mxu0 0.0
    %1633 = vmatpush1.msra.mxu0 0.0
    %1634 = vmatprep.subr.mxu0 0.0
    %1635 = vmatpush1.msra.mxu0 0.0
    %1636 = vmatprep.subr.mxu0 0.0
    %1637 = vmatpush1.msra.mxu0 0.0
    %1638 = vmatprep.subr.mxu0 0.0
    %1639 = vmatpush1.msra.mxu0 0.0
    %1640 = vmatprep.subr.mxu0 0.0
    %1641 = vmatpush1.msra.mxu0 0.0
    %1642 = vmatprep.subr.mxu0 0.0
    %1643 = vmatpush1.msra.mxu0 0.0
    %1644 = vmatprep.subr.mxu0 0.0
    %1645 = vmatpush1.msra.mxu0 0.0
    %1646 = vmatprep.subr.mxu0 0.0
    %1647 = vmatpush1.msra.mxu0 0.0
    %1648 = vmatprep.subr.mxu0 0.0
    %1649 = vmatpush1.msra.mxu0 0.0
    %1650 = vmatprep.subr.mxu0 0.0
    %1651 = vmatpush1.msra.mxu0 0.0
    %1652 = vmatprep.subr.mxu0 0.0
    %1653 = vmatpush1.msra.mxu0 0.0
    %1654 = vmatprep.subr.mxu0 0.0
    %1655 = vmatpush1.msra.mxu0 0.0
    %1656 = vmatprep.subr.mxu0 0.0
    %1657 = vmatpush1.msra.mxu0 0.0
    %1658 = vmatprep.subr.mxu0 0.0
    %1659 = vmatpush1.msra.mxu0 0.0
    %1660 = vmatprep.mubr.f32.mxu0 0.0
    %v1661 = vand.u32 %v297, 4294901760
    %1662 = vmatmul.mubr.f32.gmra.mrb[0].mxu0 %v1661
    %v1663 = vpop.f32.mrb[0].mxu0
    %v1664 = vadd.f32 %v1587, %v1663
    %v1665 = vpop.f32.mrb[0].mxu0
    %1666 = vdwg.mxu0
    %1667 = vmatprep.subr.mxu0 0.0
    %v1668 = vand.u32 %v290, 4294901760
    %1669 = vmatpush1.msra.mxu0 %v1668
    %1670 = vmatprep.subr.mxu0 0.0
    %v1671 = vand.u32 %v295, 4294901760
    %1672 = vmatpush1.msra.mxu0 %v1671
    %1673 = vmatprep.subr.mxu0 0.0
    %1674 = vmatpush1.msra.mxu0 0.0
    %1675 = vmatprep.subr.mxu0 0.0
    %1676 = vmatpush1.msra.mxu0 0.0
    %1677 = vmatprep.subr.mxu0 0.0
    %1678 = vmatpush1.msra.mxu0 0.0
    %1679 = vmatprep.subr.mxu0 0.0
    %1680 = vmatpush1.msra.mxu0 0.0
    %1681 = vmatprep.subr.mxu0 0.0
    %1682 = vmatpush1.msra.mxu0 0.0
    %1683 = vmatprep.subr.mxu0 0.0
    %1684 = vmatpush1.msra.mxu0 0.0
    %1685 = vmatprep.subr.mxu0 0.0
    %1686 = vmatpush1.msra.mxu0 0.0
    %1687 = vmatprep.subr.mxu0 0.0
    %1688 = vmatpush1.msra.mxu0 0.0
    %1689 = vmatprep.subr.mxu0 0.0
    %1690 = vmatpush1.msra.mxu0 0.0
    %1691 = vmatprep.subr.mxu0 0.0
    %1692 = vmatpush1.msra.mxu0 0.0
    %1693 = vmatprep.subr.mxu0 0.0
    %1694 = vmatpush1.msra.mxu0 0.0
    %1695 = vmatprep.subr.mxu0 0.0
    %1696 = vmatpush1.msra.mxu0 0.0
    %1697 = vmatprep.subr.mxu0 0.0
    %1698 = vmatpush1.msra.mxu0 0.0
    %1699 = vmatprep.subr.mxu0 0.0
    %1700 = vmatpush1.msra.mxu0 0.0
    %1701 = vmatprep.subr.mxu0 0.0
    %1702 = vmatpush1.msra.mxu0 0.0
    %1703 = vmatprep.subr.mxu0 0.0
    %1704 = vmatpush1.msra.mxu0 0.0
    %1705 = vmatprep.subr.mxu0 0.0
    %1706 = vmatpush1.msra.mxu0 0.0
    %1707 = vmatprep.subr.mxu0 0.0
    %1708 = vmatpush1.msra.mxu0 0.0
    %1709 = vmatprep.subr.mxu0 0.0
    %1710 = vmatpush1.msra.mxu0 0.0
    %1711 = vmatprep.subr.mxu0 0.0
    %1712 = vmatpush1.msra.mxu0 0.0
    %1713 = vmatprep.subr.mxu0 0.0
    %1714 = vmatpush1.msra.mxu0 0.0
    %1715 = vmatprep.subr.mxu0 0.0
    %1716 = vmatpush1.msra.mxu0 0.0
    %1717 = vmatprep.subr.mxu0 0.0
    %1718 = vmatpush1.msra.mxu0 0.0
    %1719 = vmatprep.subr.mxu0 0.0
    %1720 = vmatpush1.msra.mxu0 0.0
    %1721 = vmatprep.subr.mxu0 0.0
    %1722 = vmatpush1.msra.mxu0 0.0
    %1723 = vmatprep.subr.mxu0 0.0
    %1724 = vmatpush1.msra.mxu0 0.0
    %1725 = vmatprep.subr.mxu0 0.0
    %1726 = vmatpush1.msra.mxu0 0.0
    %1727 = vmatprep.subr.mxu0 0.0
    %1728 = vmatpush1.msra.mxu0 0.0
    %1729 = vmatprep.subr.mxu0 0.0
    %1730 = vmatpush1.msra.mxu0 0.0
    %1731 = vmatprep.subr.mxu0 0.0
    %1732 = vmatpush1.msra.mxu0 0.0
    %1733 = vmatprep.mubr.f32.mxu0 0.0
    %v1734 = vand.u32 %v297, 4294901760
    %1735 = vmatmul.mubr.f32.gmra.mrb[0].mxu0 %v1734
    %v1736 = vpop.f32.mrb[0].mxu0
    %v1737 = vadd.f32 %v1664, %v1736
    %v1738 = vpop.f32.mrb[0].mxu0
    %1739 = vdwg.mxu0
    %v1740 = vld [vmem:[#allocation9] sm:$0xff]
    %v1741 = vld [vmem:[#allocation9 + $0x8] sm:$0xff]
    %v1742 = vld [vmem:[#allocation9 + $0x10] sm:$0xff]
    %v1743 = vld [vmem:[#allocation9 + $0x18] sm:$0xff]
    %v1744 = vld [vmem:[#allocation9 + $0x20] sm:$0xff]
    %v1745 = vld [vmem:[#allocation9 + $0x28] sm:$0xff]
    %v1746 = vld [vmem:[#allocation9 + $0x30] sm:$0xff]
    %v1747 = vld [vmem:[#allocation9 + $0x38] sm:$0xff]
    %v1748 = vld [vmem:[#allocation9 + $0x40] sm:$0xff]
    %v1749 = vld [vmem:[#allocation9 + $0x48] sm:$0xff]
    %v1750 = vld [vmem:[#allocation9 + $0x50] sm:$0xff]
    %v1751 = vld [vmem:[#allocation9 + $0x58] sm:$0xff]
    %v1752 = vld [vmem:[#allocation9 + $0x60] sm:$0xff]
    %v1753 = vld [vmem:[#allocation9 + $0x68] sm:$0xff]
    %v1754 = vld [vmem:[#allocation9 + $0x70] sm:$0xff]
    %v1755 = vld [vmem:[#allocation9 + $0x78] sm:$0xff]
    %1756 = vmatprep.subr.mxu0 0.0
    %v1757 = vand.u32 %v1740, 4294901760
    %1758 = vmatpush1.msra.mxu0 %v1757
    %1759 = vmatprep.subr.mxu0 0.0
    %v1760 = vand.u32 %v1741, 4294901760
    %1761 = vmatpush1.msra.mxu0 %v1760
    %1762 = vmatprep.subr.mxu0 0.0
    %v1763 = vand.u32 %v1742, 4294901760
    %1764 = vmatpush1.msra.mxu0 %v1763
    %1765 = vmatprep.subr.mxu0 0.0
    %v1766 = vand.u32 %v1743, 4294901760
    %1767 = vmatpush1.msra.mxu0 %v1766
    %1768 = vmatprep.subr.mxu0 0.0
    %v1769 = vand.u32 %v1744, 4294901760
    %1770 = vmatpush1.msra.mxu0 %v1769
    %1771 = vmatprep.subr.mxu0 0.0
    %v1772 = vand.u32 %v1745, 4294901760
    %1773 = vmatpush1.msra.mxu0 %v1772
    %1774 = vmatprep.subr.mxu0 0.0
    %v1775 = vand.u32 %v1746, 4294901760
    %1776 = vmatpush1.msra.mxu0 %v1775
    %1777 = vmatprep.subr.mxu0 0.0
    %v1778 = vand.u32 %v1747, 4294901760
    %1779 = vmatpush1.msra.mxu0 %v1778
    %1780 = vmatprep.subr.mxu0 0.0
    %v1781 = vand.u32 %v1748, 4294901760
    %1782 = vmatpush1.msra.mxu0 %v1781
    %1783 = vmatprep.subr.mxu0 0.0
    %v1784 = vand.u32 %v1749, 4294901760
    %1785 = vmatpush1.msra.mxu0 %v1784
    %1786 = vmatprep.subr.mxu0 0.0
    %v1787 = vand.u32 %v1750, 4294901760
    %1788 = vmatpush1.msra.mxu0 %v1787
    %1789 = vmatprep.subr.mxu0 0.0
    %v1790 = vand.u32 %v1751, 4294901760
    %1791 = vmatpush1.msra.mxu0 %v1790
    %1792 = vmatprep.subr.mxu0 0.0
    %v1793 = vand.u32 %v1752, 4294901760
    %1794 = vmatpush1.msra.mxu0 %v1793
    %1795 = vmatprep.subr.mxu0 0.0
    %v1796 = vand.u32 %v1753, 4294901760
    %1797 = vmatpush1.msra.mxu0 %v1796
    %1798 = vmatprep.subr.mxu0 0.0
    %v1799 = vand.u32 %v1754, 4294901760
    %1800 = vmatpush1.msra.mxu0 %v1799
    %1801 = vmatprep.subr.mxu0 0.0
    %v1802 = vand.u32 %v1755, 4294901760
    %1803 = vmatpush1.msra.mxu0 %v1802
    %1804 = vmatprep.subr.mxu0 0.0
    %1805 = vmatpush1.msra.mxu0 0.0
    %1806 = vmatprep.subr.mxu0 0.0
    %1807 = vmatpush1.msra.mxu0 0.0
    %1808 = vmatprep.subr.mxu0 0.0
    %1809 = vmatpush1.msra.mxu0 0.0
    %1810 = vmatprep.subr.mxu0 0.0
    %1811 = vmatpush1.msra.mxu0 0.0
    %1812 = vmatprep.subr.mxu0 0.0
    %1813 = vmatpush1.msra.mxu0 0.0
    %1814 = vmatprep.subr.mxu0 0.0
    %1815 = vmatpush1.msra.mxu0 0.0
    %1816 = vmatprep.subr.mxu0 0.0
    %1817 = vmatpush1.msra.mxu0 0.0
    %1818 = vmatprep.subr.mxu0 0.0
    %1819 = vmatpush1.msra.mxu0 0.0
    %1820 = vmatprep.subr.mxu0 0.0
    %1821 = vmatpush1.msra.mxu0 0.0
    %1822 = vmatprep.subr.mxu0 0.0
    %1823 = vmatpush1.msra.mxu0 0.0
    %1824 = vmatprep.subr.mxu0 0.0
    %1825 = vmatpush1.msra.mxu0 0.0
    %1826 = vmatprep.subr.mxu0 0.0
    %1827 = vmatpush1.msra.mxu0 0.0
    %1828 = vmatprep.subr.mxu0 0.0
    %1829 = vmatpush1.msra.mxu0 0.0
    %1830 = vmatprep.subr.mxu0 0.0
    %1831 = vmatpush1.msra.mxu0 0.0
    %1832 = vmatprep.subr.mxu0 0.0
    %1833 = vmatpush1.msra.mxu0 0.0
    %1834 = vmatprep.subr.mxu0 0.0
    %1835 = vmatpush1.msra.mxu0 0.0
    %1836 = vmatprep.mubr.f32.mxu0 0.0
    %v1837 = vand.u32 %v786, 4294901760
    %v1838 = vsub.f32 %v786, %v1837
    %v1839 = vand.u32 %v1838, 4294901760
    %v1840 = vsub.f32 %v1838, %v1839
    %v1841 = vand.u32 %v1840, 4294901760
    %1842 = vmatmul.mubr.f32.gmra.mrb[0].mxu0 %v1841
    %v1843 = vpop.f32.mrb[0].mxu0
    %v1844 = vadd.f32 0.0, %v1843
    %v1845 = vpop.f32.mrb[0].mxu0
    %1846 = vdwg.mxu0
    %1847 = vmatprep.subr.mxu0 0.0
    %v1848 = vand.u32 %v1740, 4294901760
    %v1849 = vsub.f32 %v1740, %v1848
    %v1850 = vand.u32 %v1849, 4294901760
    %v1851 = vsub.f32 %v1849, %v1850
    %v1852 = vand.u32 %v1851, 4294901760
    %1853 = vmatpush1.msra.mxu0 %v1852
    %1854 = vmatprep.subr.mxu0 0.0
    %v1855 = vand.u32 %v1741, 4294901760
    %v1856 = vsub.f32 %v1741, %v1855
    %v1857 = vand.u32 %v1856, 4294901760
    %v1858 = vsub.f32 %v1856, %v1857
    %v1859 = vand.u32 %v1858, 4294901760
    %1860 = vmatpush1.msra.mxu0 %v1859
    %1861 = vmatprep.subr.mxu0 0.0
    %v1862 = vand.u32 %v1742, 4294901760
    %v1863 = vsub.f32 %v1742, %v1862
    %v1864 = vand.u32 %v1863, 4294901760
    %v1865 = vsub.f32 %v1863, %v1864
    %v1866 = vand.u32 %v1865, 4294901760
    %1867 = vmatpush1.msra.mxu0 %v1866
    %1868 = vmatprep.subr.mxu0 0.0
    %v1869 = vand.u32 %v1743, 4294901760
    %v1870 = vsub.f32 %v1743, %v1869
    %v1871 = vand.u32 %v1870, 4294901760
    %v1872 = vsub.f32 %v1870, %v1871
    %v1873 = vand.u32 %v1872, 4294901760
    %1874 = vmatpush1.msra.mxu0 %v1873
    %1875 = vmatprep.subr.mxu0 0.0
    %v1876 = vand.u32 %v1744, 4294901760
    %v1877 = vsub.f32 %v1744, %v1876
    %v1878 = vand.u32 %v1877, 4294901760
    %v1879 = vsub.f32 %v1877, %v1878
    %v1880 = vand.u32 %v1879, 4294901760
    %1881 = vmatpush1.msra.mxu0 %v1880
    %1882 = vmatprep.subr.mxu0 0.0
    %v1883 = vand.u32 %v1745, 4294901760
    %v1884 = vsub.f32 %v1745, %v1883
    %v1885 = vand.u32 %v1884, 4294901760
    %v1886 = vsub.f32 %v1884, %v1885
    %v1887 = vand.u32 %v1886, 4294901760
    %1888 = vmatpush1.msra.mxu0 %v1887
    %1889 = vmatprep.subr.mxu0 0.0
    %v1890 = vand.u32 %v1746, 4294901760
    %v1891 = vsub.f32 %v1746, %v1890
    %v1892 = vand.u32 %v1891, 4294901760
    %v1893 = vsub.f32 %v1891, %v1892
    %v1894 = vand.u32 %v1893, 4294901760
    %1895 = vmatpush1.msra.mxu0 %v1894
    %1896 = vmatprep.subr.mxu0 0.0
    %v1897 = vand.u32 %v1747, 4294901760
    %v1898 = vsub.f32 %v1747, %v1897
    %v1899 = vand.u32 %v1898, 4294901760
    %v1900 = vsub.f32 %v1898, %v1899
    %v1901 = vand.u32 %v1900, 4294901760
    %1902 = vmatpush1.msra.mxu0 %v1901
    %1903 = vmatprep.subr.mxu0 0.0
    %v1904 = vand.u32 %v1748, 4294901760
    %v1905 = vsub.f32 %v1748, %v1904
    %v1906 = vand.u32 %v1905, 4294901760
    %v1907 = vsub.f32 %v1905, %v1906
    %v1908 = vand.u32 %v1907, 4294901760
    %1909 = vmatpush1.msra.mxu0 %v1908
    %1910 = vmatprep.subr.mxu0 0.0
    %v1911 = vand.u32 %v1749, 4294901760
    %v1912 = vsub.f32 %v1749, %v1911
    %v1913 = vand.u32 %v1912, 4294901760
    %v1914 = vsub.f32 %v1912, %v1913
    %v1915 = vand.u32 %v1914, 4294901760
    %1916 = vmatpush1.msra.mxu0 %v1915
    %1917 = vmatprep.subr.mxu0 0.0
    %v1918 = vand.u32 %v1750, 4294901760
    %v1919 = vsub.f32 %v1750, %v1918
    %v1920 = vand.u32 %v1919, 4294901760
    %v1921 = vsub.f32 %v1919, %v1920
    %v1922 = vand.u32 %v1921, 4294901760
    %1923 = vmatpush1.msra.mxu0 %v1922
    %1924 = vmatprep.subr.mxu0 0.0
    %v1925 = vand.u32 %v1751, 4294901760
    %v1926 = vsub.f32 %v1751, %v1925
    %v1927 = vand.u32 %v1926, 4294901760
    %v1928 = vsub.f32 %v1926, %v1927
    %v1929 = vand.u32 %v1928, 4294901760
    %1930 = vmatpush1.msra.mxu0 %v1929
    %1931 = vmatprep.subr.mxu0 0.0
    %v1932 = vand.u32 %v1752, 4294901760
    %v1933 = vsub.f32 %v1752, %v1932
    %v1934 = vand.u32 %v1933, 4294901760
    %v1935 = vsub.f32 %v1933, %v1934
    %v1936 = vand.u32 %v1935, 4294901760
    %1937 = vmatpush1.msra.mxu0 %v1936
    %1938 = vmatprep.subr.mxu0 0.0
    %v1939 = vand.u32 %v1753, 4294901760
    %v1940 = vsub.f32 %v1753, %v1939
    %v1941 = vand.u32 %v1940, 4294901760
    %v1942 = vsub.f32 %v1940, %v1941
    %v1943 = vand.u32 %v1942, 4294901760
    %1944 = vmatpush1.msra.mxu0 %v1943
    %1945 = vmatprep.subr.mxu0 0.0
    %v1946 = vand.u32 %v1754, 4294901760
    %v1947 = vsub.f32 %v1754, %v1946
    %v1948 = vand.u32 %v1947, 4294901760
    %v1949 = vsub.f32 %v1947, %v1948
    %v1950 = vand.u32 %v1949, 4294901760
    %1951 = vmatpush1.msra.mxu0 %v1950
    %1952 = vmatprep.subr.mxu0 0.0
    %v1953 = vand.u32 %v1755, 4294901760
    %v1954 = vsub.f32 %v1755, %v1953
    %v1955 = vand.u32 %v1954, 4294901760
    %v1956 = vsub.f32 %v1954, %v1955
    %v1957 = vand.u32 %v1956, 4294901760
    %1958 = vmatpush1.msra.mxu0 %v1957
    %1959 = vmatprep.subr.mxu0 0.0
    %1960 = vmatpush1.msra.mxu0 0.0
    %1961 = vmatprep.subr.mxu0 0.0
    %1962 = vmatpush1.msra.mxu0 0.0
    %1963 = vmatprep.subr.mxu0 0.0
    %1964 = vmatpush1.msra.mxu0 0.0
    %1965 = vmatprep.subr.mxu0 0.0
    %1966 = vmatpush1.msra.mxu0 0.0
    %1967 = vmatprep.subr.mxu0 0.0
    %1968 = vmatpush1.msra.mxu0 0.0
    %1969 = vmatprep.subr.mxu0 0.0
    %1970 = vmatpush1.msra.mxu0 0.0
    %1971 = vmatprep.subr.mxu0 0.0
    %1972 = vmatpush1.msra.mxu0 0.0
    %1973 = vmatprep.subr.mxu0 0.0
    %1974 = vmatpush1.msra.mxu0 0.0
    %1975 = vmatprep.subr.mxu0 0.0
    %1976 = vmatpush1.msra.mxu0 0.0
    %1977 = vmatprep.subr.mxu0 0.0
    %1978 = vmatpush1.msra.mxu0 0.0
    %1979 = vmatprep.subr.mxu0 0.0
    %1980 = vmatpush1.msra.mxu0 0.0
    %1981 = vmatprep.subr.mxu0 0.0
    %1982 = vmatpush1.msra.mxu0 0.0
    %1983 = vmatprep.subr.mxu0 0.0
    %1984 = vmatpush1.msra.mxu0 0.0
    %1985 = vmatprep.subr.mxu0 0.0
    %1986 = vmatpush1.msra.mxu0 0.0
    %1987 = vmatprep.subr.mxu0 0.0
    %1988 = vmatpush1.msra.mxu0 0.0
    %1989 = vmatprep.subr.mxu0 0.0
    %1990 = vmatpush1.msra.mxu0 0.0
    %1991 = vmatprep.mubr.f32.mxu0 0.0
    %v1992 = vand.u32 %v786, 4294901760
    %1993 = vmatmul.mubr.f32.gmra.mrb[0].mxu0 %v1992
    %v1994 = vpop.f32.mrb[0].mxu0
    %v1995 = vadd.f32 %v1844, %v1994
    %v1996 = vpop.f32.mrb[0].mxu0
    %1997 = vdwg.mxu0
    %1998 = vmatprep.subr.mxu0 0.0
    %v1999 = vand.u32 %v1740, 4294901760
    %v2000 = vsub.f32 %v1740, %v1999
    %2001 = vmatpush1.msra.mxu0 %v2000
    %2002 = vmatprep.subr.mxu0 0.0
    %v2003 = vand.u32 %v1741, 4294901760
    %v2004 = vsub.f32 %v1741, %v2003
    %2005 = vmatpush1.msra.mxu0 %v2004
    %2006 = vmatprep.subr.mxu0 0.0
    %v2007 = vand.u32 %v1742, 4294901760
    %v2008 = vsub.f32 %v1742, %v2007
    %2009 = vmatpush1.msra.mxu0 %v2008
    %2010 = vmatprep.subr.mxu0 0.0
    %v2011 = vand.u32 %v1743, 4294901760
    %v2012 = vsub.f32 %v1743, %v2011
    %2013 = vmatpush1.msra.mxu0 %v2012
    %2014 = vmatprep.subr.mxu0 0.0
    %v2015 = vand.u32 %v1744, 4294901760
    %v2016 = vsub.f32 %v1744, %v2015
    %2017 = vmatpush1.msra.mxu0 %v2016
    %2018 = vmatprep.subr.mxu0 0.0
    %v2019 = vand.u32 %v1745, 4294901760
    %v2020 = vsub.f32 %v1745, %v2019
    %2021 = vmatpush1.msra.mxu0 %v2020
    %2022 = vmatprep.subr.mxu0 0.0
    %v2023 = vand.u32 %v1746, 4294901760
    %v2024 = vsub.f32 %v1746, %v2023
    %2025 = vmatpush1.msra.mxu0 %v2024
    %2026 = vmatprep.subr.mxu0 0.0
    %v2027 = vand.u32 %v1747, 4294901760
    %v2028 = vsub.f32 %v1747, %v2027
    %2029 = vmatpush1.msra.mxu0 %v2028
    %2030 = vmatprep.subr.mxu0 0.0
    %v2031 = vand.u32 %v1748, 4294901760
    %v2032 = vsub.f32 %v1748, %v2031
    %2033 = vmatpush1.msra.mxu0 %v2032
    %2034 = vmatprep.subr.mxu0 0.0
    %v2035 = vand.u32 %v1749, 4294901760
    %v2036 = vsub.f32 %v1749, %v2035
    %2037 = vmatpush1.msra.mxu0 %v2036
    %2038 = vmatprep.subr.mxu0 0.0
    %v2039 = vand.u32 %v1750, 4294901760
    %v2040 = vsub.f32 %v1750, %v2039
    %2041 = vmatpush1.msra.mxu0 %v2040
    %2042 = vmatprep.subr.mxu0 0.0
    %v2043 = vand.u32 %v1751, 4294901760
    %v2044 = vsub.f32 %v1751, %v2043
    %2045 = vmatpush1.msra.mxu0 %v2044
    %2046 = vmatprep.subr.mxu0 0.0
    %v2047 = vand.u32 %v1752, 4294901760
    %v2048 = vsub.f32 %v1752, %v2047
    %2049 = vmatpush1.msra.mxu0 %v2048
    %2050 = vmatprep.subr.mxu0 0.0
    %v2051 = vand.u32 %v1753, 4294901760
    %v2052 = vsub.f32 %v1753, %v2051
    %2053 = vmatpush1.msra.mxu0 %v2052
    %2054 = vmatprep.subr.mxu0 0.0
    %v2055 = vand.u32 %v1754, 4294901760
    %v2056 = vsub.f32 %v1754, %v2055
    %2057 = vmatpush1.msra.mxu0 %v2056
    %2058 = vmatprep.subr.mxu0 0.0
    %v2059 = vand.u32 %v1755, 4294901760
    %v2060 = vsub.f32 %v1755, %v2059
    %2061 = vmatpush1.msra.mxu0 %v2060
    %2062 = vmatprep.subr.mxu0 0.0
    %2063 = vmatpush1.msra.mxu0 0.0
    %2064 = vmatprep.subr.mxu0 0.0
    %2065 = vmatpush1.msra.mxu0 0.0
    %2066 = vmatprep.subr.mxu0 0.0
    %2067 = vmatpush1.msra.mxu0 0.0
    %2068 = vmatprep.subr.mxu0 0.0
    %2069 = vmatpush1.msra.mxu0 0.0
    %2070 = vmatprep.subr.mxu0 0.0
    %2071 = vmatpush1.msra.mxu0 0.0
    %2072 = vmatprep.subr.mxu0 0.0
    %2073 = vmatpush1.msra.mxu0 0.0
    %2074 = vmatprep.subr.mxu0 0.0
    %2075 = vmatpush1.msra.mxu0 0.0
    %2076 = vmatprep.subr.mxu0 0.0
    %2077 = vmatpush1.msra.mxu0 0.0
    %2078 = vmatprep.subr.mxu0 0.0
    %2079 = vmatpush1.msra.mxu0 0.0
    %2080 = vmatprep.subr.mxu0 0.0
    %2081 = vmatpush1.msra.mxu0 0.0
    %2082 = vmatprep.subr.mxu0 0.0
    %2083 = vmatpush1.msra.mxu0 0.0
    %2084 = vmatprep.subr.mxu0 0.0
    %2085 = vmatpush1.msra.mxu0 0.0
    %2086 = vmatprep.subr.mxu0 0.0
    %2087 = vmatpush1.msra.mxu0 0.0
    %2088 = vmatprep.subr.mxu0 0.0
    %2089 = vmatpush1.msra.mxu0 0.0
    %2090 = vmatprep.subr.mxu0 0.0
    %2091 = vmatpush1.msra.mxu0 0.0
    %2092 = vmatprep.subr.mxu0 0.0
    %2093 = vmatpush1.msra.mxu0 0.0
    %2094 = vmatprep.mubr.f32.mxu0 0.0
    %v2095 = vand.u32 %v786, 4294901760
    %v2096 = vsub.f32 %v786, %v2095
    %2097 = vmatmul.mubr.f32.gmra.mrb[0].mxu0 %v2096
    %v2098 = vpop.f32.mrb[0].mxu0
    %v2099 = vadd.f32 %v1995, %v2098
    %v2100 = vpop.f32.mrb[0].mxu0
    %2101 = vdwg.mxu0
    %2102 = vmatprep.subr.mxu0 0.0
    %v2103 = vand.u32 %v1740, 4294901760
    %2104 = vmatpush1.msra.mxu0 %v2103
    %2105 = vmatprep.subr.mxu0 0.0
    %v2106 = vand.u32 %v1741, 4294901760
    %2107 = vmatpush1.msra.mxu0 %v2106
    %2108 = vmatprep.subr.mxu0 0.0
    %v2109 = vand.u32 %v1742, 4294901760
    %2110 = vmatpush1.msra.mxu0 %v2109
    %2111 = vmatprep.subr.mxu0 0.0
    %v2112 = vand.u32 %v1743, 4294901760
    %2113 = vmatpush1.msra.mxu0 %v2112
    %2114 = vmatprep.subr.mxu0 0.0
    %v2115 = vand.u32 %v1744, 4294901760
    %2116 = vmatpush1.msra.mxu0 %v2115
    %2117 = vmatprep.subr.mxu0 0.0
    %v2118 = vand.u32 %v1745, 4294901760
    %2119 = vmatpush1.msra.mxu0 %v2118
    %2120 = vmatprep.subr.mxu0 0.0
    %v2121 = vand.u32 %v1746, 4294901760
    %2122 = vmatpush1.msra.mxu0 %v2121
    %2123 = vmatprep.subr.mxu0 0.0
    %v2124 = vand.u32 %v1747, 4294901760
    %2125 = vmatpush1.msra.mxu0 %v2124
    %2126 = vmatprep.subr.mxu0 0.0
    %v2127 = vand.u32 %v1748, 4294901760
    %2128 = vmatpush1.msra.mxu0 %v2127
    %2129 = vmatprep.subr.mxu0 0.0
    %v2130 = vand.u32 %v1749, 4294901760
    %2131 = vmatpush1.msra.mxu0 %v2130
    %2132 = vmatprep.subr.mxu0 0.0
    %v2133 = vand.u32 %v1750, 4294901760
    %2134 = vmatpush1.msra.mxu0 %v2133
    %2135 = vmatprep.subr.mxu0 0.0
    %v2136 = vand.u32 %v1751, 4294901760
    %2137 = vmatpush1.msra.mxu0 %v2136
    %2138 = vmatprep.subr.mxu0 0.0
    %v2139 = vand.u32 %v1752, 4294901760
    %2140 = vmatpush1.msra.mxu0 %v2139
    %2141 = vmatprep.subr.mxu0 0.0
    %v2142 = vand.u32 %v1753, 4294901760
    %2143 = vmatpush1.msra.mxu0 %v2142
    %2144 = vmatprep.subr.mxu0 0.0
    %v2145 = vand.u32 %v1754, 4294901760
    %2146 = vmatpush1.msra.mxu0 %v2145
    %2147 = vmatprep.subr.mxu0 0.0
    %v2148 = vand.u32 %v1755, 4294901760
    %2149 = vmatpush1.msra.mxu0 %v2148
    %2150 = vmatprep.subr.mxu0 0.0
    %2151 = vmatpush1.msra.mxu0 0.0
    %2152 = vmatprep.subr.mxu0 0.0
    %2153 = vmatpush1.msra.mxu0 0.0
    %2154 = vmatprep.subr.mxu0 0.0
    %2155 = vmatpush1.msra.mxu0 0.0
    %2156 = vmatprep.subr.mxu0 0.0
    %2157 = vmatpush1.msra.mxu0 0.0
    %2158 = vmatprep.subr.mxu0 0.0
    %2159 = vmatpush1.msra.mxu0 0.0
    %2160 = vmatprep.subr.mxu0 0.0
    %2161 = vmatpush1.msra.mxu0 0.0
    %2162 = vmatprep.subr.mxu0 0.0
    %2163 = vmatpush1.msra.mxu0 0.0
    %2164 = vmatprep.subr.mxu0 0.0
    %2165 = vmatpush1.msra.mxu0 0.0
    %2166 = vmatprep.subr.mxu0 0.0
    %2167 = vmatpush1.msra.mxu0 0.0
    %2168 = vmatprep.subr.mxu0 0.0
    %2169 = vmatpush1.msra.mxu0 0.0
    %2170 = vmatprep.subr.mxu0 0.0
    %2171 = vmatpush1.msra.mxu0 0.0
    %2172 = vmatprep.subr.mxu0 0.0
    %2173 = vmatpush1.msra.mxu0 0.0
    %2174 = vmatprep.subr.mxu0 0.0
    %2175 = vmatpush1.msra.mxu0 0.0
    %2176 = vmatprep.subr.mxu0 0.0
    %2177 = vmatpush1.msra.mxu0 0.0
    %2178 = vmatprep.subr.mxu0 0.0
    %2179 = vmatpush1.msra.mxu0 0.0
    %2180 = vmatprep.subr.mxu0 0.0
    %2181 = vmatpush1.msra.mxu0 0.0
    %2182 = vmatprep.mubr.f32.mxu0 0.0
    %v2183 = vand.u32 %v786, 4294901760
    %v2184 = vsub.f32 %v786, %v2183
    %v2185 = vand.u32 %v2184, 4294901760
    %2186 = vmatmul.mubr.f32.gmra.mrb[0].mxu0 %v2185
    %v2187 = vpop.f32.mrb[0].mxu0
    %v2188 = vadd.f32 %v2099, %v2187
    %v2189 = vpop.f32.mrb[0].mxu0
    %2190 = vdwg.mxu0
    %2191 = vmatprep.subr.mxu0 0.0
    %v2192 = vand.u32 %v1740, 4294901760
    %v2193 = vsub.f32 %v1740, %v2192
    %v2194 = vand.u32 %v2193, 4294901760
    %2195 = vmatpush1.msra.mxu0 %v2194
    %2196 = vmatprep.subr.mxu0 0.0
    %v2197 = vand.u32 %v1741, 4294901760
    %v2198 = vsub.f32 %v1741, %v2197
    %v2199 = vand.u32 %v2198, 4294901760
    %2200 = vmatpush1.msra.mxu0 %v2199
    %2201 = vmatprep.subr.mxu0 0.0
    %v2202 = vand.u32 %v1742, 4294901760
    %v2203 = vsub.f32 %v1742, %v2202
    %v2204 = vand.u32 %v2203, 4294901760
    %2205 = vmatpush1.msra.mxu0 %v2204
    %2206 = vmatprep.subr.mxu0 0.0
    %v2207 = vand.u32 %v1743, 4294901760
    %v2208 = vsub.f32 %v1743, %v2207
    %v2209 = vand.u32 %v2208, 4294901760
    %2210 = vmatpush1.msra.mxu0 %v2209
    %2211 = vmatprep.subr.mxu0 0.0
    %v2212 = vand.u32 %v1744, 4294901760
    %v2213 = vsub.f32 %v1744, %v2212
    %v2214 = vand.u32 %v2213, 4294901760
    %2215 = vmatpush1.msra.mxu0 %v2214
    %2216 = vmatprep.subr.mxu0 0.0
    %v2217 = vand.u32 %v1745, 4294901760
    %v2218 = vsub.f32 %v1745, %v2217
    %v2219 = vand.u32 %v2218, 4294901760
    %2220 = vmatpush1.msra.mxu0 %v2219
    %2221 = vmatprep.subr.mxu0 0.0
    %v2222 = vand.u32 %v1746, 4294901760
    %v2223 = vsub.f32 %v1746, %v2222
    %v2224 = vand.u32 %v2223, 4294901760
    %2225 = vmatpush1.msra.mxu0 %v2224
    %2226 = vmatprep.subr.mxu0 0.0
    %v2227 = vand.u32 %v1747, 4294901760
    %v2228 = vsub.f32 %v1747, %v2227
    %v2229 = vand.u32 %v2228, 4294901760
    %2230 = vmatpush1.msra.mxu0 %v2229
    %2231 = vmatprep.subr.mxu0 0.0
    %v2232 = vand.u32 %v1748, 4294901760
    %v2233 = vsub.f32 %v1748, %v2232
    %v2234 = vand.u32 %v2233, 4294901760
    %2235 = vmatpush1.msra.mxu0 %v2234
    %2236 = vmatprep.subr.mxu0 0.0
    %v2237 = vand.u32 %v1749, 4294901760
    %v2238 = vsub.f32 %v1749, %v2237
    %v2239 = vand.u32 %v2238, 4294901760
    %2240 = vmatpush1.msra.mxu0 %v2239
    %2241 = vmatprep.subr.mxu0 0.0
    %v2242 = vand.u32 %v1750, 4294901760
    %v2243 = vsub.f32 %v1750, %v2242
    %v2244 = vand.u32 %v2243, 4294901760
    %2245 = vmatpush1.msra.mxu0 %v2244
    %2246 = vmatprep.subr.mxu0 0.0
    %v2247 = vand.u32 %v1751, 4294901760
    %v2248 = vsub.f32 %v1751, %v2247
    %v2249 = vand.u32 %v2248, 4294901760
    %2250 = vmatpush1.msra.mxu0 %v2249
    %2251 = vmatprep.subr.mxu0 0.0
    %v2252 = vand.u32 %v1752, 4294901760
    %v2253 = vsub.f32 %v1752, %v2252
    %v2254 = vand.u32 %v2253, 4294901760
    %2255 = vmatpush1.msra.mxu0 %v2254
    %2256 = vmatprep.subr.mxu0 0.0
    %v2257 = vand.u32 %v1753, 4294901760
    %v2258 = vsub.f32 %v1753, %v2257
    %v2259 = vand.u32 %v2258, 4294901760
    %2260 = vmatpush1.msra.mxu0 %v2259
    %2261 = vmatprep.subr.mxu0 0.0
    %v2262 = vand.u32 %v1754, 4294901760
    %v2263 = vsub.f32 %v1754, %v2262
    %v2264 = vand.u32 %v2263, 4294901760
    %2265 = vmatpush1.msra.mxu0 %v2264
    %2266 = vmatprep.subr.mxu0 0.0
    %v2267 = vand.u32 %v1755, 4294901760
    %v2268 = vsub.f32 %v1755, %v2267
    %v2269 = vand.u32 %v2268, 4294901760
    %2270 = vmatpush1.msra.mxu0 %v2269
    %2271 = vmatprep.subr.mxu0 0.0
    %2272 = vmatpush1.msra.mxu0 0.0
    %2273 = vmatprep.subr.mxu0 0.0
    %2274 = vmatpush1.msra.mxu0 0.0
    %2275 = vmatprep.subr.mxu0 0.0
    %2276 = vmatpush1.msra.mxu0 0.0
    %2277 = vmatprep.subr.mxu0 0.0
    %2278 = vmatpush1.msra.mxu0 0.0
    %2279 = vmatprep.subr.mxu0 0.0
    %2280 = vmatpush1.msra.mxu0 0.0
    %2281 = vmatprep.subr.mxu0 0.0
    %2282 = vmatpush1.msra.mxu0 0.0
    %2283 = vmatprep.subr.mxu0 0.0
    %2284 = vmatpush1.msra.mxu0 0.0
    %2285 = vmatprep.subr.mxu0 0.0
    %2286 = vmatpush1.msra.mxu0 0.0
    %2287 = vmatprep.subr.mxu0 0.0
    %2288 = vmatpush1.msra.mxu0 0.0
    %2289 = vmatprep.subr.mxu0 0.0
    %2290 = vmatpush1.msra.mxu0 0.0
    %2291 = vmatprep.subr.mxu0 0.0
    %2292 = vmatpush1.msra.mxu0 0.0
    %2293 = vmatprep.subr.mxu0 0.0
    %2294 = vmatpush1.msra.mxu0 0.0
    %2295 = vmatprep.subr.mxu0 0.0
    %2296 = vmatpush1.msra.mxu0 0.0
    %2297 = vmatprep.subr.mxu0 0.0
    %2298 = vmatpush1.msra.mxu0 0.0
    %2299 = vmatprep.subr.mxu0 0.0
    %2300 = vmatpush1.msra.mxu0 0.0
    %2301 = vmatprep.subr.mxu0 0.0
    %2302 = vmatpush1.msra.mxu0 0.0
    %2303 = vmatprep.mubr.f32.mxu0 0.0
    %v2304 = vand.u32 %v786, 4294901760
    %2305 = vmatmul.mubr.f32.gmra.mrb[0].mxu0 %v2304
    %v2306 = vpop.f32.mrb[0].mxu0
    %v2307 = vadd.f32 %v2188, %v2306
    %v2308 = vpop.f32.mrb[0].mxu0
    %2309 = vdwg.mxu0
    %2310 = vmatprep.subr.mxu0 0.0
    %v2311 = vand.u32 %v1740, 4294901760
    %2312 = vmatpush1.msra.mxu0 %v2311
    %2313 = vmatprep.subr.mxu0 0.0
    %v2314 = vand.u32 %v1741, 4294901760
    %2315 = vmatpush1.msra.mxu0 %v2314
    %2316 = vmatprep.subr.mxu0 0.0
    %v2317 = vand.u32 %v1742, 4294901760
    %2318 = vmatpush1.msra.mxu0 %v2317
    %2319 = vmatprep.subr.mxu0 0.0
    %v2320 = vand.u32 %v1743, 4294901760
    %2321 = vmatpush1.msra.mxu0 %v2320
    %2322 = vmatprep.subr.mxu0 0.0
    %v2323 = vand.u32 %v1744, 4294901760
    %2324 = vmatpush1.msra.mxu0 %v2323
    %2325 = vmatprep.subr.mxu0 0.0
    %v2326 = vand.u32 %v1745, 4294901760
    %2327 = vmatpush1.msra.mxu0 %v2326
    %2328 = vmatprep.subr.mxu0 0.0
    %v2329 = vand.u32 %v1746, 4294901760
    %2330 = vmatpush1.msra.mxu0 %v2329
    %2331 = vmatprep.subr.mxu0 0.0
    %v2332 = vand.u32 %v1747, 4294901760
    %2333 = vmatpush1.msra.mxu0 %v2332
    %2334 = vmatprep.subr.mxu0 0.0
    %v2335 = vand.u32 %v1748, 4294901760
    %2336 = vmatpush1.msra.mxu0 %v2335
    %2337 = vmatprep.subr.mxu0 0.0
    %v2338 = vand.u32 %v1749, 4294901760
    %2339 = vmatpush1.msra.mxu0 %v2338
    %2340 = vmatprep.subr.mxu0 0.0
    %v2341 = vand.u32 %v1750, 4294901760
    %2342 = vmatpush1.msra.mxu0 %v2341
    %2343 = vmatprep.subr.mxu0 0.0
    %v2344 = vand.u32 %v1751, 4294901760
    %2345 = vmatpush1.msra.mxu0 %v2344
    %2346 = vmatprep.subr.mxu0 0.0
    %v2347 = vand.u32 %v1752, 4294901760
    %2348 = vmatpush1.msra.mxu0 %v2347
    %2349 = vmatprep.subr.mxu0 0.0
    %v2350 = vand.u32 %v1753, 4294901760
    %2351 = vmatpush1.msra.mxu0 %v2350
    %2352 = vmatprep.subr.mxu0 0.0
    %v2353 = vand.u32 %v1754, 4294901760
    %2354 = vmatpush1.msra.mxu0 %v2353
    %2355 = vmatprep.subr.mxu0 0.0
    %v2356 = vand.u32 %v1755, 4294901760
    %2357 = vmatpush1.msra.mxu0 %v2356
    %2358 = vmatprep.subr.mxu0 0.0
    %2359 = vmatpush1.msra.mxu0 0.0
    %2360 = vmatprep.subr.mxu0 0.0
    %2361 = vmatpush1.msra.mxu0 0.0
    %2362 = vmatprep.subr.mxu0 0.0
    %2363 = vmatpush1.msra.mxu0 0.0
    %2364 = vmatprep.subr.mxu0 0.0
    %2365 = vmatpush1.msra.mxu0 0.0
    %2366 = vmatprep.subr.mxu0 0.0
    %2367 = vmatpush1.msra.mxu0 0.0
    %2368 = vmatprep.subr.mxu0 0.0
    %2369 = vmatpush1.msra.mxu0 0.0
    %2370 = vmatprep.subr.mxu0 0.0
    %2371 = vmatpush1.msra.mxu0 0.0
    %2372 = vmatprep.subr.mxu0 0.0
    %2373 = vmatpush1.msra.mxu0 0.0
    %2374 = vmatprep.subr.mxu0 0.0
    %2375 = vmatpush1.msra.mxu0 0.0
    %2376 = vmatprep.subr.mxu0 0.0
    %2377 = vmatpush1.msra.mxu0 0.0
    %2378 = vmatprep.subr.mxu0 0.0
    %2379 = vmatpush1.msra.mxu0 0.0
    %2380 = vmatprep.subr.mxu0 0.0
    %2381 = vmatpush1.msra.mxu0 0.0
    %2382 = vmatprep.subr.mxu0 0.0
    %2383 = vmatpush1.msra.mxu0 0.0
    %2384 = vmatprep.subr.mxu0 0.0
    %2385 = vmatpush1.msra.mxu0 0.0
    %2386 = vmatprep.subr.mxu0 0.0
    %2387 = vmatpush1.msra.mxu0 0.0
    %2388 = vmatprep.subr.mxu0 0.0
    %2389 = vmatpush1.msra.mxu0 0.0
    %2390 = vmatprep.mubr.f32.mxu0 0.0
    %v2391 = vand.u32 %v786, 4294901760
    %2392 = vmatmul.mubr.f32.gmra.mrb[0].mxu0 %v2391
    %v2393 = vpop.f32.mrb[0].mxu0
    %v2394 = vadd.f32 %v2307, %v2393
    %v2395 = vpop.f32.mrb[0].mxu0
    %2396 = vdwg.mxu0
    %2397 = vmatprep.subr.mxu0 0.0
    %v2398 = vand.u32 %v1740, 4294901760
    %2399 = vmatpush1.msra.mxu0 %v2398
    %2400 = vmatprep.subr.mxu0 0.0
    %v2401 = vand.u32 %v1741, 4294901760
    %2402 = vmatpush1.msra.mxu0 %v2401
    %2403 = vmatprep.subr.mxu0 0.0
    %v2404 = vand.u32 %v1742, 4294901760
    %2405 = vmatpush1.msra.mxu0 %v2404
    %2406 = vmatprep.subr.mxu0 0.0
    %v2407 = vand.u32 %v1743, 4294901760
    %2408 = vmatpush1.msra.mxu0 %v2407
    %2409 = vmatprep.subr.mxu0 0.0
    %v2410 = vand.u32 %v1744, 4294901760
    %2411 = vmatpush1.msra.mxu0 %v2410
    %2412 = vmatprep.subr.mxu0 0.0
    %v2413 = vand.u32 %v1745, 4294901760
    %2414 = vmatpush1.msra.mxu0 %v2413
    %2415 = vmatprep.subr.mxu0 0.0
    %v2416 = vand.u32 %v1746, 4294901760
    %2417 = vmatpush1.msra.mxu0 %v2416
    %2418 = vmatprep.subr.mxu0 0.0
    %v2419 = vand.u32 %v1747, 4294901760
    %2420 = vmatpush1.msra.mxu0 %v2419
    %2421 = vmatprep.subr.mxu0 0.0
    %v2422 = vand.u32 %v1748, 4294901760
    %2423 = vmatpush1.msra.mxu0 %v2422
    %2424 = vmatprep.subr.mxu0 0.0
    %v2425 = vand.u32 %v1749, 4294901760
    %2426 = vmatpush1.msra.mxu0 %v2425
    %2427 = vmatprep.subr.mxu0 0.0
    %v2428 = vand.u32 %v1750, 4294901760
    %2429 = vmatpush1.msra.mxu0 %v2428
    %2430 = vmatprep.subr.mxu0 0.0
    %v2431 = vand.u32 %v1751, 4294901760
    %2432 = vmatpush1.msra.mxu0 %v2431
    %2433 = vmatprep.subr.mxu0 0.0
    %v2434 = vand.u32 %v1752, 4294901760
    %2435 = vmatpush1.msra.mxu0 %v2434
    %2436 = vmatprep.subr.mxu0 0.0
    %v2437 = vand.u32 %v1753, 4294901760
    %2438 = vmatpush1.msra.mxu0 %v2437
    %2439 = vmatprep.subr.mxu0 0.0
    %v2440 = vand.u32 %v1754, 4294901760
    %2441 = vmatpush1.msra.mxu0 %v2440
    %2442 = vmatprep.subr.mxu0 0.0
    %v2443 = vand.u32 %v1755, 4294901760
    %2444 = vmatpush1.msra.mxu0 %v2443
    %2445 = vmatprep.subr.mxu0 0.0
    %2446 = vmatpush1.msra.mxu0 0.0
    %2447 = vmatprep.subr.mxu0 0.0
    %2448 = vmatpush1.msra.mxu0 0.0
    %2449 = vmatprep.subr.mxu0 0.0
    %2450 = vmatpush1.msra.mxu0 0.0
    %2451 = vmatprep.subr.mxu0 0.0
    %2452 = vmatpush1.msra.mxu0 0.0
    %2453 = vmatprep.subr.mxu0 0.0
    %2454 = vmatpush1.msra.mxu0 0.0
    %2455 = vmatprep.subr.mxu0 0.0
    %2456 = vmatpush1.msra.mxu0 0.0
    %2457 = vmatprep.subr.mxu0 0.0
    %2458 = vmatpush1.msra.mxu0 0.0
    %2459 = vmatprep.subr.mxu0 0.0
    %2460 = vmatpush1.msra.mxu0 0.0
    %2461 = vmatprep.subr.mxu0 0.0
    %2462 = vmatpush1.msra.mxu0 0.0
    %2463 = vmatprep.subr.mxu0 0.0
    %2464 = vmatpush1.msra.mxu0 0.0
    %2465 = vmatprep.subr.mxu0 0.0
    %2466 = vmatpush1.msra.mxu0 0.0
    %2467 = vmatprep.subr.mxu0 0.0
    %2468 = vmatpush1.msra.mxu0 0.0
    %2469 = vmatprep.subr.mxu0 0.0
    %2470 = vmatpush1.msra.mxu0 0.0
    %2471 = vmatprep.subr.mxu0 0.0
    %2472 = vmatpush1.msra.mxu0 0.0
    %2473 = vmatprep.subr.mxu0 0.0
    %2474 = vmatpush1.msra.mxu0 0.0
    %2475 = vmatprep.subr.mxu0 0.0
    %2476 = vmatpush1.msra.mxu0 0.0
    %2477 = vmatprep.mubr.f32.mxu0 0.0
    %v2478 = vand.u32 %v788, 4294901760
    %v2479 = vsub.f32 %v788, %v2478
    %v2480 = vand.u32 %v2479, 4294901760
    %v2481 = vsub.f32 %v2479, %v2480
    %v2482 = vand.u32 %v2481, 4294901760
    %2483 = vmatmul.mubr.f32.gmra.mrb[0].mxu0 %v2482
    %v2484 = vpop.f32.mrb[0].mxu0
    %v2485 = vadd.f32 0.0, %v2484
    %v2486 = vpop.f32.mrb[0].mxu0
    %2487 = vdwg.mxu0
    %2488 = vmatprep.subr.mxu0 0.0
    %v2489 = vand.u32 %v1740, 4294901760
    %v2490 = vsub.f32 %v1740, %v2489
    %v2491 = vand.u32 %v2490, 4294901760
    %v2492 = vsub.f32 %v2490, %v2491
    %v2493 = vand.u32 %v2492, 4294901760
    %2494 = vmatpush1.msra.mxu0 %v2493
    %2495 = vmatprep.subr.mxu0 0.0
    %v2496 = vand.u32 %v1741, 4294901760
    %v2497 = vsub.f32 %v1741, %v2496
    %v2498 = vand.u32 %v2497, 4294901760
    %v2499 = vsub.f32 %v2497, %v2498
    %v2500 = vand.u32 %v2499, 4294901760
    %2501 = vmatpush1.msra.mxu0 %v2500
    %2502 = vmatprep.subr.mxu0 0.0
    %v2503 = vand.u32 %v1742, 4294901760
    %v2504 = vsub.f32 %v1742, %v2503
    %v2505 = vand.u32 %v2504, 4294901760
    %v2506 = vsub.f32 %v2504, %v2505
    %v2507 = vand.u32 %v2506, 4294901760
    %2508 = vmatpush1.msra.mxu0 %v2507
    %2509 = vmatprep.subr.mxu0 0.0
    %v2510 = vand.u32 %v1743, 4294901760
    %v2511 = vsub.f32 %v1743, %v2510
    %v2512 = vand.u32 %v2511, 4294901760
    %v2513 = vsub.f32 %v2511, %v2512
    %v2514 = vand.u32 %v2513, 4294901760
    %2515 = vmatpush1.msra.mxu0 %v2514
    %2516 = vmatprep.subr.mxu0 0.0
    %v2517 = vand.u32 %v1744, 4294901760
    %v2518 = vsub.f32 %v1744, %v2517
    %v2519 = vand.u32 %v2518, 4294901760
    %v2520 = vsub.f32 %v2518, %v2519
    %v2521 = vand.u32 %v2520, 4294901760
    %2522 = vmatpush1.msra.mxu0 %v2521
    %2523 = vmatprep.subr.mxu0 0.0
    %v2524 = vand.u32 %v1745, 4294901760
    %v2525 = vsub.f32 %v1745, %v2524
    %v2526 = vand.u32 %v2525, 4294901760
    %v2527 = vsub.f32 %v2525, %v2526
    %v2528 = vand.u32 %v2527, 4294901760
    %2529 = vmatpush1.msra.mxu0 %v2528
    %2530 = vmatprep.subr.mxu0 0.0
    %v2531 = vand.u32 %v1746, 4294901760
    %v2532 = vsub.f32 %v1746, %v2531
    %v2533 = vand.u32 %v2532, 4294901760
    %v2534 = vsub.f32 %v2532, %v2533
    %v2535 = vand.u32 %v2534, 4294901760
    %2536 = vmatpush1.msra.mxu0 %v2535
    %2537 = vmatprep.subr.mxu0 0.0
    %v2538 = vand.u32 %v1747, 4294901760
    %v2539 = vsub.f32 %v1747, %v2538
    %v2540 = vand.u32 %v2539, 4294901760
    %v2541 = vsub.f32 %v2539, %v2540
    %v2542 = vand.u32 %v2541, 4294901760
    %2543 = vmatpush1.msra.mxu0 %v2542
    %2544 = vmatprep.subr.mxu0 0.0
    %v2545 = vand.u32 %v1748, 4294901760
    %v2546 = vsub.f32 %v1748, %v2545
    %v2547 = vand.u32 %v2546, 4294901760
    %v2548 = vsub.f32 %v2546, %v2547
    %v2549 = vand.u32 %v2548, 4294901760
    %2550 = vmatpush1.msra.mxu0 %v2549
    %2551 = vmatprep.subr.mxu0 0.0
    %v2552 = vand.u32 %v1749, 4294901760
    %v2553 = vsub.f32 %v1749, %v2552
    %v2554 = vand.u32 %v2553, 4294901760
    %v2555 = vsub.f32 %v2553, %v2554
    %v2556 = vand.u32 %v2555, 4294901760
    %2557 = vmatpush1.msra.mxu0 %v2556
    %2558 = vmatprep.subr.mxu0 0.0
    %v2559 = vand.u32 %v1750, 4294901760
    %v2560 = vsub.f32 %v1750, %v2559
    %v2561 = vand.u32 %v2560, 4294901760
    %v2562 = vsub.f32 %v2560, %v2561
    %v2563 = vand.u32 %v2562, 4294901760
    %2564 = vmatpush1.msra.mxu0 %v2563
    %2565 = vmatprep.subr.mxu0 0.0
    %v2566 = vand.u32 %v1751, 4294901760
    %v2567 = vsub.f32 %v1751, %v2566
    %v2568 = vand.u32 %v2567, 4294901760
    %v2569 = vsub.f32 %v2567, %v2568
    %v2570 = vand.u32 %v2569, 4294901760
    %2571 = vmatpush1.msra.mxu0 %v2570
    %2572 = vmatprep.subr.mxu0 0.0
    %v2573 = vand.u32 %v1752, 4294901760
    %v2574 = vsub.f32 %v1752, %v2573
    %v2575 = vand.u32 %v2574, 4294901760
    %v2576 = vsub.f32 %v2574, %v2575
    %v2577 = vand.u32 %v2576, 4294901760
    %2578 = vmatpush1.msra.mxu0 %v2577
    %2579 = vmatprep.subr.mxu0 0.0
    %v2580 = vand.u32 %v1753, 4294901760
    %v2581 = vsub.f32 %v1753, %v2580
    %v2582 = vand.u32 %v2581, 4294901760
    %v2583 = vsub.f32 %v2581, %v2582
    %v2584 = vand.u32 %v2583, 4294901760
    %2585 = vmatpush1.msra.mxu0 %v2584
    %2586 = vmatprep.subr.mxu0 0.0
    %v2587 = vand.u32 %v1754, 4294901760
    %v2588 = vsub.f32 %v1754, %v2587
    %v2589 = vand.u32 %v2588, 4294901760
    %v2590 = vsub.f32 %v2588, %v2589
    %v2591 = vand.u32 %v2590, 4294901760
    %2592 = vmatpush1.msra.mxu0 %v2591
    %2593 = vmatprep.subr.mxu0 0.0
    %v2594 = vand.u32 %v1755, 4294901760
    %v2595 = vsub.f32 %v1755, %v2594
    %v2596 = vand.u32 %v2595, 4294901760
    %v2597 = vsub.f32 %v2595, %v2596
    %v2598 = vand.u32 %v2597, 4294901760
    %2599 = vmatpush1.msra.mxu0 %v2598
    %2600 = vmatprep.subr.mxu0 0.0
    %2601 = vmatpush1.msra.mxu0 0.0
    %2602 = vmatprep.subr.mxu0 0.0
    %2603 = vmatpush1.msra.mxu0 0.0
    %2604 = vmatprep.subr.mxu0 0.0
    %2605 = vmatpush1.msra.mxu0 0.0
    %2606 = vmatprep.subr.mxu0 0.0
    %2607 = vmatpush1.msra.mxu0 0.0
    %2608 = vmatprep.subr.mxu0 0.0
    %2609 = vmatpush1.msra.mxu0 0.0
    %2610 = vmatprep.subr.mxu0 0.0
    %2611 = vmatpush1.msra.mxu0 0.0
    %2612 = vmatprep.subr.mxu0 0.0
    %2613 = vmatpush1.msra.mxu0 0.0
    %2614 = vmatprep.subr.mxu0 0.0
    %2615 = vmatpush1.msra.mxu0 0.0
    %2616 = vmatprep.subr.mxu0 0.0
    %2617 = vmatpush1.msra.mxu0 0.0
    %2618 = vmatprep.subr.mxu0 0.0
    %2619 = vmatpush1.msra.mxu0 0.0
    %2620 = vmatprep.subr.mxu0 0.0
    %2621 = vmatpush1.msra.mxu0 0.0
    %2622 = vmatprep.subr.mxu0 0.0
    %2623 = vmatpush1.msra.mxu0 0.0
    %2624 = vmatprep.subr.mxu0 0.0
    %2625 = vmatpush1.msra.mxu0 0.0
    %2626 = vmatprep.subr.mxu0 0.0
    %2627 = vmatpush1.msra.mxu0 0.0
    %2628 = vmatprep.subr.mxu0 0.0
    %2629 = vmatpush1.msra.mxu0 0.0
    %2630 = vmatprep.subr.mxu0 0.0
    %2631 = vmatpush1.msra.mxu0 0.0
    %2632 = vmatprep.mubr.f32.mxu0 0.0
    %v2633 = vand.u32 %v788, 4294901760
    %2634 = vmatmul.mubr.f32.gmra.mrb[0].mxu0 %v2633
    %v2635 = vpop.f32.mrb[0].mxu0
    %v2636 = vadd.f32 %v2485, %v2635
    %v2637 = vpop.f32.mrb[0].mxu0
    %2638 = vdwg.mxu0
    %2639 = vmatprep.subr.mxu0 0.0
    %v2640 = vand.u32 %v1740, 4294901760
    %v2641 = vsub.f32 %v1740, %v2640
    %2642 = vmatpush1.msra.mxu0 %v2641
    %2643 = vmatprep.subr.mxu0 0.0
    %v2644 = vand.u32 %v1741, 4294901760
    %v2645 = vsub.f32 %v1741, %v2644
    %2646 = vmatpush1.msra.mxu0 %v2645
    %2647 = vmatprep.subr.mxu0 0.0
    %v2648 = vand.u32 %v1742, 4294901760
    %v2649 = vsub.f32 %v1742, %v2648
    %2650 = vmatpush1.msra.mxu0 %v2649
    %2651 = vmatprep.subr.mxu0 0.0
    %v2652 = vand.u32 %v1743, 4294901760
    %v2653 = vsub.f32 %v1743, %v2652
    %2654 = vmatpush1.msra.mxu0 %v2653
    %2655 = vmatprep.subr.mxu0 0.0
    %v2656 = vand.u32 %v1744, 4294901760
    %v2657 = vsub.f32 %v1744, %v2656
    %2658 = vmatpush1.msra.mxu0 %v2657
    %2659 = vmatprep.subr.mxu0 0.0
    %v2660 = vand.u32 %v1745, 4294901760
    %v2661 = vsub.f32 %v1745, %v2660
    %2662 = vmatpush1.msra.mxu0 %v2661
    %2663 = vmatprep.subr.mxu0 0.0
    %v2664 = vand.u32 %v1746, 4294901760
    %v2665 = vsub.f32 %v1746, %v2664
    %2666 = vmatpush1.msra.mxu0 %v2665
    %2667 = vmatprep.subr.mxu0 0.0
    %v2668 = vand.u32 %v1747, 4294901760
    %v2669 = vsub.f32 %v1747, %v2668
    %2670 = vmatpush1.msra.mxu0 %v2669
    %2671 = vmatprep.subr.mxu0 0.0
    %v2672 = vand.u32 %v1748, 4294901760
    %v2673 = vsub.f32 %v1748, %v2672
    %2674 = vmatpush1.msra.mxu0 %v2673
    %2675 = vmatprep.subr.mxu0 0.0
    %v2676 = vand.u32 %v1749, 4294901760
    %v2677 = vsub.f32 %v1749, %v2676
    %2678 = vmatpush1.msra.mxu0 %v2677
    %2679 = vmatprep.subr.mxu0 0.0
    %v2680 = vand.u32 %v1750, 4294901760
    %v2681 = vsub.f32 %v1750, %v2680
    %2682 = vmatpush1.msra.mxu0 %v2681
    %2683 = vmatprep.subr.mxu0 0.0
    %v2684 = vand.u32 %v1751, 4294901760
    %v2685 = vsub.f32 %v1751, %v2684
    %2686 = vmatpush1.msra.mxu0 %v2685
    %2687 = vmatprep.subr.mxu0 0.0
    %v2688 = vand.u32 %v1752, 4294901760
    %v2689 = vsub.f32 %v1752, %v2688
    %2690 = vmatpush1.msra.mxu0 %v2689
    %2691 = vmatprep.subr.mxu0 0.0
    %v2692 = vand.u32 %v1753, 4294901760
    %v2693 = vsub.f32 %v1753, %v2692
    %2694 = vmatpush1.msra.mxu0 %v2693
    %2695 = vmatprep.subr.mxu0 0.0
    %v2696 = vand.u32 %v1754, 4294901760
    %v2697 = vsub.f32 %v1754, %v2696
    %2698 = vmatpush1.msra.mxu0 %v2697
    %2699 = vmatprep.subr.mxu0 0.0
    %v2700 = vand.u32 %v1755, 4294901760
    %v2701 = vsub.f32 %v1755, %v2700
    %2702 = vmatpush1.msra.mxu0 %v2701
    %2703 = vmatprep.subr.mxu0 0.0
    %2704 = vmatpush1.msra.mxu0 0.0
    %2705 = vmatprep.subr.mxu0 0.0
    %2706 = vmatpush1.msra.mxu0 0.0
    %2707 = vmatprep.subr.mxu0 0.0
    %2708 = vmatpush1.msra.mxu0 0.0
    %2709 = vmatprep.subr.mxu0 0.0
    %2710 = vmatpush1.msra.mxu0 0.0
    %2711 = vmatprep.subr.mxu0 0.0
    %2712 = vmatpush1.msra.mxu0 0.0
    %2713 = vmatprep.subr.mxu0 0.0
    %2714 = vmatpush1.msra.mxu0 0.0
    %2715 = vmatprep.subr.mxu0 0.0
    %2716 = vmatpush1.msra.mxu0 0.0
    %2717 = vmatprep.subr.mxu0 0.0
    %2718 = vmatpush1.msra.mxu0 0.0
    %2719 = vmatprep.subr.mxu0 0.0
    %2720 = vmatpush1.msra.mxu0 0.0
    %2721 = vmatprep.subr.mxu0 0.0
    %2722 = vmatpush1.msra.mxu0 0.0
    %2723 = vmatprep.subr.mxu0 0.0
    %2724 = vmatpush1.msra.mxu0 0.0
    %2725 = vmatprep.subr.mxu0 0.0
    %2726 = vmatpush1.msra.mxu0 0.0
    %2727 = vmatprep.subr.mxu0 0.0
    %2728 = vmatpush1.msra.mxu0 0.0
    %2729 = vmatprep.subr.mxu0 0.0
    %2730 = vmatpush1.msra.mxu0 0.0
    %2731 = vmatprep.subr.mxu0 0.0
    %2732 = vmatpush1.msra.mxu0 0.0
    %2733 = vmatprep.subr.mxu0 0.0
    %2734 = vmatpush1.msra.mxu0 0.0
    %2735 = vmatprep.mubr.f32.mxu0 0.0
    %v2736 = vand.u32 %v788, 4294901760
    %v2737 = vsub.f32 %v788, %v2736
    %2738 = vmatmul.mubr.f32.gmra.mrb[0].mxu0 %v2737
    %v2739 = vpop.f32.mrb[0].mxu0
    %v2740 = vadd.f32 %v2636, %v2739
    %v2741 = vpop.f32.mrb[0].mxu0
    %2742 = vdwg.mxu0
    %2743 = vmatprep.subr.mxu0 0.0
    %v2744 = vand.u32 %v1740, 4294901760
    %2745 = vmatpush1.msra.mxu0 %v2744
    %2746 = vmatprep.subr.mxu0 0.0
    %v2747 = vand.u32 %v1741, 4294901760
    %2748 = vmatpush1.msra.mxu0 %v2747
    %2749 = vmatprep.subr.mxu0 0.0
    %v2750 = vand.u32 %v1742, 4294901760
    %2751 = vmatpush1.msra.mxu0 %v2750
    %2752 = vmatprep.subr.mxu0 0.0
    %v2753 = vand.u32 %v1743, 4294901760
    %2754 = vmatpush1.msra.mxu0 %v2753
    %2755 = vmatprep.subr.mxu0 0.0
    %v2756 = vand.u32 %v1744, 4294901760
    %2757 = vmatpush1.msra.mxu0 %v2756
    %2758 = vmatprep.subr.mxu0 0.0
    %v2759 = vand.u32 %v1745, 4294901760
    %2760 = vmatpush1.msra.mxu0 %v2759
    %2761 = vmatprep.subr.mxu0 0.0
    %v2762 = vand.u32 %v1746, 4294901760
    %2763 = vmatpush1.msra.mxu0 %v2762
    %2764 = vmatprep.subr.mxu0 0.0
    %v2765 = vand.u32 %v1747, 4294901760
    %2766 = vmatpush1.msra.mxu0 %v2765
    %2767 = vmatprep.subr.mxu0 0.0
    %v2768 = vand.u32 %v1748, 4294901760
    %2769 = vmatpush1.msra.mxu0 %v2768
    %2770 = vmatprep.subr.mxu0 0.0
    %v2771 = vand.u32 %v1749, 4294901760
    %2772 = vmatpush1.msra.mxu0 %v2771
    %2773 = vmatprep.subr.mxu0 0.0
    %v2774 = vand.u32 %v1750, 4294901760
    %2775 = vmatpush1.msra.mxu0 %v2774
    %2776 = vmatprep.subr.mxu0 0.0
    %v2777 = vand.u32 %v1751, 4294901760
    %2778 = vmatpush1.msra.mxu0 %v2777
    %2779 = vmatprep.subr.mxu0 0.0
    %v2780 = vand.u32 %v1752, 4294901760
    %2781 = vmatpush1.msra.mxu0 %v2780
    %2782 = vmatprep.subr.mxu0 0.0
    %v2783 = vand.u32 %v1753, 4294901760
    %2784 = vmatpush1.msra.mxu0 %v2783
    %2785 = vmatprep.subr.mxu0 0.0
    %v2786 = vand.u32 %v1754, 4294901760
    %2787 = vmatpush1.msra.mxu0 %v2786
    %2788 = vmatprep.subr.mxu0 0.0
    %v2789 = vand.u32 %v1755, 4294901760
    %2790 = vmatpush1.msra.mxu0 %v2789
    %2791 = vmatprep.subr.mxu0 0.0
    %2792 = vmatpush1.msra.mxu0 0.0
    %2793 = vmatprep.subr.mxu0 0.0
    %2794 = vmatpush1.msra.mxu0 0.0
    %2795 = vmatprep.subr.mxu0 0.0
    %2796 = vmatpush1.msra.mxu0 0.0
    %2797 = vmatprep.subr.mxu0 0.0
    %2798 = vmatpush1.msra.mxu0 0.0
    %2799 = vmatprep.subr.mxu0 0.0
    %2800 = vmatpush1.msra.mxu0 0.0
    %2801 = vmatprep.subr.mxu0 0.0
    %2802 = vmatpush1.msra.mxu0 0.0
    %2803 = vmatprep.subr.mxu0 0.0
    %2804 = vmatpush1.msra.mxu0 0.0
    %2805 = vmatprep.subr.mxu0 0.0
    %2806 = vmatpush1.msra.mxu0 0.0
    %2807 = vmatprep.subr.mxu0 0.0
    %2808 = vmatpush1.msra.mxu0 0.0
    %2809 = vmatprep.subr.mxu0 0.0
    %2810 = vmatpush1.msra.mxu0 0.0
    %2811 = vmatprep.subr.mxu0 0.0
    %2812 = vmatpush1.msra.mxu0 0.0
    %2813 = vmatprep.subr.mxu0 0.0
    %2814 = vmatpush1.msra.mxu0 0.0
    %2815 = vmatprep.subr.mxu0 0.0
    %2816 = vmatpush1.msra.mxu0 0.0
    %2817 = vmatprep.subr.mxu0 0.0
    %2818 = vmatpush1.msra.mxu0 0.0
    %2819 = vmatprep.subr.mxu0 0.0
    %2820 = vmatpush1.msra.mxu0 0.0
    %2821 = vmatprep.subr.mxu0 0.0
    %2822 = vmatpush1.msra.mxu0 0.0
    %2823 = vmatprep.mubr.f32.mxu0 0.0
    %v2824 = vand.u32 %v788, 4294901760
    %v2825 = vsub.f32 %v788, %v2824
    %v2826 = vand.u32 %v2825, 4294901760
    %2827 = vmatmul.mubr.f32.gmra.mrb[0].mxu0 %v2826
    %v2828 = vpop.f32.mrb[0].mxu0
    %v2829 = vadd.f32 %v2740, %v2828
    %v2830 = vpop.f32.mrb[0].mxu0
    %2831 = vdwg.mxu0
    %2832 = vmatprep.subr.mxu0 0.0
    %v2833 = vand.u32 %v1740, 4294901760
    %v2834 = vsub.f32 %v1740, %v2833
    %v2835 = vand.u32 %v2834, 4294901760
    %2836 = vmatpush1.msra.mxu0 %v2835
    %2837 = vmatprep.subr.mxu0 0.0
    %v2838 = vand.u32 %v1741, 4294901760
    %v2839 = vsub.f32 %v1741, %v2838
    %v2840 = vand.u32 %v2839, 4294901760
    %2841 = vmatpush1.msra.mxu0 %v2840
    %2842 = vmatprep.subr.mxu0 0.0
    %v2843 = vand.u32 %v1742, 4294901760
    %v2844 = vsub.f32 %v1742, %v2843
    %v2845 = vand.u32 %v2844, 4294901760
    %2846 = vmatpush1.msra.mxu0 %v2845
    %2847 = vmatprep.subr.mxu0 0.0
    %v2848 = vand.u32 %v1743, 4294901760
    %v2849 = vsub.f32 %v1743, %v2848
    %v2850 = vand.u32 %v2849, 4294901760
    %2851 = vmatpush1.msra.mxu0 %v2850
    %2852 = vmatprep.subr.mxu0 0.0
    %v2853 = vand.u32 %v1744, 4294901760
    %v2854 = vsub.f32 %v1744, %v2853
    %v2855 = vand.u32 %v2854, 4294901760
    %2856 = vmatpush1.msra.mxu0 %v2855
    %2857 = vmatprep.subr.mxu0 0.0
    %v2858 = vand.u32 %v1745, 4294901760
    %v2859 = vsub.f32 %v1745, %v2858
    %v2860 = vand.u32 %v2859, 4294901760
    %2861 = vmatpush1.msra.mxu0 %v2860
    %2862 = vmatprep.subr.mxu0 0.0
    %v2863 = vand.u32 %v1746, 4294901760
    %v2864 = vsub.f32 %v1746, %v2863
    %v2865 = vand.u32 %v2864, 4294901760
    %2866 = vmatpush1.msra.mxu0 %v2865
    %2867 = vmatprep.subr.mxu0 0.0
    %v2868 = vand.u32 %v1747, 4294901760
    %v2869 = vsub.f32 %v1747, %v2868
    %v2870 = vand.u32 %v2869, 4294901760
    %2871 = vmatpush1.msra.mxu0 %v2870
    %2872 = vmatprep.subr.mxu0 0.0
    %v2873 = vand.u32 %v1748, 4294901760
    %v2874 = vsub.f32 %v1748, %v2873
    %v2875 = vand.u32 %v2874, 4294901760
    %2876 = vmatpush1.msra.mxu0 %v2875
    %2877 = vmatprep.subr.mxu0 0.0
    %v2878 = vand.u32 %v1749, 4294901760
    %v2879 = vsub.f32 %v1749, %v2878
    %v2880 = vand.u32 %v2879, 4294901760
    %2881 = vmatpush1.msra.mxu0 %v2880
    %2882 = vmatprep.subr.mxu0 0.0
    %v2883 = vand.u32 %v1750, 4294901760
    %v2884 = vsub.f32 %v1750, %v2883
    %v2885 = vand.u32 %v2884, 4294901760
    %2886 = vmatpush1.msra.mxu0 %v2885
    %2887 = vmatprep.subr.mxu0 0.0
    %v2888 = vand.u32 %v1751, 4294901760
    %v2889 = vsub.f32 %v1751, %v2888
    %v2890 = vand.u32 %v2889, 4294901760
    %2891 = vmatpush1.msra.mxu0 %v2890
    %2892 = vmatprep.subr.mxu0 0.0
    %v2893 = vand.u32 %v1752, 4294901760
    %v2894 = vsub.f32 %v1752, %v2893
    %v2895 = vand.u32 %v2894, 4294901760
    %2896 = vmatpush1.msra.mxu0 %v2895
    %2897 = vmatprep.subr.mxu0 0.0
    %v2898 = vand.u32 %v1753, 4294901760
    %v2899 = vsub.f32 %v1753, %v2898
    %v2900 = vand.u32 %v2899, 4294901760
    %2901 = vmatpush1.msra.mxu0 %v2900
    %2902 = vmatprep.subr.mxu0 0.0
    %v2903 = vand.u32 %v1754, 4294901760
    %v2904 = vsub.f32 %v1754, %v2903
    %v2905 = vand.u32 %v2904, 4294901760
    %2906 = vmatpush1.msra.mxu0 %v2905
    %2907 = vmatprep.subr.mxu0 0.0
    %v2908 = vand.u32 %v1755, 4294901760
    %v2909 = vsub.f32 %v1755, %v2908
    %v2910 = vand.u32 %v2909, 4294901760
    %2911 = vmatpush1.msra.mxu0 %v2910
    %2912 = vmatprep.subr.mxu0 0.0
    %2913 = vmatpush1.msra.mxu0 0.0
    %2914 = vmatprep.subr.mxu0 0.0
    %2915 = vmatpush1.msra.mxu0 0.0
    %2916 = vmatprep.subr.mxu0 0.0
    %2917 = vmatpush1.msra.mxu0 0.0
    %2918 = vmatprep.subr.mxu0 0.0
    %2919 = vmatpush1.msra.mxu0 0.0
    %2920 = vmatprep.subr.mxu0 0.0
    %2921 = vmatpush1.msra.mxu0 0.0
    %2922 = vmatprep.subr.mxu0 0.0
    %2923 = vmatpush1.msra.mxu0 0.0
    %2924 = vmatprep.subr.mxu0 0.0
    %2925 = vmatpush1.msra.mxu0 0.0
    %2926 = vmatprep.subr.mxu0 0.0
    %2927 = vmatpush1.msra.mxu0 0.0
    %2928 = vmatprep.subr.mxu0 0.0
    %2929 = vmatpush1.msra.mxu0 0.0
    %2930 = vmatprep.subr.mxu0 0.0
    %2931 = vmatpush1.msra.mxu0 0.0
    %2932 = vmatprep.subr.mxu0 0.0
    %2933 = vmatpush1.msra.mxu0 0.0
    %2934 = vmatprep.subr.mxu0 0.0
    %2935 = vmatpush1.msra.mxu0 0.0
    %2936 = vmatprep.subr.mxu0 0.0
    %2937 = vmatpush1.msra.mxu0 0.0
    %2938 = vmatprep.subr.mxu0 0.0
    %2939 = vmatpush1.msra.mxu0 0.0
    %2940 = vmatprep.subr.mxu0 0.0
    %2941 = vmatpush1.msra.mxu0 0.0
    %2942 = vmatprep.subr.mxu0 0.0
    %2943 = vmatpush1.msra.mxu0 0.0
    %2944 = vmatprep.mubr.f32.mxu0 0.0
    %v2945 = vand.u32 %v788, 4294901760
    %2946 = vmatmul.mubr.f32.gmra.mrb[0].mxu0 %v2945
    %v2947 = vpop.f32.mrb[0].mxu0
    %v2948 = vadd.f32 %v2829, %v2947
    %v2949 = vpop.f32.mrb[0].mxu0
    %2950 = vdwg.mxu0
    %2951 = vmatprep.subr.mxu0 0.0
    %v2952 = vand.u32 %v1740, 4294901760
    %2953 = vmatpush1.msra.mxu0 %v2952
    %2954 = vmatprep.subr.mxu0 0.0
    %v2955 = vand.u32 %v1741, 4294901760
    %2956 = vmatpush1.msra.mxu0 %v2955
    %2957 = vmatprep.subr.mxu0 0.0
    %v2958 = vand.u32 %v1742, 4294901760
    %2959 = vmatpush1.msra.mxu0 %v2958
    %2960 = vmatprep.subr.mxu0 0.0
    %v2961 = vand.u32 %v1743, 4294901760
    %2962 = vmatpush1.msra.mxu0 %v2961
    %2963 = vmatprep.subr.mxu0 0.0
    %v2964 = vand.u32 %v1744, 4294901760
    %2965 = vmatpush1.msra.mxu0 %v2964
    %2966 = vmatprep.subr.mxu0 0.0
    %v2967 = vand.u32 %v1745, 4294901760
    %2968 = vmatpush1.msra.mxu0 %v2967
    %2969 = vmatprep.subr.mxu0 0.0
    %v2970 = vand.u32 %v1746, 4294901760
    %2971 = vmatpush1.msra.mxu0 %v2970
    %2972 = vmatprep.subr.mxu0 0.0
    %v2973 = vand.u32 %v1747, 4294901760
    %2974 = vmatpush1.msra.mxu0 %v2973
    %2975 = vmatprep.subr.mxu0 0.0
    %v2976 = vand.u32 %v1748, 4294901760
    %2977 = vmatpush1.msra.mxu0 %v2976
    %2978 = vmatprep.subr.mxu0 0.0
    %v2979 = vand.u32 %v1749, 4294901760
    %2980 = vmatpush1.msra.mxu0 %v2979
    %2981 = vmatprep.subr.mxu0 0.0
    %v2982 = vand.u32 %v1750, 4294901760
    %2983 = vmatpush1.msra.mxu0 %v2982
    %2984 = vmatprep.subr.mxu0 0.0
    %v2985 = vand.u32 %v1751, 4294901760
    %2986 = vmatpush1.msra.mxu0 %v2985
    %2987 = vmatprep.subr.mxu0 0.0
    %v2988 = vand.u32 %v1752, 4294901760
    %2989 = vmatpush1.msra.mxu0 %v2988
    %2990 = vmatprep.subr.mxu0 0.0
    %v2991 = vand.u32 %v1753, 4294901760
    %2992 = vmatpush1.msra.mxu0 %v2991
    %2993 = vmatprep.subr.mxu0 0.0
    %v2994 = vand.u32 %v1754, 4294901760
    %2995 = vmatpush1.msra.mxu0 %v2994
    %2996 = vmatprep.subr.mxu0 0.0
    %v2997 = vand.u32 %v1755, 4294901760
    %2998 = vmatpush1.msra.mxu0 %v2997
    %2999 = vmatprep.subr.mxu0 0.0
    %3000 = vmatpush1.msra.mxu0 0.0
    %3001 = vmatprep.subr.mxu0 0.0
    %3002 = vmatpush1.msra.mxu0 0.0
    %3003 = vmatprep.subr.mxu0 0.0
    %3004 = vmatpush1.msra.mxu0 0.0
    %3005 = vmatprep.subr.mxu0 0.0
    %3006 = vmatpush1.msra.mxu0 0.0
    %3007 = vmatprep.subr.mxu0 0.0
    %3008 = vmatpush1.msra.mxu0 0.0
    %3009 = vmatprep.subr.mxu0 0.0
    %3010 = vmatpush1.msra.mxu0 0.0
    %3011 = vmatprep.subr.mxu0 0.0
    %3012 = vmatpush1.msra.mxu0 0.0
    %3013 = vmatprep.subr.mxu0 0.0
    %3014 = vmatpush1.msra.mxu0 0.0
    %3015 = vmatprep.subr.mxu0 0.0
    %3016 = vmatpush1.msra.mxu0 0.0
    %3017 = vmatprep.subr.mxu0 0.0
    %3018 = vmatpush1.msra.mxu0 0.0
    %3019 = vmatprep.subr.mxu0 0.0
    %3020 = vmatpush1.msra.mxu0 0.0
    %3021 = vmatprep.subr.mxu0 0.0
    %3022 = vmatpush1.msra.mxu0 0.0
    %3023 = vmatprep.subr.mxu0 0.0
    %3024 = vmatpush1.msra.mxu0 0.0
    %3025 = vmatprep.subr.mxu0 0.0
    %3026 = vmatpush1.msra.mxu0 0.0
    %3027 = vmatprep.subr.mxu0 0.0
    %3028 = vmatpush1.msra.mxu0 0.0
    %3029 = vmatprep.subr.mxu0 0.0
    %3030 = vmatpush1.msra.mxu0 0.0
    %3031 = vmatprep.mubr.f32.mxu0 0.0
    %v3032 = vand.u32 %v788, 4294901760
    %3033 = vmatmul.mubr.f32.gmra.mrb[0].mxu0 %v3032
    %v3034 = vpop.f32.mrb[0].mxu0
    %v3035 = vadd.f32 %v2948, %v3034
    %v3036 = vpop.f32.mrb[0].mxu0
    %3037 = vdwg.mxu0
    %3038 = vmatprep.subr.mxu0 0.0
    %v3039 = vand.u32 %v1740, 4294901760
    %3040 = vmatpush1.msra.mxu0 %v3039
    %3041 = vmatprep.subr.mxu0 0.0
    %v3042 = vand.u32 %v1741, 4294901760
    %3043 = vmatpush1.msra.mxu0 %v3042
    %3044 = vmatprep.subr.mxu0 0.0
    %v3045 = vand.u32 %v1742, 4294901760
    %3046 = vmatpush1.msra.mxu0 %v3045
    %3047 = vmatprep.subr.mxu0 0.0
    %v3048 = vand.u32 %v1743, 4294901760
    %3049 = vmatpush1.msra.mxu0 %v3048
    %3050 = vmatprep.subr.mxu0 0.0
    %v3051 = vand.u32 %v1744, 4294901760
    %3052 = vmatpush1.msra.mxu0 %v3051
    %3053 = vmatprep.subr.mxu0 0.0
    %v3054 = vand.u32 %v1745, 4294901760
    %3055 = vmatpush1.msra.mxu0 %v3054
    %3056 = vmatprep.subr.mxu0 0.0
    %v3057 = vand.u32 %v1746, 4294901760
    %3058 = vmatpush1.msra.mxu0 %v3057
    %3059 = vmatprep.subr.mxu0 0.0
    %v3060 = vand.u32 %v1747, 4294901760
    %3061 = vmatpush1.msra.mxu0 %v3060
    %3062 = vmatprep.subr.mxu0 0.0
    %v3063 = vand.u32 %v1748, 4294901760
    %3064 = vmatpush1.msra.mxu0 %v3063
    %3065 = vmatprep.subr.mxu0 0.0
    %v3066 = vand.u32 %v1749, 4294901760
    %3067 = vmatpush1.msra.mxu0 %v3066
    %3068 = vmatprep.subr.mxu0 0.0
    %v3069 = vand.u32 %v1750, 4294901760
    %3070 = vmatpush1.msra.mxu0 %v3069
    %3071 = vmatprep.subr.mxu0 0.0
    %v3072 = vand.u32 %v1751, 4294901760
    %3073 = vmatpush1.msra.mxu0 %v3072
    %3074 = vmatprep.subr.mxu0 0.0
    %v3075 = vand.u32 %v1752, 4294901760
    %3076 = vmatpush1.msra.mxu0 %v3075
    %3077 = vmatprep.subr.mxu0 0.0
    %v3078 = vand.u32 %v1753, 4294901760
    %3079 = vmatpush1.msra.mxu0 %v3078
    %3080 = vmatprep.subr.mxu0 0.0
    %v3081 = vand.u32 %v1754, 4294901760
    %3082 = vmatpush1.msra.mxu0 %v3081
    %3083 = vmatprep.subr.mxu0 0.0
    %v3084 = vand.u32 %v1755, 4294901760
    %3085 = vmatpush1.msra.mxu0 %v3084
    %3086 = vmatprep.subr.mxu0 0.0
    %3087 = vmatpush1.msra.mxu0 0.0
    %3088 = vmatprep.subr.mxu0 0.0
    %3089 = vmatpush1.msra.mxu0 0.0
    %3090 = vmatprep.subr.mxu0 0.0
    %3091 = vmatpush1.msra.mxu0 0.0
    %3092 = vmatprep.subr.mxu0 0.0
    %3093 = vmatpush1.msra.mxu0 0.0
    %3094 = vmatprep.subr.mxu0 0.0
    %3095 = vmatpush1.msra.mxu0 0.0
    %3096 = vmatprep.subr.mxu0 0.0
    %3097 = vmatpush1.msra.mxu0 0.0
    %3098 = vmatprep.subr.mxu0 0.0
    %3099 = vmatpush1.msra.mxu0 0.0
    %3100 = vmatprep.subr.mxu0 0.0
    %3101 = vmatpush1.msra.mxu0 0.0
    %3102 = vmatprep.subr.mxu0 0.0
    %3103 = vmatpush1.msra.mxu0 0.0
    %3104 = vmatprep.subr.mxu0 0.0
    %3105 = vmatpush1.msra.mxu0 0.0
    %3106 = vmatprep.subr.mxu0 0.0
    %3107 = vmatpush1.msra.mxu0 0.0
    %3108 = vmatprep.subr.mxu0 0.0
    %3109 = vmatpush1.msra.mxu0 0.0
    %3110 = vmatprep.subr.mxu0 0.0
    %3111 = vmatpush1.msra.mxu0 0.0
    %3112 = vmatprep.subr.mxu0 0.0
    %3113 = vmatpush1.msra.mxu0 0.0
    %3114 = vmatprep.subr.mxu0 0.0
    %3115 = vmatpush1.msra.mxu0 0.0
    %3116 = vmatprep.subr.mxu0 0.0
    %3117 = vmatpush1.msra.mxu0 0.0
    %3118 = vmatprep.mubr.f32.mxu0 0.0
    %v3119 = vand.u32 %v1277, 4294901760
    %v3120 = vsub.f32 %v1277, %v3119
    %v3121 = vand.u32 %v3120, 4294901760
    %v3122 = vsub.f32 %v3120, %v3121
    %v3123 = vand.u32 %v3122, 4294901760
    %3124 = vmatmul.mubr.f32.gmra.mrb[0].mxu0 %v3123
    %v3125 = vpop.f32.mrb[0].mxu0
    %v3126 = vadd.f32 0.0, %v3125
    %v3127 = vpop.f32.mrb[0].mxu0
    %3128 = vdwg.mxu0
    %3129 = vmatprep.subr.mxu0 0.0
    %v3130 = vand.u32 %v1740, 4294901760
    %v3131 = vsub.f32 %v1740, %v3130
    %v3132 = vand.u32 %v3131, 4294901760
    %v3133 = vsub.f32 %v3131, %v3132
    %v3134 = vand.u32 %v3133, 4294901760
    %3135 = vmatpush1.msra.mxu0 %v3134
    %3136 = vmatprep.subr.mxu0 0.0
    %v3137 = vand.u32 %v1741, 4294901760
    %v3138 = vsub.f32 %v1741, %v3137
    %v3139 = vand.u32 %v3138, 4294901760
    %v3140 = vsub.f32 %v3138, %v3139
    %v3141 = vand.u32 %v3140, 4294901760
    %3142 = vmatpush1.msra.mxu0 %v3141
    %3143 = vmatprep.subr.mxu0 0.0
    %v3144 = vand.u32 %v1742, 4294901760
    %v3145 = vsub.f32 %v1742, %v3144
    %v3146 = vand.u32 %v3145, 4294901760
    %v3147 = vsub.f32 %v3145, %v3146
    %v3148 = vand.u32 %v3147, 4294901760
    %3149 = vmatpush1.msra.mxu0 %v3148
    %3150 = vmatprep.subr.mxu0 0.0
    %v3151 = vand.u32 %v1743, 4294901760
    %v3152 = vsub.f32 %v1743, %v3151
    %v3153 = vand.u32 %v3152, 4294901760
    %v3154 = vsub.f32 %v3152, %v3153
    %v3155 = vand.u32 %v3154, 4294901760
    %3156 = vmatpush1.msra.mxu0 %v3155
    %3157 = vmatprep.subr.mxu0 0.0
    %v3158 = vand.u32 %v1744, 4294901760
    %v3159 = vsub.f32 %v1744, %v3158
    %v3160 = vand.u32 %v3159, 4294901760
    %v3161 = vsub.f32 %v3159, %v3160
    %v3162 = vand.u32 %v3161, 4294901760
    %3163 = vmatpush1.msra.mxu0 %v3162
    %3164 = vmatprep.subr.mxu0 0.0
    %v3165 = vand.u32 %v1745, 4294901760
    %v3166 = vsub.f32 %v1745, %v3165
    %v3167 = vand.u32 %v3166, 4294901760
    %v3168 = vsub.f32 %v3166, %v3167
    %v3169 = vand.u32 %v3168, 4294901760
    %3170 = vmatpush1.msra.mxu0 %v3169
    %3171 = vmatprep.subr.mxu0 0.0
    %v3172 = vand.u32 %v1746, 4294901760
    %v3173 = vsub.f32 %v1746, %v3172
    %v3174 = vand.u32 %v3173, 4294901760
    %v3175 = vsub.f32 %v3173, %v3174
    %v3176 = vand.u32 %v3175, 4294901760
    %3177 = vmatpush1.msra.mxu0 %v3176
    %3178 = vmatprep.subr.mxu0 0.0
    %v3179 = vand.u32 %v1747, 4294901760
    %v3180 = vsub.f32 %v1747, %v3179
    %v3181 = vand.u32 %v3180, 4294901760
    %v3182 = vsub.f32 %v3180, %v3181
    %v3183 = vand.u32 %v3182, 4294901760
    %3184 = vmatpush1.msra.mxu0 %v3183
    %3185 = vmatprep.subr.mxu0 0.0
    %v3186 = vand.u32 %v1748, 4294901760
    %v3187 = vsub.f32 %v1748, %v3186
    %v3188 = vand.u32 %v3187, 4294901760
    %v3189 = vsub.f32 %v3187, %v3188
    %v3190 = vand.u32 %v3189, 4294901760
    %3191 = vmatpush1.msra.mxu0 %v3190
    %3192 = vmatprep.subr.mxu0 0.0
    %v3193 = vand.u32 %v1749, 4294901760
    %v3194 = vsub.f32 %v1749, %v3193
    %v3195 = vand.u32 %v3194, 4294901760
    %v3196 = vsub.f32 %v3194, %v3195
    %v3197 = vand.u32 %v3196, 4294901760
    %3198 = vmatpush1.msra.mxu0 %v3197
    %3199 = vmatprep.subr.mxu0 0.0
    %v3200 = vand.u32 %v1750, 4294901760
    %v3201 = vsub.f32 %v1750, %v3200
    %v3202 = vand.u32 %v3201, 4294901760
    %v3203 = vsub.f32 %v3201, %v3202
    %v3204 = vand.u32 %v3203, 4294901760
    %3205 = vmatpush1.msra.mxu0 %v3204
    %3206 = vmatprep.subr.mxu0 0.0
    %v3207 = vand.u32 %v1751, 4294901760
    %v3208 = vsub.f32 %v1751, %v3207
    %v3209 = vand.u32 %v3208, 4294901760
    %v3210 = vsub.f32 %v3208, %v3209
    %v3211 = vand.u32 %v3210, 4294901760
    %3212 = vmatpush1.msra.mxu0 %v3211
    %3213 = vmatprep.subr.mxu0 0.0
    %v3214 = vand.u32 %v1752, 4294901760
    %v3215 = vsub.f32 %v1752, %v3214
    %v3216 = vand.u32 %v3215, 4294901760
    %v3217 = vsub.f32 %v3215, %v3216
    %v3218 = vand.u32 %v3217, 4294901760
    %3219 = vmatpush1.msra.mxu0 %v3218
    %3220 = vmatprep.subr.mxu0 0.0
    %v3221 = vand.u32 %v1753, 4294901760
    %v3222 = vsub.f32 %v1753, %v3221
    %v3223 = vand.u32 %v3222, 4294901760
    %v3224 = vsub.f32 %v3222, %v3223
    %v3225 = vand.u32 %v3224, 4294901760
    %3226 = vmatpush1.msra.mxu0 %v3225
    %3227 = vmatprep.subr.mxu0 0.0
    %v3228 = vand.u32 %v1754, 4294901760
    %v3229 = vsub.f32 %v1754, %v3228
    %v3230 = vand.u32 %v3229, 4294901760
    %v3231 = vsub.f32 %v3229, %v3230
    %v3232 = vand.u32 %v3231, 4294901760
    %3233 = vmatpush1.msra.mxu0 %v3232
    %3234 = vmatprep.subr.mxu0 0.0
    %v3235 = vand.u32 %v1755, 4294901760
    %v3236 = vsub.f32 %v1755, %v3235
    %v3237 = vand.u32 %v3236, 4294901760
    %v3238 = vsub.f32 %v3236, %v3237
    %v3239 = vand.u32 %v3238, 4294901760
    %3240 = vmatpush1.msra.mxu0 %v3239
    %3241 = vmatprep.subr.mxu0 0.0
    %3242 = vmatpush1.msra.mxu0 0.0
    %3243 = vmatprep.subr.mxu0 0.0
    %3244 = vmatpush1.msra.mxu0 0.0
    %3245 = vmatprep.subr.mxu0 0.0
    %3246 = vmatpush1.msra.mxu0 0.0
    %3247 = vmatprep.subr.mxu0 0.0
    %3248 = vmatpush1.msra.mxu0 0.0
    %3249 = vmatprep.subr.mxu0 0.0
    %3250 = vmatpush1.msra.mxu0 0.0
    %3251 = vmatprep.subr.mxu0 0.0
    %3252 = vmatpush1.msra.mxu0 0.0
    %3253 = vmatprep.subr.mxu0 0.0
    %3254 = vmatpush1.msra.mxu0 0.0
    %3255 = vmatprep.subr.mxu0 0.0
    %3256 = vmatpush1.msra.mxu0 0.0
    %3257 = vmatprep.subr.mxu0 0.0
    %3258 = vmatpush1.msra.mxu0 0.0
    %3259 = vmatprep.subr.mxu0 0.0
    %3260 = vmatpush1.msra.mxu0 0.0
    %3261 = vmatprep.subr.mxu0 0.0
    %3262 = vmatpush1.msra.mxu0 0.0
    %3263 = vmatprep.subr.mxu0 0.0
    %3264 = vmatpush1.msra.mxu0 0.0
    %3265 = vmatprep.subr.mxu0 0.0
    %3266 = vmatpush1.msra.mxu0 0.0
    %3267 = vmatprep.subr.mxu0 0.0
    %3268 = vmatpush1.msra.mxu0 0.0
    %3269 = vmatprep.subr.mxu0 0.0
    %3270 = vmatpush1.msra.mxu0 0.0
    %3271 = vmatprep.subr.mxu0 0.0
    %3272 = vmatpush1.msra.mxu0 0.0
    %3273 = vmatprep.mubr.f32.mxu0 0.0
    %v3274 = vand.u32 %v1277, 4294901760
    %3275 = vmatmul.mubr.f32.gmra.mrb[0].mxu0 %v3274
    %v3276 = vpop.f32.mrb[0].mxu0
    %v3277 = vadd.f32 %v3126, %v3276
    %v3278 = vpop.f32.mrb[0].mxu0
    %3279 = vdwg.mxu0
    %3280 = vmatprep.subr.mxu0 0.0
    %v3281 = vand.u32 %v1740, 4294901760
    %v3282 = vsub.f32 %v1740, %v3281
    %3283 = vmatpush1.msra.mxu0 %v3282
    %3284 = vmatprep.subr.mxu0 0.0
    %v3285 = vand.u32 %v1741, 4294901760
    %v3286 = vsub.f32 %v1741, %v3285
    %3287 = vmatpush1.msra.mxu0 %v3286
    %3288 = vmatprep.subr.mxu0 0.0
    %v3289 = vand.u32 %v1742, 4294901760
    %v3290 = vsub.f32 %v1742, %v3289
    %3291 = vmatpush1.msra.mxu0 %v3290
    %3292 = vmatprep.subr.mxu0 0.0
    %v3293 = vand.u32 %v1743, 4294901760
    %v3294 = vsub.f32 %v1743, %v3293
    %3295 = vmatpush1.msra.mxu0 %v3294
    %3296 = vmatprep.subr.mxu0 0.0
    %v3297 = vand.u32 %v1744, 4294901760
    %v3298 = vsub.f32 %v1744, %v3297
    %3299 = vmatpush1.msra.mxu0 %v3298
    %3300 = vmatprep.subr.mxu0 0.0
    %v3301 = vand.u32 %v1745, 4294901760
    %v3302 = vsub.f32 %v1745, %v3301
    %3303 = vmatpush1.msra.mxu0 %v3302
    %3304 = vmatprep.subr.mxu0 0.0
    %v3305 = vand.u32 %v1746, 4294901760
    %v3306 = vsub.f32 %v1746, %v3305
    %3307 = vmatpush1.msra.mxu0 %v3306
    %3308 = vmatprep.subr.mxu0 0.0
    %v3309 = vand.u32 %v1747, 4294901760
    %v3310 = vsub.f32 %v1747, %v3309
    %3311 = vmatpush1.msra.mxu0 %v3310
    %3312 = vmatprep.subr.mxu0 0.0
    %v3313 = vand.u32 %v1748, 4294901760
    %v3314 = vsub.f32 %v1748, %v3313
    %3315 = vmatpush1.msra.mxu0 %v3314
    %3316 = vmatprep.subr.mxu0 0.0
    %v3317 = vand.u32 %v1749, 4294901760
    %v3318 = vsub.f32 %v1749, %v3317
    %3319 = vmatpush1.msra.mxu0 %v3318
    %3320 = vmatprep.subr.mxu0 0.0
    %v3321 = vand.u32 %v1750, 4294901760
    %v3322 = vsub.f32 %v1750, %v3321
    %3323 = vmatpush1.msra.mxu0 %v3322
    %3324 = vmatprep.subr.mxu0 0.0
    %v3325 = vand.u32 %v1751, 4294901760
    %v3326 = vsub.f32 %v1751, %v3325
    %3327 = vmatpush1.msra.mxu0 %v3326
    %3328 = vmatprep.subr.mxu0 0.0
    %v3329 = vand.u32 %v1752, 4294901760
    %v3330 = vsub.f32 %v1752, %v3329
    %3331 = vmatpush1.msra.mxu0 %v3330
    %3332 = vmatprep.subr.mxu0 0.0
    %v3333 = vand.u32 %v1753, 4294901760
    %v3334 = vsub.f32 %v1753, %v3333
    %3335 = vmatpush1.msra.mxu0 %v3334
    %3336 = vmatprep.subr.mxu0 0.0
    %v3337 = vand.u32 %v1754, 4294901760
    %v3338 = vsub.f32 %v1754, %v3337
    %3339 = vmatpush1.msra.mxu0 %v3338
    %3340 = vmatprep.subr.mxu0 0.0
    %v3341 = vand.u32 %v1755, 4294901760
    %v3342 = vsub.f32 %v1755, %v3341
    %3343 = vmatpush1.msra.mxu0 %v3342
    %3344 = vmatprep.subr.mxu0 0.0
    %3345 = vmatpush1.msra.mxu0 0.0
    %3346 = vmatprep.subr.mxu0 0.0
    %3347 = vmatpush1.msra.mxu0 0.0
    %3348 = vmatprep.subr.mxu0 0.0
    %3349 = vmatpush1.msra.mxu0 0.0
    %3350 = vmatprep.subr.mxu0 0.0
    %3351 = vmatpush1.msra.mxu0 0.0
    %3352 = vmatprep.subr.mxu0 0.0
    %3353 = vmatpush1.msra.mxu0 0.0
    %3354 = vmatprep.subr.mxu0 0.0
    %3355 = vmatpush1.msra.mxu0 0.0
    %3356 = vmatprep.subr.mxu0 0.0
    %3357 = vmatpush1.msra.mxu0 0.0
    %3358 = vmatprep.subr.mxu0 0.0
    %3359 = vmatpush1.msra.mxu0 0.0
    %3360 = vmatprep.subr.mxu0 0.0
    %3361 = vmatpush1.msra.mxu0 0.0
    %3362 = vmatprep.subr.mxu0 0.0
    %3363 = vmatpush1.msra.mxu0 0.0
    %3364 = vmatprep.subr.mxu0 0.0
    %3365 = vmatpush1.msra.mxu0 0.0
    %3366 = vmatprep.subr.mxu0 0.0
    %3367 = vmatpush1.msra.mxu0 0.0
    %3368 = vmatprep.subr.mxu0 0.0
    %3369 = vmatpush1.msra.mxu0 0.0
    %3370 = vmatprep.subr.mxu0 0.0
    %3371 = vmatpush1.msra.mxu0 0.0
    %3372 = vmatprep.subr.mxu0 0.0
    %3373 = vmatpush1.msra.mxu0 0.0
    %3374 = vmatprep.subr.mxu0 0.0
    %3375 = vmatpush1.msra.mxu0 0.0
    %3376 = vmatprep.mubr.f32.mxu0 0.0
    %v3377 = vand.u32 %v1277, 4294901760
    %v3378 = vsub.f32 %v1277, %v3377
    %3379 = vmatmul.mubr.f32.gmra.mrb[0].mxu0 %v3378
    %v3380 = vpop.f32.mrb[0].mxu0
    %v3381 = vadd.f32 %v3277, %v3380
    %v3382 = vpop.f32.mrb[0].mxu0
    %3383 = vdwg.mxu0
    %3384 = vmatprep.subr.mxu0 0.0
    %v3385 = vand.u32 %v1740, 4294901760
    %3386 = vmatpush1.msra.mxu0 %v3385
    %3387 = vmatprep.subr.mxu0 0.0
    %v3388 = vand.u32 %v1741, 4294901760
    %3389 = vmatpush1.msra.mxu0 %v3388
    %3390 = vmatprep.subr.mxu0 0.0
    %v3391 = vand.u32 %v1742, 4294901760
    %3392 = vmatpush1.msra.mxu0 %v3391
    %3393 = vmatprep.subr.mxu0 0.0
    %v3394 = vand.u32 %v1743, 4294901760
    %3395 = vmatpush1.msra.mxu0 %v3394
    %3396 = vmatprep.subr.mxu0 0.0
    %v3397 = vand.u32 %v1744, 4294901760
    %3398 = vmatpush1.msra.mxu0 %v3397
    %3399 = vmatprep.subr.mxu0 0.0
    %v3400 = vand.u32 %v1745, 4294901760
    %3401 = vmatpush1.msra.mxu0 %v3400
    %3402 = vmatprep.subr.mxu0 0.0
    %v3403 = vand.u32 %v1746, 4294901760
    %3404 = vmatpush1.msra.mxu0 %v3403
    %3405 = vmatprep.subr.mxu0 0.0
    %v3406 = vand.u32 %v1747, 4294901760
    %3407 = vmatpush1.msra.mxu0 %v3406
    %3408 = vmatprep.subr.mxu0 0.0
    %v3409 = vand.u32 %v1748, 4294901760
    %3410 = vmatpush1.msra.mxu0 %v3409
    %3411 = vmatprep.subr.mxu0 0.0
    %v3412 = vand.u32 %v1749, 4294901760
    %3413 = vmatpush1.msra.mxu0 %v3412
    %3414 = vmatprep.subr.mxu0 0.0
    %v3415 = vand.u32 %v1750, 4294901760
    %3416 = vmatpush1.msra.mxu0 %v3415
    %3417 = vmatprep.subr.mxu0 0.0
    %v3418 = vand.u32 %v1751, 4294901760
    %3419 = vmatpush1.msra.mxu0 %v3418
    %3420 = vmatprep.subr.mxu0 0.0
    %v3421 = vand.u32 %v1752, 4294901760
    %3422 = vmatpush1.msra.mxu0 %v3421
    %3423 = vmatprep.subr.mxu0 0.0
    %v3424 = vand.u32 %v1753, 4294901760
    %3425 = vmatpush1.msra.mxu0 %v3424
    %3426 = vmatprep.subr.mxu0 0.0
    %v3427 = vand.u32 %v1754, 4294901760
    %3428 = vmatpush1.msra.mxu0 %v3427
    %3429 = vmatprep.subr.mxu0 0.0
    %v3430 = vand.u32 %v1755, 4294901760
    %3431 = vmatpush1.msra.mxu0 %v3430
    %3432 = vmatprep.subr.mxu0 0.0
    %3433 = vmatpush1.msra.mxu0 0.0
    %3434 = vmatprep.subr.mxu0 0.0
    %3435 = vmatpush1.msra.mxu0 0.0
    %3436 = vmatprep.subr.mxu0 0.0
    %3437 = vmatpush1.msra.mxu0 0.0
    %3438 = vmatprep.subr.mxu0 0.0
    %3439 = vmatpush1.msra.mxu0 0.0
    %3440 = vmatprep.subr.mxu0 0.0
    %3441 = vmatpush1.msra.mxu0 0.0
    %3442 = vmatprep.subr.mxu0 0.0
    %3443 = vmatpush1.msra.mxu0 0.0
    %3444 = vmatprep.subr.mxu0 0.0
    %3445 = vmatpush1.msra.mxu0 0.0
    %3446 = vmatprep.subr.mxu0 0.0
    %3447 = vmatpush1.msra.mxu0 0.0
    %3448 = vmatprep.subr.mxu0 0.0
    %3449 = vmatpush1.msra.mxu0 0.0
    %3450 = vmatprep.subr.mxu0 0.0
    %3451 = vmatpush1.msra.mxu0 0.0
    %3452 = vmatprep.subr.mxu0 0.0
    %3453 = vmatpush1.msra.mxu0 0.0
    %3454 = vmatprep.subr.mxu0 0.0
    %3455 = vmatpush1.msra.mxu0 0.0
    %3456 = vmatprep.subr.mxu0 0.0
    %3457 = vmatpush1.msra.mxu0 0.0
    %3458 = vmatprep.subr.mxu0 0.0
    %3459 = vmatpush1.msra.mxu0 0.0
    %3460 = vmatprep.subr.mxu0 0.0
    %3461 = vmatpush1.msra.mxu0 0.0
    %3462 = vmatprep.subr.mxu0 0.0
    %3463 = vmatpush1.msra.mxu0 0.0
    %3464 = vmatprep.mubr.f32.mxu0 0.0
    %v3465 = vand.u32 %v1277, 4294901760
    %v3466 = vsub.f32 %v1277, %v3465
    %v3467 = vand.u32 %v3466, 4294901760
    %3468 = vmatmul.mubr.f32.gmra.mrb[0].mxu0 %v3467
    %v3469 = vpop.f32.mrb[0].mxu0
    %v3470 = vadd.f32 %v3381, %v3469
    %v3471 = vpop.f32.mrb[0].mxu0
    %3472 = vdwg.mxu0
    %3473 = vmatprep.subr.mxu0 0.0
    %v3474 = vand.u32 %v1740, 4294901760
    %v3475 = vsub.f32 %v1740, %v3474
    %v3476 = vand.u32 %v3475, 4294901760
    %3477 = vmatpush1.msra.mxu0 %v3476
    %3478 = vmatprep.subr.mxu0 0.0
    %v3479 = vand.u32 %v1741, 4294901760
    %v3480 = vsub.f32 %v1741, %v3479
    %v3481 = vand.u32 %v3480, 4294901760
    %3482 = vmatpush1.msra.mxu0 %v3481
    %3483 = vmatprep.subr.mxu0 0.0
    %v3484 = vand.u32 %v1742, 4294901760
    %v3485 = vsub.f32 %v1742, %v3484
    %v3486 = vand.u32 %v3485, 4294901760
    %3487 = vmatpush1.msra.mxu0 %v3486
    %3488 = vmatprep.subr.mxu0 0.0
    %v3489 = vand.u32 %v1743, 4294901760
    %v3490 = vsub.f32 %v1743, %v3489
    %v3491 = vand.u32 %v3490, 4294901760
    %3492 = vmatpush1.msra.mxu0 %v3491
    %3493 = vmatprep.subr.mxu0 0.0
    %v3494 = vand.u32 %v1744, 4294901760
    %v3495 = vsub.f32 %v1744, %v3494
    %v3496 = vand.u32 %v3495, 4294901760
    %3497 = vmatpush1.msra.mxu0 %v3496
    %3498 = vmatprep.subr.mxu0 0.0
    %v3499 = vand.u32 %v1745, 4294901760
    %v3500 = vsub.f32 %v1745, %v3499
    %v3501 = vand.u32 %v3500, 4294901760
    %3502 = vmatpush1.msra.mxu0 %v3501
    %3503 = vmatprep.subr.mxu0 0.0
    %v3504 = vand.u32 %v1746, 4294901760
    %v3505 = vsub.f32 %v1746, %v3504
    %v3506 = vand.u32 %v3505, 4294901760
    %3507 = vmatpush1.msra.mxu0 %v3506
    %3508 = vmatprep.subr.mxu0 0.0
    %v3509 = vand.u32 %v1747, 4294901760
    %v3510 = vsub.f32 %v1747, %v3509
    %v3511 = vand.u32 %v3510, 4294901760
    %3512 = vmatpush1.msra.mxu0 %v3511
    %3513 = vmatprep.subr.mxu0 0.0
    %v3514 = vand.u32 %v1748, 4294901760
    %v3515 = vsub.f32 %v1748, %v3514
    %v3516 = vand.u32 %v3515, 4294901760
    %3517 = vmatpush1.msra.mxu0 %v3516
    %3518 = vmatprep.subr.mxu0 0.0
    %v3519 = vand.u32 %v1749, 4294901760
    %v3520 = vsub.f32 %v1749, %v3519
    %v3521 = vand.u32 %v3520, 4294901760
    %3522 = vmatpush1.msra.mxu0 %v3521
    %3523 = vmatprep.subr.mxu0 0.0
    %v3524 = vand.u32 %v1750, 4294901760
    %v3525 = vsub.f32 %v1750, %v3524
    %v3526 = vand.u32 %v3525, 4294901760
    %3527 = vmatpush1.msra.mxu0 %v3526
    %3528 = vmatprep.subr.mxu0 0.0
    %v3529 = vand.u32 %v1751, 4294901760
    %v3530 = vsub.f32 %v1751, %v3529
    %v3531 = vand.u32 %v3530, 4294901760
    %3532 = vmatpush1.msra.mxu0 %v3531
    %3533 = vmatprep.subr.mxu0 0.0
    %v3534 = vand.u32 %v1752, 4294901760
    %v3535 = vsub.f32 %v1752, %v3534
    %v3536 = vand.u32 %v3535, 4294901760
    %3537 = vmatpush1.msra.mxu0 %v3536
    %3538 = vmatprep.subr.mxu0 0.0
    %v3539 = vand.u32 %v1753, 4294901760
    %v3540 = vsub.f32 %v1753, %v3539
    %v3541 = vand.u32 %v3540, 4294901760
    %3542 = vmatpush1.msra.mxu0 %v3541
    %3543 = vmatprep.subr.mxu0 0.0
    %v3544 = vand.u32 %v1754, 4294901760
    %v3545 = vsub.f32 %v1754, %v3544
    %v3546 = vand.u32 %v3545, 4294901760
    %3547 = vmatpush1.msra.mxu0 %v3546
    %3548 = vmatprep.subr.mxu0 0.0
    %v3549 = vand.u32 %v1755, 4294901760
    %v3550 = vsub.f32 %v1755, %v3549
    %v3551 = vand.u32 %v3550, 4294901760
    %3552 = vmatpush1.msra.mxu0 %v3551
    %3553 = vmatprep.subr.mxu0 0.0
    %3554 = vmatpush1.msra.mxu0 0.0
    %3555 = vmatprep.subr.mxu0 0.0
    %3556 = vmatpush1.msra.mxu0 0.0
    %3557 = vmatprep.subr.mxu0 0.0
    %3558 = vmatpush1.msra.mxu0 0.0
    %3559 = vmatprep.subr.mxu0 0.0
    %3560 = vmatpush1.msra.mxu0 0.0
    %3561 = vmatprep.subr.mxu0 0.0
    %3562 = vmatpush1.msra.mxu0 0.0
    %3563 = vmatprep.subr.mxu0 0.0
    %3564 = vmatpush1.msra.mxu0 0.0
    %3565 = vmatprep.subr.mxu0 0.0
    %3566 = vmatpush1.msra.mxu0 0.0
    %3567 = vmatprep.subr.mxu0 0.0
    %3568 = vmatpush1.msra.mxu0 0.0
    %3569 = vmatprep.subr.mxu0 0.0
    %3570 = vmatpush1.msra.mxu0 0.0
    %3571 = vmatprep.subr.mxu0 0.0
    %3572 = vmatpush1.msra.mxu0 0.0
    %3573 = vmatprep.subr.mxu0 0.0
    %3574 = vmatpush1.msra.mxu0 0.0
    %3575 = vmatprep.subr.mxu0 0.0
    %3576 = vmatpush1.msra.mxu0 0.0
    %3577 = vmatprep.subr.mxu0 0.0
    %3578 = vmatpush1.msra.mxu0 0.0
    %3579 = vmatprep.subr.mxu0 0.0
    %3580 = vmatpush1.msra.mxu0 0.0
    %3581 = vmatprep.subr.mxu0 0.0
    %3582 = vmatpush1.msra.mxu0 0.0
    %3583 = vmatprep.subr.mxu0 0.0
    %3584 = vmatpush1.msra.mxu0 0.0
    %3585 = vmatprep.mubr.f32.mxu0 0.0
    %v3586 = vand.u32 %v1277, 4294901760
    %3587 = vmatmul.mubr.f32.gmra.mrb[0].mxu0 %v3586
    %v3588 = vpop.f32.mrb[0].mxu0
    %v3589 = vadd.f32 %v3470, %v3588
    %v3590 = vpop.f32.mrb[0].mxu0
    %3591 = vdwg.mxu0
    %3592 = vmatprep.subr.mxu0 0.0
    %v3593 = vand.u32 %v1740, 4294901760
    %3594 = vmatpush1.msra.mxu0 %v3593
    %3595 = vmatprep.subr.mxu0 0.0
    %v3596 = vand.u32 %v1741, 4294901760
    %3597 = vmatpush1.msra.mxu0 %v3596
    %3598 = vmatprep.subr.mxu0 0.0
    %v3599 = vand.u32 %v1742, 4294901760
    %3600 = vmatpush1.msra.mxu0 %v3599
    %3601 = vmatprep.subr.mxu0 0.0
    %v3602 = vand.u32 %v1743, 4294901760
    %3603 = vmatpush1.msra.mxu0 %v3602
    %3604 = vmatprep.subr.mxu0 0.0
    %v3605 = vand.u32 %v1744, 4294901760
    %3606 = vmatpush1.msra.mxu0 %v3605
    %3607 = vmatprep.subr.mxu0 0.0
    %v3608 = vand.u32 %v1745, 4294901760
    %3609 = vmatpush1.msra.mxu0 %v3608
    %3610 = vmatprep.subr.mxu0 0.0
    %v3611 = vand.u32 %v1746, 4294901760
    %3612 = vmatpush1.msra.mxu0 %v3611
    %3613 = vmatprep.subr.mxu0 0.0
    %v3614 = vand.u32 %v1747, 4294901760
    %3615 = vmatpush1.msra.mxu0 %v3614
    %3616 = vmatprep.subr.mxu0 0.0
    %v3617 = vand.u32 %v1748, 4294901760
    %3618 = vmatpush1.msra.mxu0 %v3617
    %3619 = vmatprep.subr.mxu0 0.0
    %v3620 = vand.u32 %v1749, 4294901760
    %3621 = vmatpush1.msra.mxu0 %v3620
    %3622 = vmatprep.subr.mxu0 0.0
    %v3623 = vand.u32 %v1750, 4294901760
    %3624 = vmatpush1.msra.mxu0 %v3623
    %3625 = vmatprep.subr.mxu0 0.0
    %v3626 = vand.u32 %v1751, 4294901760
    %3627 = vmatpush1.msra.mxu0 %v3626
    %3628 = vmatprep.subr.mxu0 0.0
    %v3629 = vand.u32 %v1752, 4294901760
    %3630 = vmatpush1.msra.mxu0 %v3629
    %3631 = vmatprep.subr.mxu0 0.0
    %v3632 = vand.u32 %v1753, 4294901760
    %3633 = vmatpush1.msra.mxu0 %v3632
    %3634 = vmatprep.subr.mxu0 0.0
    %v3635 = vand.u32 %v1754, 4294901760
    %3636 = vmatpush1.msra.mxu0 %v3635
    %3637 = vmatprep.subr.mxu0 0.0
    %v3638 = vand.u32 %v1755, 4294901760
    %3639 = vmatpush1.msra.mxu0 %v3638
    %3640 = vmatprep.subr.mxu0 0.0
    %3641 = vmatpush1.msra.mxu0 0.0
    %3642 = vmatprep.subr.mxu0 0.0
    %3643 = vmatpush1.msra.mxu0 0.0
    %3644 = vmatprep.subr.mxu0 0.0
    %3645 = vmatpush1.msra.mxu0 0.0
    %3646 = vmatprep.subr.mxu0 0.0
    %3647 = vmatpush1.msra.mxu0 0.0
    %3648 = vmatprep.subr.mxu0 0.0
    %3649 = vmatpush1.msra.mxu0 0.0
    %3650 = vmatprep.subr.mxu0 0.0
    %3651 = vmatpush1.msra.mxu0 0.0
    %3652 = vmatprep.subr.mxu0 0.0
    %3653 = vmatpush1.msra.mxu0 0.0
    %3654 = vmatprep.subr.mxu0 0.0
    %3655 = vmatpush1.msra.mxu0 0.0
    %3656 = vmatprep.subr.mxu0 0.0
    %3657 = vmatpush1.msra.mxu0 0.0
    %3658 = vmatprep.subr.mxu0 0.0
    %3659 = vmatpush1.msra.mxu0 0.0
    %3660 = vmatprep.subr.mxu0 0.0
    %3661 = vmatpush1.msra.mxu0 0.0
    %3662 = vmatprep.subr.mxu0 0.0
    %3663 = vmatpush1.msra.mxu0 0.0
    %3664 = vmatprep.subr.mxu0 0.0
    %3665 = vmatpush1.msra.mxu0 0.0
    %3666 = vmatprep.subr.mxu0 0.0
    %3667 = vmatpush1.msra.mxu0 0.0
    %3668 = vmatprep.subr.mxu0 0.0
    %3669 = vmatpush1.msra.mxu0 0.0
    %3670 = vmatprep.subr.mxu0 0.0
    %3671 = vmatpush1.msra.mxu0 0.0
    %3672 = vmatprep.mubr.f32.mxu0 0.0
    %v3673 = vand.u32 %v1277, 4294901760
    %3674 = vmatmul.mubr.f32.gmra.mrb[0].mxu0 %v3673
    %v3675 = vpop.f32.mrb[0].mxu0
    %v3676 = vadd.f32 %v3589, %v3675
    %v3677 = vpop.f32.mrb[0].mxu0
    %3678 = vdwg.mxu0
    %3679 = vmatprep.subr.mxu0 0.0
    %v3680 = vand.u32 %v1740, 4294901760
    %3681 = vmatpush1.msra.mxu0 %v3680
    %3682 = vmatprep.subr.mxu0 0.0
    %v3683 = vand.u32 %v1741, 4294901760
    %3684 = vmatpush1.msra.mxu0 %v3683
    %3685 = vmatprep.subr.mxu0 0.0
    %v3686 = vand.u32 %v1742, 4294901760
    %3687 = vmatpush1.msra.mxu0 %v3686
    %3688 = vmatprep.subr.mxu0 0.0
    %v3689 = vand.u32 %v1743, 4294901760
    %3690 = vmatpush1.msra.mxu0 %v3689
    %3691 = vmatprep.subr.mxu0 0.0
    %v3692 = vand.u32 %v1744, 4294901760
    %3693 = vmatpush1.msra.mxu0 %v3692
    %3694 = vmatprep.subr.mxu0 0.0
    %v3695 = vand.u32 %v1745, 4294901760
    %3696 = vmatpush1.msra.mxu0 %v3695
    %3697 = vmatprep.subr.mxu0 0.0
    %v3698 = vand.u32 %v1746, 4294901760
    %3699 = vmatpush1.msra.mxu0 %v3698
    %3700 = vmatprep.subr.mxu0 0.0
    %v3701 = vand.u32 %v1747, 4294901760
    %3702 = vmatpush1.msra.mxu0 %v3701
    %3703 = vmatprep.subr.mxu0 0.0
    %v3704 = vand.u32 %v1748, 4294901760
    %3705 = vmatpush1.msra.mxu0 %v3704
    %3706 = vmatprep.subr.mxu0 0.0
    %v3707 = vand.u32 %v1749, 4294901760
    %3708 = vmatpush1.msra.mxu0 %v3707
    %3709 = vmatprep.subr.mxu0 0.0
    %v3710 = vand.u32 %v1750, 4294901760
    %3711 = vmatpush1.msra.mxu0 %v3710
    %3712 = vmatprep.subr.mxu0 0.0
    %v3713 = vand.u32 %v1751, 4294901760
    %3714 = vmatpush1.msra.mxu0 %v3713
    %3715 = vmatprep.subr.mxu0 0.0
    %v3716 = vand.u32 %v1752, 4294901760
    %3717 = vmatpush1.msra.mxu0 %v3716
    %3718 = vmatprep.subr.mxu0 0.0
    %v3719 = vand.u32 %v1753, 4294901760
    %3720 = vmatpush1.msra.mxu0 %v3719
    %3721 = vmatprep.subr.mxu0 0.0
    %v3722 = vand.u32 %v1754, 4294901760
    %3723 = vmatpush1.msra.mxu0 %v3722
    %3724 = vmatprep.subr.mxu0 0.0
    %v3725 = vand.u32 %v1755, 4294901760
    %3726 = vmatpush1.msra.mxu0 %v3725
    %3727 = vmatprep.subr.mxu0 0.0
    %3728 = vmatpush1.msra.mxu0 0.0
    %3729 = vmatprep.subr.mxu0 0.0
    %3730 = vmatpush1.msra.mxu0 0.0
    %3731 = vmatprep.subr.mxu0 0.0
    %3732 = vmatpush1.msra.mxu0 0.0
    %3733 = vmatprep.subr.mxu0 0.0
    %3734 = vmatpush1.msra.mxu0 0.0
    %3735 = vmatprep.subr.mxu0 0.0
    %3736 = vmatpush1.msra.mxu0 0.0
    %3737 = vmatprep.subr.mxu0 0.0
    %3738 = vmatpush1.msra.mxu0 0.0
    %3739 = vmatprep.subr.mxu0 0.0
    %3740 = vmatpush1.msra.mxu0 0.0
    %3741 = vmatprep.subr.mxu0 0.0
    %3742 = vmatpush1.msra.mxu0 0.0
    %3743 = vmatprep.subr.mxu0 0.0
    %3744 = vmatpush1.msra.mxu0 0.0
    %3745 = vmatprep.subr.mxu0 0.0
    %3746 = vmatpush1.msra.mxu0 0.0
    %3747 = vmatprep.subr.mxu0 0.0
    %3748 = vmatpush1.msra.mxu0 0.0
    %3749 = vmatprep.subr.mxu0 0.0
    %3750 = vmatpush1.msra.mxu0 0.0
    %3751 = vmatprep.subr.mxu0 0.0
    %3752 = vmatpush1.msra.mxu0 0.0
    %3753 = vmatprep.subr.mxu0 0.0
    %3754 = vmatpush1.msra.mxu0 0.0
    %3755 = vmatprep.subr.mxu0 0.0
    %3756 = vmatpush1.msra.mxu0 0.0
    %3757 = vmatprep.subr.mxu0 0.0
    %3758 = vmatpush1.msra.mxu0 0.0
    %3759 = vmatprep.mubr.f32.mxu0 0.0
    %v3760 = vand.u32 %v1279, 4294901760
    %v3761 = vsub.f32 %v1279, %v3760
    %v3762 = vand.u32 %v3761, 4294901760
    %v3763 = vsub.f32 %v3761, %v3762
    %v3764 = vand.u32 %v3763, 4294901760
    %3765 = vmatmul.mubr.f32.gmra.mrb[0].mxu0 %v3764
    %v3766 = vpop.f32.mrb[0].mxu0
    %v3767 = vadd.f32 0.0, %v3766
    %v3768 = vpop.f32.mrb[0].mxu0
    %3769 = vdwg.mxu0
    %3770 = vmatprep.subr.mxu0 0.0
    %v3771 = vand.u32 %v1740, 4294901760
    %v3772 = vsub.f32 %v1740, %v3771
    %v3773 = vand.u32 %v3772, 4294901760
    %v3774 = vsub.f32 %v3772, %v3773
    %v3775 = vand.u32 %v3774, 4294901760
    %3776 = vmatpush1.msra.mxu0 %v3775
    %3777 = vmatprep.subr.mxu0 0.0
    %v3778 = vand.u32 %v1741, 4294901760
    %v3779 = vsub.f32 %v1741, %v3778
    %v3780 = vand.u32 %v3779, 4294901760
    %v3781 = vsub.f32 %v3779, %v3780
    %v3782 = vand.u32 %v3781, 4294901760
    %3783 = vmatpush1.msra.mxu0 %v3782
    %3784 = vmatprep.subr.mxu0 0.0
    %v3785 = vand.u32 %v1742, 4294901760
    %v3786 = vsub.f32 %v1742, %v3785
    %v3787 = vand.u32 %v3786, 4294901760
    %v3788 = vsub.f32 %v3786, %v3787
    %v3789 = vand.u32 %v3788, 4294901760
    %3790 = vmatpush1.msra.mxu0 %v3789
    %3791 = vmatprep.subr.mxu0 0.0
    %v3792 = vand.u32 %v1743, 4294901760
    %v3793 = vsub.f32 %v1743, %v3792
    %v3794 = vand.u32 %v3793, 4294901760
    %v3795 = vsub.f32 %v3793, %v3794
    %v3796 = vand.u32 %v3795, 4294901760
    %3797 = vmatpush1.msra.mxu0 %v3796
    %3798 = vmatprep.subr.mxu0 0.0
    %v3799 = vand.u32 %v1744, 4294901760
    %v3800 = vsub.f32 %v1744, %v3799
    %v3801 = vand.u32 %v3800, 4294901760
    %v3802 = vsub.f32 %v3800, %v3801
    %v3803 = vand.u32 %v3802, 4294901760
    %3804 = vmatpush1.msra.mxu0 %v3803
    %3805 = vmatprep.subr.mxu0 0.0
    %v3806 = vand.u32 %v1745, 4294901760
    %v3807 = vsub.f32 %v1745, %v3806
    %v3808 = vand.u32 %v3807, 4294901760
    %v3809 = vsub.f32 %v3807, %v3808
    %v3810 = vand.u32 %v3809, 4294901760
    %3811 = vmatpush1.msra.mxu0 %v3810
    %3812 = vmatprep.subr.mxu0 0.0
    %v3813 = vand.u32 %v1746, 4294901760
    %v3814 = vsub.f32 %v1746, %v3813
    %v3815 = vand.u32 %v3814, 4294901760
    %v3816 = vsub.f32 %v3814, %v3815
    %v3817 = vand.u32 %v3816, 4294901760
    %3818 = vmatpush1.msra.mxu0 %v3817
    %3819 = vmatprep.subr.mxu0 0.0
    %v3820 = vand.u32 %v1747, 4294901760
    %v3821 = vsub.f32 %v1747, %v3820
    %v3822 = vand.u32 %v3821, 4294901760
    %v3823 = vsub.f32 %v3821, %v3822
    %v3824 = vand.u32 %v3823, 4294901760
    %3825 = vmatpush1.msra.mxu0 %v3824
    %3826 = vmatprep.subr.mxu0 0.0
    %v3827 = vand.u32 %v1748, 4294901760
    %v3828 = vsub.f32 %v1748, %v3827
    %v3829 = vand.u32 %v3828, 4294901760
    %v3830 = vsub.f32 %v3828, %v3829
    %v3831 = vand.u32 %v3830, 4294901760
    %3832 = vmatpush1.msra.mxu0 %v3831
    %3833 = vmatprep.subr.mxu0 0.0
    %v3834 = vand.u32 %v1749, 4294901760
    %v3835 = vsub.f32 %v1749, %v3834
    %v3836 = vand.u32 %v3835, 4294901760
    %v3837 = vsub.f32 %v3835, %v3836
    %v3838 = vand.u32 %v3837, 4294901760
    %3839 = vmatpush1.msra.mxu0 %v3838
    %3840 = vmatprep.subr.mxu0 0.0
    %v3841 = vand.u32 %v1750, 4294901760
    %v3842 = vsub.f32 %v1750, %v3841
    %v3843 = vand.u32 %v3842, 4294901760
    %v3844 = vsub.f32 %v3842, %v3843
    %v3845 = vand.u32 %v3844, 4294901760
    %3846 = vmatpush1.msra.mxu0 %v3845
    %3847 = vmatprep.subr.mxu0 0.0
    %v3848 = vand.u32 %v1751, 4294901760
    %v3849 = vsub.f32 %v1751, %v3848
    %v3850 = vand.u32 %v3849, 4294901760
    %v3851 = vsub.f32 %v3849, %v3850
    %v3852 = vand.u32 %v3851, 4294901760
    %3853 = vmatpush1.msra.mxu0 %v3852
    %3854 = vmatprep.subr.mxu0 0.0
    %v3855 = vand.u32 %v1752, 4294901760
    %v3856 = vsub.f32 %v1752, %v3855
    %v3857 = vand.u32 %v3856, 4294901760
    %v3858 = vsub.f32 %v3856, %v3857
    %v3859 = vand.u32 %v3858, 4294901760
    %3860 = vmatpush1.msra.mxu0 %v3859
    %3861 = vmatprep.subr.mxu0 0.0
    %v3862 = vand.u32 %v1753, 4294901760
    %v3863 = vsub.f32 %v1753, %v3862
    %v3864 = vand.u32 %v3863, 4294901760
    %v3865 = vsub.f32 %v3863, %v3864
    %v3866 = vand.u32 %v3865, 4294901760
    %3867 = vmatpush1.msra.mxu0 %v3866
    %3868 = vmatprep.subr.mxu0 0.0
    %v3869 = vand.u32 %v1754, 4294901760
    %v3870 = vsub.f32 %v1754, %v3869
    %v3871 = vand.u32 %v3870, 4294901760
    %v3872 = vsub.f32 %v3870, %v3871
    %v3873 = vand.u32 %v3872, 4294901760
    %3874 = vmatpush1.msra.mxu0 %v3873
    %3875 = vmatprep.subr.mxu0 0.0
    %v3876 = vand.u32 %v1755, 4294901760
    %v3877 = vsub.f32 %v1755, %v3876
    %v3878 = vand.u32 %v3877, 4294901760
    %v3879 = vsub.f32 %v3877, %v3878
    %v3880 = vand.u32 %v3879, 4294901760
    %3881 = vmatpush1.msra.mxu0 %v3880
    %3882 = vmatprep.subr.mxu0 0.0
    %3883 = vmatpush1.msra.mxu0 0.0
    %3884 = vmatprep.subr.mxu0 0.0
    %3885 = vmatpush1.msra.mxu0 0.0
    %3886 = vmatprep.subr.mxu0 0.0
    %3887 = vmatpush1.msra.mxu0 0.0
    %3888 = vmatprep.subr.mxu0 0.0
    %3889 = vmatpush1.msra.mxu0 0.0
    %3890 = vmatprep.subr.mxu0 0.0
    %3891 = vmatpush1.msra.mxu0 0.0
    %3892 = vmatprep.subr.mxu0 0.0
    %3893 = vmatpush1.msra.mxu0 0.0
    %3894 = vmatprep.subr.mxu0 0.0
    %3895 = vmatpush1.msra.mxu0 0.0
    %3896 = vmatprep.subr.mxu0 0.0
    %3897 = vmatpush1.msra.mxu0 0.0
    %3898 = vmatprep.subr.mxu0 0.0
    %3899 = vmatpush1.msra.mxu0 0.0
    %3900 = vmatprep.subr.mxu0 0.0
    %3901 = vmatpush1.msra.mxu0 0.0
    %3902 = vmatprep.subr.mxu0 0.0
    %3903 = vmatpush1.msra.mxu0 0.0
    %3904 = vmatprep.subr.mxu0 0.0
    %3905 = vmatpush1.msra.mxu0 0.0
    %3906 = vmatprep.subr.mxu0 0.0
    %3907 = vmatpush1.msra.mxu0 0.0
    %3908 = vmatprep.subr.mxu0 0.0
    %3909 = vmatpush1.msra.mxu0 0.0
    %3910 = vmatprep.subr.mxu0 0.0
    %3911 = vmatpush1.msra.mxu0 0.0
    %3912 = vmatprep.subr.mxu0 0.0
    %3913 = vmatpush1.msra.mxu0 0.0
    %3914 = vmatprep.mubr.f32.mxu0 0.0
    %v3915 = vand.u32 %v1279, 4294901760
    %3916 = vmatmul.mubr.f32.gmra.mrb[0].mxu0 %v3915
    %v3917 = vpop.f32.mrb[0].mxu0
    %v3918 = vadd.f32 %v3767, %v3917
    %v3919 = vpop.f32.mrb[0].mxu0
    %3920 = vdwg.mxu0
    %3921 = vmatprep.subr.mxu0 0.0
    %v3922 = vand.u32 %v1740, 4294901760
    %v3923 = vsub.f32 %v1740, %v3922
    %3924 = vmatpush1.msra.mxu0 %v3923
    %3925 = vmatprep.subr.mxu0 0.0
    %v3926 = vand.u32 %v1741, 4294901760
    %v3927 = vsub.f32 %v1741, %v3926
    %3928 = vmatpush1.msra.mxu0 %v3927
    %3929 = vmatprep.subr.mxu0 0.0
    %v3930 = vand.u32 %v1742, 4294901760
    %v3931 = vsub.f32 %v1742, %v3930
    %3932 = vmatpush1.msra.mxu0 %v3931
    %3933 = vmatprep.subr.mxu0 0.0
    %v3934 = vand.u32 %v1743, 4294901760
    %v3935 = vsub.f32 %v1743, %v3934
    %3936 = vmatpush1.msra.mxu0 %v3935
    %3937 = vmatprep.subr.mxu0 0.0
    %v3938 = vand.u32 %v1744, 4294901760
    %v3939 = vsub.f32 %v1744, %v3938
    %3940 = vmatpush1.msra.mxu0 %v3939
    %3941 = vmatprep.subr.mxu0 0.0
    %v3942 = vand.u32 %v1745, 4294901760
    %v3943 = vsub.f32 %v1745, %v3942
    %3944 = vmatpush1.msra.mxu0 %v3943
    %3945 = vmatprep.subr.mxu0 0.0
    %v3946 = vand.u32 %v1746, 4294901760
    %v3947 = vsub.f32 %v1746, %v3946
    %3948 = vmatpush1.msra.mxu0 %v3947
    %3949 = vmatprep.subr.mxu0 0.0
    %v3950 = vand.u32 %v1747, 4294901760
    %v3951 = vsub.f32 %v1747, %v3950
    %3952 = vmatpush1.msra.mxu0 %v3951
    %3953 = vmatprep.subr.mxu0 0.0
    %v3954 = vand.u32 %v1748, 4294901760
    %v3955 = vsub.f32 %v1748, %v3954
    %3956 = vmatpush1.msra.mxu0 %v3955
    %3957 = vmatprep.subr.mxu0 0.0
    %v3958 = vand.u32 %v1749, 4294901760
    %v3959 = vsub.f32 %v1749, %v3958
    %3960 = vmatpush1.msra.mxu0 %v3959
    %3961 = vmatprep.subr.mxu0 0.0
    %v3962 = vand.u32 %v1750, 4294901760
    %v3963 = vsub.f32 %v1750, %v3962
    %3964 = vmatpush1.msra.mxu0 %v3963
    %3965 = vmatprep.subr.mxu0 0.0
    %v3966 = vand.u32 %v1751, 4294901760
    %v3967 = vsub.f32 %v1751, %v3966
    %3968 = vmatpush1.msra.mxu0 %v3967
    %3969 = vmatprep.subr.mxu0 0.0
    %v3970 = vand.u32 %v1752, 4294901760
    %v3971 = vsub.f32 %v1752, %v3970
    %3972 = vmatpush1.msra.mxu0 %v3971
    %3973 = vmatprep.subr.mxu0 0.0
    %v3974 = vand.u32 %v1753, 4294901760
    %v3975 = vsub.f32 %v1753, %v3974
    %3976 = vmatpush1.msra.mxu0 %v3975
    %3977 = vmatprep.subr.mxu0 0.0
    %v3978 = vand.u32 %v1754, 4294901760
    %v3979 = vsub.f32 %v1754, %v3978
    %3980 = vmatpush1.msra.mxu0 %v3979
    %3981 = vmatprep.subr.mxu0 0.0
    %v3982 = vand.u32 %v1755, 4294901760
    %v3983 = vsub.f32 %v1755, %v3982
    %3984 = vmatpush1.msra.mxu0 %v3983
    %3985 = vmatprep.subr.mxu0 0.0
    %3986 = vmatpush1.msra.mxu0 0.0
    %3987 = vmatprep.subr.mxu0 0.0
    %3988 = vmatpush1.msra.mxu0 0.0
    %3989 = vmatprep.subr.mxu0 0.0
    %3990 = vmatpush1.msra.mxu0 0.0
    %3991 = vmatprep.subr.mxu0 0.0
    %3992 = vmatpush1.msra.mxu0 0.0
    %3993 = vmatprep.subr.mxu0 0.0
    %3994 = vmatpush1.msra.mxu0 0.0
    %3995 = vmatprep.subr.mxu0 0.0
    %3996 = vmatpush1.msra.mxu0 0.0
    %3997 = vmatprep.subr.mxu0 0.0
    %3998 = vmatpush1.msra.mxu0 0.0
    %3999 = vmatprep.subr.mxu0 0.0
    %4000 = vmatpush1.msra.mxu0 0.0
    %4001 = vmatprep.subr.mxu0 0.0
    %4002 = vmatpush1.msra.mxu0 0.0
    %4003 = vmatprep.subr.mxu0 0.0
    %4004 = vmatpush1.msra.mxu0 0.0
    %4005 = vmatprep.subr.mxu0 0.0
    %4006 = vmatpush1.msra.mxu0 0.0
    %4007 = vmatprep.subr.mxu0 0.0
    %4008 = vmatpush1.msra.mxu0 0.0
    %4009 = vmatprep.subr.mxu0 0.0
    %4010 = vmatpush1.msra.mxu0 0.0
    %4011 = vmatprep.subr.mxu0 0.0
    %4012 = vmatpush1.msra.mxu0 0.0
    %4013 = vmatprep.subr.mxu0 0.0
    %4014 = vmatpush1.msra.mxu0 0.0
    %4015 = vmatprep.subr.mxu0 0.0
    %4016 = vmatpush1.msra.mxu0 0.0
    %4017 = vmatprep.mubr.f32.mxu0 0.0
    %v4018 = vand.u32 %v1279, 4294901760
    %v4019 = vsub.f32 %v1279, %v4018
    %4020 = vmatmul.mubr.f32.gmra.mrb[0].mxu0 %v4019
    %v4021 = vpop.f32.mrb[0].mxu0
    %v4022 = vadd.f32 %v3918, %v4021
    %v4023 = vpop.f32.mrb[0].mxu0
    %4024 = vdwg.mxu0
    %4025 = vmatprep.subr.mxu0 0.0
    %v4026 = vand.u32 %v1740, 4294901760
    %4027 = vmatpush1.msra.mxu0 %v4026
    %4028 = vmatprep.subr.mxu0 0.0
    %v4029 = vand.u32 %v1741, 4294901760
    %4030 = vmatpush1.msra.mxu0 %v4029
    %4031 = vmatprep.subr.mxu0 0.0
    %v4032 = vand.u32 %v1742, 4294901760
    %4033 = vmatpush1.msra.mxu0 %v4032
    %4034 = vmatprep.subr.mxu0 0.0
    %v4035 = vand.u32 %v1743, 4294901760
    %4036 = vmatpush1.msra.mxu0 %v4035
    %4037 = vmatprep.subr.mxu0 0.0
    %v4038 = vand.u32 %v1744, 4294901760
    %4039 = vmatpush1.msra.mxu0 %v4038
    %4040 = vmatprep.subr.mxu0 0.0
    %v4041 = vand.u32 %v1745, 4294901760
    %4042 = vmatpush1.msra.mxu0 %v4041
    %4043 = vmatprep.subr.mxu0 0.0
    %v4044 = vand.u32 %v1746, 4294901760
    %4045 = vmatpush1.msra.mxu0 %v4044
    %4046 = vmatprep.subr.mxu0 0.0
    %v4047 = vand.u32 %v1747, 4294901760
    %4048 = vmatpush1.msra.mxu0 %v4047
    %4049 = vmatprep.subr.mxu0 0.0
    %v4050 = vand.u32 %v1748, 4294901760
    %4051 = vmatpush1.msra.mxu0 %v4050
    %4052 = vmatprep.subr.mxu0 0.0
    %v4053 = vand.u32 %v1749, 4294901760
    %4054 = vmatpush1.msra.mxu0 %v4053
    %4055 = vmatprep.subr.mxu0 0.0
    %v4056 = vand.u32 %v1750, 4294901760
    %4057 = vmatpush1.msra.mxu0 %v4056
    %4058 = vmatprep.subr.mxu0 0.0
    %v4059 = vand.u32 %v1751, 4294901760
    %4060 = vmatpush1.msra.mxu0 %v4059
    %4061 = vmatprep.subr.mxu0 0.0
    %v4062 = vand.u32 %v1752, 4294901760
    %4063 = vmatpush1.msra.mxu0 %v4062
    %4064 = vmatprep.subr.mxu0 0.0
    %v4065 = vand.u32 %v1753, 4294901760
    %4066 = vmatpush1.msra.mxu0 %v4065
    %4067 = vmatprep.subr.mxu0 0.0
    %v4068 = vand.u32 %v1754, 4294901760
    %4069 = vmatpush1.msra.mxu0 %v4068
    %4070 = vmatprep.subr.mxu0 0.0
    %v4071 = vand.u32 %v1755, 4294901760
    %4072 = vmatpush1.msra.mxu0 %v4071
    %4073 = vmatprep.subr.mxu0 0.0
    %4074 = vmatpush1.msra.mxu0 0.0
    %4075 = vmatprep.subr.mxu0 0.0
    %4076 = vmatpush1.msra.mxu0 0.0
    %4077 = vmatprep.subr.mxu0 0.0
    %4078 = vmatpush1.msra.mxu0 0.0
    %4079 = vmatprep.subr.mxu0 0.0
    %4080 = vmatpush1.msra.mxu0 0.0
    %4081 = vmatprep.subr.mxu0 0.0
    %4082 = vmatpush1.msra.mxu0 0.0
    %4083 = vmatprep.subr.mxu0 0.0
    %4084 = vmatpush1.msra.mxu0 0.0
    %4085 = vmatprep.subr.mxu0 0.0
    %4086 = vmatpush1.msra.mxu0 0.0
    %4087 = vmatprep.subr.mxu0 0.0
    %4088 = vmatpush1.msra.mxu0 0.0
    %4089 = vmatprep.subr.mxu0 0.0
    %4090 = vmatpush1.msra.mxu0 0.0
    %4091 = vmatprep.subr.mxu0 0.0
    %4092 = vmatpush1.msra.mxu0 0.0
    %4093 = vmatprep.subr.mxu0 0.0
    %4094 = vmatpush1.msra.mxu0 0.0
    %4095 = vmatprep.subr.mxu0 0.0
    %4096 = vmatpush1.msra.mxu0 0.0
    %4097 = vmatprep.subr.mxu0 0.0
    %4098 = vmatpush1.msra.mxu0 0.0
    %4099 = vmatprep.subr.mxu0 0.0
    %4100 = vmatpush1.msra.mxu0 0.0
    %4101 = vmatprep.subr.mxu0 0.0
    %4102 = vmatpush1.msra.mxu0 0.0
    %4103 = vmatprep.subr.mxu0 0.0
    %4104 = vmatpush1.msra.mxu0 0.0
    %4105 = vmatprep.mubr.f32.mxu0 0.0
    %v4106 = vand.u32 %v1279, 4294901760
    %v4107 = vsub.f32 %v1279, %v4106
    %v4108 = vand.u32 %v4107, 4294901760
    %4109 = vmatmul.mubr.f32.gmra.mrb[0].mxu0 %v4108
    %v4110 = vpop.f32.mrb[0].mxu0
    %v4111 = vadd.f32 %v4022, %v4110
    %v4112 = vpop.f32.mrb[0].mxu0
    %4113 = vdwg.mxu0
    %4114 = vmatprep.subr.mxu0 0.0
    %v4115 = vand.u32 %v1740, 4294901760
    %v4116 = vsub.f32 %v1740, %v4115
    %v4117 = vand.u32 %v4116, 4294901760
    %4118 = vmatpush1.msra.mxu0 %v4117
    %4119 = vmatprep.subr.mxu0 0.0
    %v4120 = vand.u32 %v1741, 4294901760
    %v4121 = vsub.f32 %v1741, %v4120
    %v4122 = vand.u32 %v4121, 4294901760
    %4123 = vmatpush1.msra.mxu0 %v4122
    %4124 = vmatprep.subr.mxu0 0.0
    %v4125 = vand.u32 %v1742, 4294901760
    %v4126 = vsub.f32 %v1742, %v4125
    %v4127 = vand.u32 %v4126, 4294901760
    %4128 = vmatpush1.msra.mxu0 %v4127
    %4129 = vmatprep.subr.mxu0 0.0
    %v4130 = vand.u32 %v1743, 4294901760
    %v4131 = vsub.f32 %v1743, %v4130
    %v4132 = vand.u32 %v4131, 4294901760
    %4133 = vmatpush1.msra.mxu0 %v4132
    %4134 = vmatprep.subr.mxu0 0.0
    %v4135 = vand.u32 %v1744, 4294901760
    %v4136 = vsub.f32 %v1744, %v4135
    %v4137 = vand.u32 %v4136, 4294901760
    %4138 = vmatpush1.msra.mxu0 %v4137
    %4139 = vmatprep.subr.mxu0 0.0
    %v4140 = vand.u32 %v1745, 4294901760
    %v4141 = vsub.f32 %v1745, %v4140
    %v4142 = vand.u32 %v4141, 4294901760
    %4143 = vmatpush1.msra.mxu0 %v4142
    %4144 = vmatprep.subr.mxu0 0.0
    %v4145 = vand.u32 %v1746, 4294901760
    %v4146 = vsub.f32 %v1746, %v4145
    %v4147 = vand.u32 %v4146, 4294901760
    %4148 = vmatpush1.msra.mxu0 %v4147
    %4149 = vmatprep.subr.mxu0 0.0
    %v4150 = vand.u32 %v1747, 4294901760
    %v4151 = vsub.f32 %v1747, %v4150
    %v4152 = vand.u32 %v4151, 4294901760
    %4153 = vmatpush1.msra.mxu0 %v4152
    %4154 = vmatprep.subr.mxu0 0.0
    %v4155 = vand.u32 %v1748, 4294901760
    %v4156 = vsub.f32 %v1748, %v4155
    %v4157 = vand.u32 %v4156, 4294901760
    %4158 = vmatpush1.msra.mxu0 %v4157
    %4159 = vmatprep.subr.mxu0 0.0
    %v4160 = vand.u32 %v1749, 4294901760
    %v4161 = vsub.f32 %v1749, %v4160
    %v4162 = vand.u32 %v4161, 4294901760
    %4163 = vmatpush1.msra.mxu0 %v4162
    %4164 = vmatprep.subr.mxu0 0.0
    %v4165 = vand.u32 %v1750, 4294901760
    %v4166 = vsub.f32 %v1750, %v4165
    %v4167 = vand.u32 %v4166, 4294901760
    %4168 = vmatpush1.msra.mxu0 %v4167
    %4169 = vmatprep.subr.mxu0 0.0
    %v4170 = vand.u32 %v1751, 4294901760
    %v4171 = vsub.f32 %v1751, %v4170
    %v4172 = vand.u32 %v4171, 4294901760
    %4173 = vmatpush1.msra.mxu0 %v4172
    %4174 = vmatprep.subr.mxu0 0.0
    %v4175 = vand.u32 %v1752, 4294901760
    %v4176 = vsub.f32 %v1752, %v4175
    %v4177 = vand.u32 %v4176, 4294901760
    %4178 = vmatpush1.msra.mxu0 %v4177
    %4179 = vmatprep.subr.mxu0 0.0
    %v4180 = vand.u32 %v1753, 4294901760
    %v4181 = vsub.f32 %v1753, %v4180
    %v4182 = vand.u32 %v4181, 4294901760
    %4183 = vmatpush1.msra.mxu0 %v4182
    %4184 = vmatprep.subr.mxu0 0.0
    %v4185 = vand.u32 %v1754, 4294901760
    %v4186 = vsub.f32 %v1754, %v4185
    %v4187 = vand.u32 %v4186, 4294901760
    %4188 = vmatpush1.msra.mxu0 %v4187
    %4189 = vmatprep.subr.mxu0 0.0
    %v4190 = vand.u32 %v1755, 4294901760
    %v4191 = vsub.f32 %v1755, %v4190
    %v4192 = vand.u32 %v4191, 4294901760
    %4193 = vmatpush1.msra.mxu0 %v4192
    %4194 = vmatprep.subr.mxu0 0.0
    %4195 = vmatpush1.msra.mxu0 0.0
    %4196 = vmatprep.subr.mxu0 0.0
    %4197 = vmatpush1.msra.mxu0 0.0
    %4198 = vmatprep.subr.mxu0 0.0
    %4199 = vmatpush1.msra.mxu0 0.0
    %4200 = vmatprep.subr.mxu0 0.0
    %4201 = vmatpush1.msra.mxu0 0.0
    %4202 = vmatprep.subr.mxu0 0.0
    %4203 = vmatpush1.msra.mxu0 0.0
    %4204 = vmatprep.subr.mxu0 0.0
    %4205 = vmatpush1.msra.mxu0 0.0
    %4206 = vmatprep.subr.mxu0 0.0
    %4207 = vmatpush1.msra.mxu0 0.0
    %4208 = vmatprep.subr.mxu0 0.0
    %4209 = vmatpush1.msra.mxu0 0.0
    %4210 = vmatprep.subr.mxu0 0.0
    %4211 = vmatpush1.msra.mxu0 0.0
    %4212 = vmatprep.subr.mxu0 0.0
    %4213 = vmatpush1.msra.mxu0 0.0
    %4214 = vmatprep.subr.mxu0 0.0
    %4215 = vmatpush1.msra.mxu0 0.0
    %4216 = vmatprep.subr.mxu0 0.0
    %4217 = vmatpush1.msra.mxu0 0.0
    %4218 = vmatprep.subr.mxu0 0.0
    %4219 = vmatpush1.msra.mxu0 0.0
    %4220 = vmatprep.subr.mxu0 0.0
    %4221 = vmatpush1.msra.mxu0 0.0
    %4222 = vmatprep.subr.mxu0 0.0
    %4223 = vmatpush1.msra.mxu0 0.0
    %4224 = vmatprep.subr.mxu0 0.0
    %4225 = vmatpush1.msra.mxu0 0.0
    %4226 = vmatprep.mubr.f32.mxu0 0.0
    %v4227 = vand.u32 %v1279, 4294901760
    %4228 = vmatmul.mubr.f32.gmra.mrb[0].mxu0 %v4227
    %v4229 = vpop.f32.mrb[0].mxu0
    %v4230 = vadd.f32 %v4111, %v4229
    %v4231 = vpop.f32.mrb[0].mxu0
    %4232 = vdwg.mxu0
    %4233 = vmatprep.subr.mxu0 0.0
    %v4234 = vand.u32 %v1740, 4294901760
    %4235 = vmatpush1.msra.mxu0 %v4234
    %4236 = vmatprep.subr.mxu0 0.0
    %v4237 = vand.u32 %v1741, 4294901760
    %4238 = vmatpush1.msra.mxu0 %v4237
    %4239 = vmatprep.subr.mxu0 0.0
    %v4240 = vand.u32 %v1742, 4294901760
    %4241 = vmatpush1.msra.mxu0 %v4240
    %4242 = vmatprep.subr.mxu0 0.0
    %v4243 = vand.u32 %v1743, 4294901760
    %4244 = vmatpush1.msra.mxu0 %v4243
    %4245 = vmatprep.subr.mxu0 0.0
    %v4246 = vand.u32 %v1744, 4294901760
    %4247 = vmatpush1.msra.mxu0 %v4246
    %4248 = vmatprep.subr.mxu0 0.0
    %v4249 = vand.u32 %v1745, 4294901760
    %4250 = vmatpush1.msra.mxu0 %v4249
    %4251 = vmatprep.subr.mxu0 0.0
    %v4252 = vand.u32 %v1746, 4294901760
    %4253 = vmatpush1.msra.mxu0 %v4252
    %4254 = vmatprep.subr.mxu0 0.0
    %v4255 = vand.u32 %v1747, 4294901760
    %4256 = vmatpush1.msra.mxu0 %v4255
    %4257 = vmatprep.subr.mxu0 0.0
    %v4258 = vand.u32 %v1748, 4294901760
    %4259 = vmatpush1.msra.mxu0 %v4258
    %4260 = vmatprep.subr.mxu0 0.0
    %v4261 = vand.u32 %v1749, 4294901760
    %4262 = vmatpush1.msra.mxu0 %v4261
    %4263 = vmatprep.subr.mxu0 0.0
    %v4264 = vand.u32 %v1750, 4294901760
    %4265 = vmatpush1.msra.mxu0 %v4264
    %4266 = vmatprep.subr.mxu0 0.0
    %v4267 = vand.u32 %v1751, 4294901760
    %4268 = vmatpush1.msra.mxu0 %v4267
    %4269 = vmatprep.subr.mxu0 0.0
    %v4270 = vand.u32 %v1752, 4294901760
    %4271 = vmatpush1.msra.mxu0 %v4270
    %4272 = vmatprep.subr.mxu0 0.0
    %v4273 = vand.u32 %v1753, 4294901760
    %4274 = vmatpush1.msra.mxu0 %v4273
    %4275 = vmatprep.subr.mxu0 0.0
    %v4276 = vand.u32 %v1754, 4294901760
    %4277 = vmatpush1.msra.mxu0 %v4276
    %4278 = vmatprep.subr.mxu0 0.0
    %v4279 = vand.u32 %v1755, 4294901760
    %4280 = vmatpush1.msra.mxu0 %v4279
    %4281 = vmatprep.subr.mxu0 0.0
    %4282 = vmatpush1.msra.mxu0 0.0
    %4283 = vmatprep.subr.mxu0 0.0
    %4284 = vmatpush1.msra.mxu0 0.0
    %4285 = vmatprep.subr.mxu0 0.0
    %4286 = vmatpush1.msra.mxu0 0.0
    %4287 = vmatprep.subr.mxu0 0.0
    %4288 = vmatpush1.msra.mxu0 0.0
    %4289 = vmatprep.subr.mxu0 0.0
    %4290 = vmatpush1.msra.mxu0 0.0
    %4291 = vmatprep.subr.mxu0 0.0
    %4292 = vmatpush1.msra.mxu0 0.0
    %4293 = vmatprep.subr.mxu0 0.0
    %4294 = vmatpush1.msra.mxu0 0.0
    %4295 = vmatprep.subr.mxu0 0.0
    %4296 = vmatpush1.msra.mxu0 0.0
    %4297 = vmatprep.subr.mxu0 0.0
    %4298 = vmatpush1.msra.mxu0 0.0
    %4299 = vmatprep.subr.mxu0 0.0
    %4300 = vmatpush1.msra.mxu0 0.0
    %4301 = vmatprep.subr.mxu0 0.0
    %4302 = vmatpush1.msra.mxu0 0.0
    %4303 = vmatprep.subr.mxu0 0.0
    %4304 = vmatpush1.msra.mxu0 0.0
    %4305 = vmatprep.subr.mxu0 0.0
    %4306 = vmatpush1.msra.mxu0 0.0
    %4307 = vmatprep.subr.mxu0 0.0
    %4308 = vmatpush1.msra.mxu0 0.0
    %4309 = vmatprep.subr.mxu0 0.0
    %4310 = vmatpush1.msra.mxu0 0.0
    %4311 = vmatprep.subr.mxu0 0.0
    %4312 = vmatpush1.msra.mxu0 0.0
    %4313 = vmatprep.mubr.f32.mxu0 0.0
    %v4314 = vand.u32 %v1279, 4294901760
    %4315 = vmatmul.mubr.f32.gmra.mrb[0].mxu0 %v4314
    %v4316 = vpop.f32.mrb[0].mxu0
    %v4317 = vadd.f32 %v4230, %v4316
    %v4318 = vpop.f32.mrb[0].mxu0
    %4319 = vdwg.mxu0
    %4320 = vmatprep.subr.mxu0 0.0
    %v4321 = vand.u32 %v1740, 4294901760
    %4322 = vmatpush1.msra.mxu0 %v4321
    %4323 = vmatprep.subr.mxu0 0.0
    %v4324 = vand.u32 %v1741, 4294901760
    %4325 = vmatpush1.msra.mxu0 %v4324
    %4326 = vmatprep.subr.mxu0 0.0
    %v4327 = vand.u32 %v1742, 4294901760
    %4328 = vmatpush1.msra.mxu0 %v4327
    %4329 = vmatprep.subr.mxu0 0.0
    %v4330 = vand.u32 %v1743, 4294901760
    %4331 = vmatpush1.msra.mxu0 %v4330
    %4332 = vmatprep.subr.mxu0 0.0
    %v4333 = vand.u32 %v1744, 4294901760
    %4334 = vmatpush1.msra.mxu0 %v4333
    %4335 = vmatprep.subr.mxu0 0.0
    %v4336 = vand.u32 %v1745, 4294901760
    %4337 = vmatpush1.msra.mxu0 %v4336
    %4338 = vmatprep.subr.mxu0 0.0
    %v4339 = vand.u32 %v1746, 4294901760
    %4340 = vmatpush1.msra.mxu0 %v4339
    %4341 = vmatprep.subr.mxu0 0.0
    %v4342 = vand.u32 %v1747, 4294901760
    %4343 = vmatpush1.msra.mxu0 %v4342
    %4344 = vmatprep.subr.mxu0 0.0
    %v4345 = vand.u32 %v1748, 4294901760
    %4346 = vmatpush1.msra.mxu0 %v4345
    %4347 = vmatprep.subr.mxu0 0.0
    %v4348 = vand.u32 %v1749, 4294901760
    %4349 = vmatpush1.msra.mxu0 %v4348
    %4350 = vmatprep.subr.mxu0 0.0
    %v4351 = vand.u32 %v1750, 4294901760
    %4352 = vmatpush1.msra.mxu0 %v4351
    %4353 = vmatprep.subr.mxu0 0.0
    %v4354 = vand.u32 %v1751, 4294901760
    %4355 = vmatpush1.msra.mxu0 %v4354
    %4356 = vmatprep.subr.mxu0 0.0
    %v4357 = vand.u32 %v1752, 4294901760
    %4358 = vmatpush1.msra.mxu0 %v4357
    %4359 = vmatprep.subr.mxu0 0.0
    %v4360 = vand.u32 %v1753, 4294901760
    %4361 = vmatpush1.msra.mxu0 %v4360
    %4362 = vmatprep.subr.mxu0 0.0
    %v4363 = vand.u32 %v1754, 4294901760
    %4364 = vmatpush1.msra.mxu0 %v4363
    %4365 = vmatprep.subr.mxu0 0.0
    %v4366 = vand.u32 %v1755, 4294901760
    %4367 = vmatpush1.msra.mxu0 %v4366
    %4368 = vmatprep.subr.mxu0 0.0
    %4369 = vmatpush1.msra.mxu0 0.0
    %4370 = vmatprep.subr.mxu0 0.0
    %4371 = vmatpush1.msra.mxu0 0.0
    %4372 = vmatprep.subr.mxu0 0.0
    %4373 = vmatpush1.msra.mxu0 0.0
    %4374 = vmatprep.subr.mxu0 0.0
    %4375 = vmatpush1.msra.mxu0 0.0
    %4376 = vmatprep.subr.mxu0 0.0
    %4377 = vmatpush1.msra.mxu0 0.0
    %4378 = vmatprep.subr.mxu0 0.0
    %4379 = vmatpush1.msra.mxu0 0.0
    %4380 = vmatprep.subr.mxu0 0.0
    %4381 = vmatpush1.msra.mxu0 0.0
    %4382 = vmatprep.subr.mxu0 0.0
    %4383 = vmatpush1.msra.mxu0 0.0
    %4384 = vmatprep.subr.mxu0 0.0
    %4385 = vmatpush1.msra.mxu0 0.0
    %4386 = vmatprep.subr.mxu0 0.0
    %4387 = vmatpush1.msra.mxu0 0.0
    %4388 = vmatprep.subr.mxu0 0.0
    %4389 = vmatpush1.msra.mxu0 0.0
    %4390 = vmatprep.subr.mxu0 0.0
    %4391 = vmatpush1.msra.mxu0 0.0
    %4392 = vmatprep.subr.mxu0 0.0
    %4393 = vmatpush1.msra.mxu0 0.0
    %4394 = vmatprep.subr.mxu0 0.0
    %4395 = vmatpush1.msra.mxu0 0.0
    %4396 = vmatprep.subr.mxu0 0.0
    %4397 = vmatpush1.msra.mxu0 0.0
    %4398 = vmatprep.subr.mxu0 0.0
    %4399 = vmatpush1.msra.mxu0 0.0
    %4400 = vmatprep.mubr.f32.mxu0 0.0
    %v4401 = vand.u32 %v1737, 4294901760
    %v4402 = vsub.f32 %v1737, %v4401
    %v4403 = vand.u32 %v4402, 4294901760
    %v4404 = vsub.f32 %v4402, %v4403
    %v4405 = vand.u32 %v4404, 4294901760
    %4406 = vmatmul.mubr.f32.gmra.mrb[0].mxu0 %v4405
    %v4407 = vpop.f32.mrb[0].mxu0
    %v4408 = vadd.f32 0.0, %v4407
    %v4409 = vpop.f32.mrb[0].mxu0
    %4410 = vdwg.mxu0
    %4411 = vmatprep.subr.mxu0 0.0
    %v4412 = vand.u32 %v1740, 4294901760
    %v4413 = vsub.f32 %v1740, %v4412
    %v4414 = vand.u32 %v4413, 4294901760
    %v4415 = vsub.f32 %v4413, %v4414
    %v4416 = vand.u32 %v4415, 4294901760
    %4417 = vmatpush1.msra.mxu0 %v4416
    %4418 = vmatprep.subr.mxu0 0.0
    %v4419 = vand.u32 %v1741, 4294901760
    %v4420 = vsub.f32 %v1741, %v4419
    %v4421 = vand.u32 %v4420, 4294901760
    %v4422 = vsub.f32 %v4420, %v4421
    %v4423 = vand.u32 %v4422, 4294901760
    %4424 = vmatpush1.msra.mxu0 %v4423
    %4425 = vmatprep.subr.mxu0 0.0
    %v4426 = vand.u32 %v1742, 4294901760
    %v4427 = vsub.f32 %v1742, %v4426
    %v4428 = vand.u32 %v4427, 4294901760
    %v4429 = vsub.f32 %v4427, %v4428
    %v4430 = vand.u32 %v4429, 4294901760
    %4431 = vmatpush1.msra.mxu0 %v4430
    %4432 = vmatprep.subr.mxu0 0.0
    %v4433 = vand.u32 %v1743, 4294901760
    %v4434 = vsub.f32 %v1743, %v4433
    %v4435 = vand.u32 %v4434, 4294901760
    %v4436 = vsub.f32 %v4434, %v4435
    %v4437 = vand.u32 %v4436, 4294901760
    %4438 = vmatpush1.msra.mxu0 %v4437
    %4439 = vmatprep.subr.mxu0 0.0
    %v4440 = vand.u32 %v1744, 4294901760
    %v4441 = vsub.f32 %v1744, %v4440
    %v4442 = vand.u32 %v4441, 4294901760
    %v4443 = vsub.f32 %v4441, %v4442
    %v4444 = vand.u32 %v4443, 4294901760
    %4445 = vmatpush1.msra.mxu0 %v4444
    %4446 = vmatprep.subr.mxu0 0.0
    %v4447 = vand.u32 %v1745, 4294901760
    %v4448 = vsub.f32 %v1745, %v4447
    %v4449 = vand.u32 %v4448, 4294901760
    %v4450 = vsub.f32 %v4448, %v4449
    %v4451 = vand.u32 %v4450, 4294901760
    %4452 = vmatpush1.msra.mxu0 %v4451
    %4453 = vmatprep.subr.mxu0 0.0
    %v4454 = vand.u32 %v1746, 4294901760
    %v4455 = vsub.f32 %v1746, %v4454
    %v4456 = vand.u32 %v4455, 4294901760
    %v4457 = vsub.f32 %v4455, %v4456
    %v4458 = vand.u32 %v4457, 4294901760
    %4459 = vmatpush1.msra.mxu0 %v4458
    %4460 = vmatprep.subr.mxu0 0.0
    %v4461 = vand.u32 %v1747, 4294901760
    %v4462 = vsub.f32 %v1747, %v4461
    %v4463 = vand.u32 %v4462, 4294901760
    %v4464 = vsub.f32 %v4462, %v4463
    %v4465 = vand.u32 %v4464, 4294901760
    %4466 = vmatpush1.msra.mxu0 %v4465
    %4467 = vmatprep.subr.mxu0 0.0
    %v4468 = vand.u32 %v1748, 4294901760
    %v4469 = vsub.f32 %v1748, %v4468
    %v4470 = vand.u32 %v4469, 4294901760
    %v4471 = vsub.f32 %v4469, %v4470
    %v4472 = vand.u32 %v4471, 4294901760
    %4473 = vmatpush1.msra.mxu0 %v4472
    %4474 = vmatprep.subr.mxu0 0.0
    %v4475 = vand.u32 %v1749, 4294901760
    %v4476 = vsub.f32 %v1749, %v4475
    %v4477 = vand.u32 %v4476, 4294901760
    %v4478 = vsub.f32 %v4476, %v4477
    %v4479 = vand.u32 %v4478, 4294901760
    %4480 = vmatpush1.msra.mxu0 %v4479
    %4481 = vmatprep.subr.mxu0 0.0
    %v4482 = vand.u32 %v1750, 4294901760
    %v4483 = vsub.f32 %v1750, %v4482
    %v4484 = vand.u32 %v4483, 4294901760
    %v4485 = vsub.f32 %v4483, %v4484
    %v4486 = vand.u32 %v4485, 4294901760
    %4487 = vmatpush1.msra.mxu0 %v4486
    %4488 = vmatprep.subr.mxu0 0.0
    %v4489 = vand.u32 %v1751, 4294901760
    %v4490 = vsub.f32 %v1751, %v4489
    %v4491 = vand.u32 %v4490, 4294901760
    %v4492 = vsub.f32 %v4490, %v4491
    %v4493 = vand.u32 %v4492, 4294901760
    %4494 = vmatpush1.msra.mxu0 %v4493
    %4495 = vmatprep.subr.mxu0 0.0
    %v4496 = vand.u32 %v1752, 4294901760
    %v4497 = vsub.f32 %v1752, %v4496
    %v4498 = vand.u32 %v4497, 4294901760
    %v4499 = vsub.f32 %v4497, %v4498
    %v4500 = vand.u32 %v4499, 4294901760
    %4501 = vmatpush1.msra.mxu0 %v4500
    %4502 = vmatprep.subr.mxu0 0.0
    %v4503 = vand.u32 %v1753, 4294901760
    %v4504 = vsub.f32 %v1753, %v4503
    %v4505 = vand.u32 %v4504, 4294901760
    %v4506 = vsub.f32 %v4504, %v4505
    %v4507 = vand.u32 %v4506, 4294901760
    %4508 = vmatpush1.msra.mxu0 %v4507
    %4509 = vmatprep.subr.mxu0 0.0
    %v4510 = vand.u32 %v1754, 4294901760
    %v4511 = vsub.f32 %v1754, %v4510
    %v4512 = vand.u32 %v4511, 4294901760
    %v4513 = vsub.f32 %v4511, %v4512
    %v4514 = vand.u32 %v4513, 4294901760
    %4515 = vmatpush1.msra.mxu0 %v4514
    %4516 = vmatprep.subr.mxu0 0.0
    %v4517 = vand.u32 %v1755, 4294901760
    %v4518 = vsub.f32 %v1755, %v4517
    %v4519 = vand.u32 %v4518, 4294901760
    %v4520 = vsub.f32 %v4518, %v4519
    %v4521 = vand.u32 %v4520, 4294901760
    %4522 = vmatpush1.msra.mxu0 %v4521
    %4523 = vmatprep.subr.mxu0 0.0
    %4524 = vmatpush1.msra.mxu0 0.0
    %4525 = vmatprep.subr.mxu0 0.0
    %4526 = vmatpush1.msra.mxu0 0.0
    %4527 = vmatprep.subr.mxu0 0.0
    %4528 = vmatpush1.msra.mxu0 0.0
    %4529 = vmatprep.subr.mxu0 0.0
    %4530 = vmatpush1.msra.mxu0 0.0
    %4531 = vmatprep.subr.mxu0 0.0
    %4532 = vmatpush1.msra.mxu0 0.0
    %4533 = vmatprep.subr.mxu0 0.0
    %4534 = vmatpush1.msra.mxu0 0.0
    %4535 = vmatprep.subr.mxu0 0.0
    %4536 = vmatpush1.msra.mxu0 0.0
    %4537 = vmatprep.subr.mxu0 0.0
    %4538 = vmatpush1.msra.mxu0 0.0
    %4539 = vmatprep.subr.mxu0 0.0
    %4540 = vmatpush1.msra.mxu0 0.0
    %4541 = vmatprep.subr.mxu0 0.0
    %4542 = vmatpush1.msra.mxu0 0.0
    %4543 = vmatprep.subr.mxu0 0.0
    %4544 = vmatpush1.msra.mxu0 0.0
    %4545 = vmatprep.subr.mxu0 0.0
    %4546 = vmatpush1.msra.mxu0 0.0
    %4547 = vmatprep.subr.mxu0 0.0
    %4548 = vmatpush1.msra.mxu0 0.0
    %4549 = vmatprep.subr.mxu0 0.0
    %4550 = vmatpush1.msra.mxu0 0.0
    %4551 = vmatprep.subr.mxu0 0.0
    %4552 = vmatpush1.msra.mxu0 0.0
    %4553 = vmatprep.subr.mxu0 0.0
    %4554 = vmatpush1.msra.mxu0 0.0
    %4555 = vmatprep.mubr.f32.mxu0 0.0
    %v4556 = vand.u32 %v1737, 4294901760
    %4557 = vmatmul.mubr.f32.gmra.mrb[0].mxu0 %v4556
    %v4558 = vpop.f32.mrb[0].mxu0
    %v4559 = vadd.f32 %v4408, %v4558
    %v4560 = vpop.f32.mrb[0].mxu0
    %4561 = vdwg.mxu0
    %4562 = vmatprep.subr.mxu0 0.0
    %v4563 = vand.u32 %v1740, 4294901760
    %v4564 = vsub.f32 %v1740, %v4563
    %4565 = vmatpush1.msra.mxu0 %v4564
    %4566 = vmatprep.subr.mxu0 0.0
    %v4567 = vand.u32 %v1741, 4294901760
    %v4568 = vsub.f32 %v1741, %v4567
    %4569 = vmatpush1.msra.mxu0 %v4568
    %4570 = vmatprep.subr.mxu0 0.0
    %v4571 = vand.u32 %v1742, 4294901760
    %v4572 = vsub.f32 %v1742, %v4571
    %4573 = vmatpush1.msra.mxu0 %v4572
    %4574 = vmatprep.subr.mxu0 0.0
    %v4575 = vand.u32 %v1743, 4294901760
    %v4576 = vsub.f32 %v1743, %v4575
    %4577 = vmatpush1.msra.mxu0 %v4576
    %4578 = vmatprep.subr.mxu0 0.0
    %v4579 = vand.u32 %v1744, 4294901760
    %v4580 = vsub.f32 %v1744, %v4579
    %4581 = vmatpush1.msra.mxu0 %v4580
    %4582 = vmatprep.subr.mxu0 0.0
    %v4583 = vand.u32 %v1745, 4294901760
    %v4584 = vsub.f32 %v1745, %v4583
    %4585 = vmatpush1.msra.mxu0 %v4584
    %4586 = vmatprep.subr.mxu0 0.0
    %v4587 = vand.u32 %v1746, 4294901760
    %v4588 = vsub.f32 %v1746, %v4587
    %4589 = vmatpush1.msra.mxu0 %v4588
    %4590 = vmatprep.subr.mxu0 0.0
    %v4591 = vand.u32 %v1747, 4294901760
    %v4592 = vsub.f32 %v1747, %v4591
    %4593 = vmatpush1.msra.mxu0 %v4592
    %4594 = vmatprep.subr.mxu0 0.0
    %v4595 = vand.u32 %v1748, 4294901760
    %v4596 = vsub.f32 %v1748, %v4595
    %4597 = vmatpush1.msra.mxu0 %v4596
    %4598 = vmatprep.subr.mxu0 0.0
    %v4599 = vand.u32 %v1749, 4294901760
    %v4600 = vsub.f32 %v1749, %v4599
    %4601 = vmatpush1.msra.mxu0 %v4600
    %4602 = vmatprep.subr.mxu0 0.0
    %v4603 = vand.u32 %v1750, 4294901760
    %v4604 = vsub.f32 %v1750, %v4603
    %4605 = vmatpush1.msra.mxu0 %v4604
    %4606 = vmatprep.subr.mxu0 0.0
    %v4607 = vand.u32 %v1751, 4294901760
    %v4608 = vsub.f32 %v1751, %v4607
    %4609 = vmatpush1.msra.mxu0 %v4608
    %4610 = vmatprep.subr.mxu0 0.0
    %v4611 = vand.u32 %v1752, 4294901760
    %v4612 = vsub.f32 %v1752, %v4611
    %4613 = vmatpush1.msra.mxu0 %v4612
    %4614 = vmatprep.subr.mxu0 0.0
    %v4615 = vand.u32 %v1753, 4294901760
    %v4616 = vsub.f32 %v1753, %v4615
    %4617 = vmatpush1.msra.mxu0 %v4616
    %4618 = vmatprep.subr.mxu0 0.0
    %v4619 = vand.u32 %v1754, 4294901760
    %v4620 = vsub.f32 %v1754, %v4619
    %4621 = vmatpush1.msra.mxu0 %v4620
    %4622 = vmatprep.subr.mxu0 0.0
    %v4623 = vand.u32 %v1755, 4294901760
    %v4624 = vsub.f32 %v1755, %v4623
    %4625 = vmatpush1.msra.mxu0 %v4624
    %4626 = vmatprep.subr.mxu0 0.0
    %4627 = vmatpush1.msra.mxu0 0.0
    %4628 = vmatprep.subr.mxu0 0.0
    %4629 = vmatpush1.msra.mxu0 0.0
    %4630 = vmatprep.subr.mxu0 0.0
    %4631 = vmatpush1.msra.mxu0 0.0
    %4632 = vmatprep.subr.mxu0 0.0
    %4633 = vmatpush1.msra.mxu0 0.0
    %4634 = vmatprep.subr.mxu0 0.0
    %4635 = vmatpush1.msra.mxu0 0.0
    %4636 = vmatprep.subr.mxu0 0.0
    %4637 = vmatpush1.msra.mxu0 0.0
    %4638 = vmatprep.subr.mxu0 0.0
    %4639 = vmatpush1.msra.mxu0 0.0
    %4640 = vmatprep.subr.mxu0 0.0
    %4641 = vmatpush1.msra.mxu0 0.0
    %4642 = vmatprep.subr.mxu0 0.0
    %4643 = vmatpush1.msra.mxu0 0.0
    %4644 = vmatprep.subr.mxu0 0.0
    %4645 = vmatpush1.msra.mxu0 0.0
    %4646 = vmatprep.subr.mxu0 0.0
    %4647 = vmatpush1.msra.mxu0 0.0
    %4648 = vmatprep.subr.mxu0 0.0
    %4649 = vmatpush1.msra.mxu0 0.0
    %4650 = vmatprep.subr.mxu0 0.0
    %4651 = vmatpush1.msra.mxu0 0.0
    %4652 = vmatprep.subr.mxu0 0.0
    %4653 = vmatpush1.msra.mxu0 0.0
    %4654 = vmatprep.subr.mxu0 0.0
    %4655 = vmatpush1.msra.mxu0 0.0
    %4656 = vmatprep.subr.mxu0 0.0
    %4657 = vmatpush1.msra.mxu0 0.0
    %4658 = vmatprep.mubr.f32.mxu0 0.0
    %v4659 = vand.u32 %v1737, 4294901760
    %v4660 = vsub.f32 %v1737, %v4659
    %4661 = vmatmul.mubr.f32.gmra.mrb[0].mxu0 %v4660
    %v4662 = vpop.f32.mrb[0].mxu0
    %v4663 = vadd.f32 %v4559, %v4662
    %v4664 = vpop.f32.mrb[0].mxu0
    %4665 = vdwg.mxu0
    %4666 = vmatprep.subr.mxu0 0.0
    %v4667 = vand.u32 %v1740, 4294901760
    %4668 = vmatpush1.msra.mxu0 %v4667
    %4669 = vmatprep.subr.mxu0 0.0
    %v4670 = vand.u32 %v1741, 4294901760
    %4671 = vmatpush1.msra.mxu0 %v4670
    %4672 = vmatprep.subr.mxu0 0.0
    %v4673 = vand.u32 %v1742, 4294901760
    %4674 = vmatpush1.msra.mxu0 %v4673
    %4675 = vmatprep.subr.mxu0 0.0
    %v4676 = vand.u32 %v1743, 4294901760
    %4677 = vmatpush1.msra.mxu0 %v4676
    %4678 = vmatprep.subr.mxu0 0.0
    %v4679 = vand.u32 %v1744, 4294901760
    %4680 = vmatpush1.msra.mxu0 %v4679
    %4681 = vmatprep.subr.mxu0 0.0
    %v4682 = vand.u32 %v1745, 4294901760
    %4683 = vmatpush1.msra.mxu0 %v4682
    %4684 = vmatprep.subr.mxu0 0.0
    %v4685 = vand.u32 %v1746, 4294901760
    %4686 = vmatpush1.msra.mxu0 %v4685
    %4687 = vmatprep.subr.mxu0 0.0
    %v4688 = vand.u32 %v1747, 4294901760
    %4689 = vmatpush1.msra.mxu0 %v4688
    %4690 = vmatprep.subr.mxu0 0.0
    %v4691 = vand.u32 %v1748, 4294901760
    %4692 = vmatpush1.msra.mxu0 %v4691
    %4693 = vmatprep.subr.mxu0 0.0
    %v4694 = vand.u32 %v1749, 4294901760
    %4695 = vmatpush1.msra.mxu0 %v4694
    %4696 = vmatprep.subr.mxu0 0.0
    %v4697 = vand.u32 %v1750, 4294901760
    %4698 = vmatpush1.msra.mxu0 %v4697
    %4699 = vmatprep.subr.mxu0 0.0
    %v4700 = vand.u32 %v1751, 4294901760
    %4701 = vmatpush1.msra.mxu0 %v4700
    %4702 = vmatprep.subr.mxu0 0.0
    %v4703 = vand.u32 %v1752, 4294901760
    %4704 = vmatpush1.msra.mxu0 %v4703
    %4705 = vmatprep.subr.mxu0 0.0
    %v4706 = vand.u32 %v1753, 4294901760
    %4707 = vmatpush1.msra.mxu0 %v4706
    %4708 = vmatprep.subr.mxu0 0.0
    %v4709 = vand.u32 %v1754, 4294901760
    %4710 = vmatpush1.msra.mxu0 %v4709
    %4711 = vmatprep.subr.mxu0 0.0
    %v4712 = vand.u32 %v1755, 4294901760
    %4713 = vmatpush1.msra.mxu0 %v4712
    %4714 = vmatprep.subr.mxu0 0.0
    %4715 = vmatpush1.msra.mxu0 0.0
    %4716 = vmatprep.subr.mxu0 0.0
    %4717 = vmatpush1.msra.mxu0 0.0
    %4718 = vmatprep.subr.mxu0 0.0
    %4719 = vmatpush1.msra.mxu0 0.0
    %4720 = vmatprep.subr.mxu0 0.0
    %4721 = vmatpush1.msra.mxu0 0.0
    %4722 = vmatprep.subr.mxu0 0.0
    %4723 = vmatpush1.msra.mxu0 0.0
    %4724 = vmatprep.subr.mxu0 0.0
    %4725 = vmatpush1.msra.mxu0 0.0
    %4726 = vmatprep.subr.mxu0 0.0
    %4727 = vmatpush1.msra.mxu0 0.0
    %4728 = vmatprep.subr.mxu0 0.0
    %4729 = vmatpush1.msra.mxu0 0.0
    %4730 = vmatprep.subr.mxu0 0.0
    %4731 = vmatpush1.msra.mxu0 0.0
    %4732 = vmatprep.subr.mxu0 0.0
    %4733 = vmatpush1.msra.mxu0 0.0
    %4734 = vmatprep.subr.mxu0 0.0
    %4735 = vmatpush1.msra.mxu0 0.0
    %4736 = vmatprep.subr.mxu0 0.0
    %4737 = vmatpush1.msra.mxu0 0.0
    %4738 = vmatprep.subr.mxu0 0.0
    %4739 = vmatpush1.msra.mxu0 0.0
    %4740 = vmatprep.subr.mxu0 0.0
    %4741 = vmatpush1.msra.mxu0 0.0
    %4742 = vmatprep.subr.mxu0 0.0
    %4743 = vmatpush1.msra.mxu0 0.0
    %4744 = vmatprep.subr.mxu0 0.0
    %4745 = vmatpush1.msra.mxu0 0.0
    %4746 = vmatprep.mubr.f32.mxu0 0.0
    %v4747 = vand.u32 %v1737, 4294901760
    %v4748 = vsub.f32 %v1737, %v4747
    %v4749 = vand.u32 %v4748, 4294901760
    %4750 = vmatmul.mubr.f32.gmra.mrb[0].mxu0 %v4749
    %v4751 = vpop.f32.mrb[0].mxu0
    %v4752 = vadd.f32 %v4663, %v4751
    %v4753 = vpop.f32.mrb[0].mxu0
    %4754 = vdwg.mxu0
    %4755 = vmatprep.subr.mxu0 0.0
    %v4756 = vand.u32 %v1740, 4294901760
    %v4757 = vsub.f32 %v1740, %v4756
    %v4758 = vand.u32 %v4757, 4294901760
    %4759 = vmatpush1.msra.mxu0 %v4758
    %4760 = vmatprep.subr.mxu0 0.0
    %v4761 = vand.u32 %v1741, 4294901760
    %v4762 = vsub.f32 %v1741, %v4761
    %v4763 = vand.u32 %v4762, 4294901760
    %4764 = vmatpush1.msra.mxu0 %v4763
    %4765 = vmatprep.subr.mxu0 0.0
    %v4766 = vand.u32 %v1742, 4294901760
    %v4767 = vsub.f32 %v1742, %v4766
    %v4768 = vand.u32 %v4767, 4294901760
    %4769 = vmatpush1.msra.mxu0 %v4768
    %4770 = vmatprep.subr.mxu0 0.0
    %v4771 = vand.u32 %v1743, 4294901760
    %v4772 = vsub.f32 %v1743, %v4771
    %v4773 = vand.u32 %v4772, 4294901760
    %4774 = vmatpush1.msra.mxu0 %v4773
    %4775 = vmatprep.subr.mxu0 0.0
    %v4776 = vand.u32 %v1744, 4294901760
    %v4777 = vsub.f32 %v1744, %v4776
    %v4778 = vand.u32 %v4777, 4294901760
    %4779 = vmatpush1.msra.mxu0 %v4778
    %4780 = vmatprep.subr.mxu0 0.0
    %v4781 = vand.u32 %v1745, 4294901760
    %v4782 = vsub.f32 %v1745, %v4781
    %v4783 = vand.u32 %v4782, 4294901760
    %4784 = vmatpush1.msra.mxu0 %v4783
    %4785 = vmatprep.subr.mxu0 0.0
    %v4786 = vand.u32 %v1746, 4294901760
    %v4787 = vsub.f32 %v1746, %v4786
    %v4788 = vand.u32 %v4787, 4294901760
    %4789 = vmatpush1.msra.mxu0 %v4788
    %4790 = vmatprep.subr.mxu0 0.0
    %v4791 = vand.u32 %v1747, 4294901760
    %v4792 = vsub.f32 %v1747, %v4791
    %v4793 = vand.u32 %v4792, 4294901760
    %4794 = vmatpush1.msra.mxu0 %v4793
    %4795 = vmatprep.subr.mxu0 0.0
    %v4796 = vand.u32 %v1748, 4294901760
    %v4797 = vsub.f32 %v1748, %v4796
    %v4798 = vand.u32 %v4797, 4294901760
    %4799 = vmatpush1.msra.mxu0 %v4798
    %4800 = vmatprep.subr.mxu0 0.0
    %v4801 = vand.u32 %v1749, 4294901760
    %v4802 = vsub.f32 %v1749, %v4801
    %v4803 = vand.u32 %v4802, 4294901760
    %4804 = vmatpush1.msra.mxu0 %v4803
    %4805 = vmatprep.subr.mxu0 0.0
    %v4806 = vand.u32 %v1750, 4294901760
    %v4807 = vsub.f32 %v1750, %v4806
    %v4808 = vand.u32 %v4807, 4294901760
    %4809 = vmatpush1.msra.mxu0 %v4808
    %4810 = vmatprep.subr.mxu0 0.0
    %v4811 = vand.u32 %v1751, 4294901760
    %v4812 = vsub.f32 %v1751, %v4811
    %v4813 = vand.u32 %v4812, 4294901760
    %4814 = vmatpush1.msra.mxu0 %v4813
    %4815 = vmatprep.subr.mxu0 0.0
    %v4816 = vand.u32 %v1752, 4294901760
    %v4817 = vsub.f32 %v1752, %v4816
    %v4818 = vand.u32 %v4817, 4294901760
    %4819 = vmatpush1.msra.mxu0 %v4818
    %4820 = vmatprep.subr.mxu0 0.0
    %v4821 = vand.u32 %v1753, 4294901760
    %v4822 = vsub.f32 %v1753, %v4821
    %v4823 = vand.u32 %v4822, 4294901760
    %4824 = vmatpush1.msra.mxu0 %v4823
    %4825 = vmatprep.subr.mxu0 0.0
    %v4826 = vand.u32 %v1754, 4294901760
    %v4827 = vsub.f32 %v1754, %v4826
    %v4828 = vand.u32 %v4827, 4294901760
    %4829 = vmatpush1.msra.mxu0 %v4828
    %4830 = vmatprep.subr.mxu0 0.0
    %v4831 = vand.u32 %v1755, 4294901760
    %v4832 = vsub.f32 %v1755, %v4831
    %v4833 = vand.u32 %v4832, 4294901760
    %4834 = vmatpush1.msra.mxu0 %v4833
    %4835 = vmatprep.subr.mxu0 0.0
    %4836 = vmatpush1.msra.mxu0 0.0
    %4837 = vmatprep.subr.mxu0 0.0
    %4838 = vmatpush1.msra.mxu0 0.0
    %4839 = vmatprep.subr.mxu0 0.0
    %4840 = vmatpush1.msra.mxu0 0.0
    %4841 = vmatprep.subr.mxu0 0.0
    %4842 = vmatpush1.msra.mxu0 0.0
    %4843 = vmatprep.subr.mxu0 0.0
    %4844 = vmatpush1.msra.mxu0 0.0
    %4845 = vmatprep.subr.mxu0 0.0
    %4846 = vmatpush1.msra.mxu0 0.0
    %4847 = vmatprep.subr.mxu0 0.0
    %4848 = vmatpush1.msra.mxu0 0.0
    %4849 = vmatprep.subr.mxu0 0.0
    %4850 = vmatpush1.msra.mxu0 0.0
    %4851 = vmatprep.subr.mxu0 0.0
    %4852 = vmatpush1.msra.mxu0 0.0
    %4853 = vmatprep.subr.mxu0 0.0
    %4854 = vmatpush1.msra.mxu0 0.0
    %4855 = vmatprep.subr.mxu0 0.0
    %4856 = vmatpush1.msra.mxu0 0.0
    %4857 = vmatprep.subr.mxu0 0.0
    %4858 = vmatpush1.msra.mxu0 0.0
    %4859 = vmatprep.subr.mxu0 0.0
    %4860 = vmatpush1.msra.mxu0 0.0
    %4861 = vmatprep.subr.mxu0 0.0
    %4862 = vmatpush1.msra.mxu0 0.0
    %4863 = vmatprep.subr.mxu0 0.0
    %4864 = vmatpush1.msra.mxu0 0.0
    %4865 = vmatprep.subr.mxu0 0.0
    %4866 = vmatpush1.msra.mxu0 0.0
    %4867 = vmatprep.mubr.f32.mxu0 0.0
    %v4868 = vand.u32 %v1737, 4294901760
    %4869 = vmatmul.mubr.f32.gmra.mrb[0].mxu0 %v4868
    %v4870 = vpop.f32.mrb[0].mxu0
    %v4871 = vadd.f32 %v4752, %v4870
    %v4872 = vpop.f32.mrb[0].mxu0
    %4873 = vdwg.mxu0
    %4874 = vmatprep.subr.mxu0 0.0
    %v4875 = vand.u32 %v1740, 4294901760
    %4876 = vmatpush1.msra.mxu0 %v4875
    %4877 = vmatprep.subr.mxu0 0.0
    %v4878 = vand.u32 %v1741, 4294901760
    %4879 = vmatpush1.msra.mxu0 %v4878
    %4880 = vmatprep.subr.mxu0 0.0
    %v4881 = vand.u32 %v1742, 4294901760
    %4882 = vmatpush1.msra.mxu0 %v4881
    %4883 = vmatprep.subr.mxu0 0.0
    %v4884 = vand.u32 %v1743, 4294901760
    %4885 = vmatpush1.msra.mxu0 %v4884
    %4886 = vmatprep.subr.mxu0 0.0
    %v4887 = vand.u32 %v1744, 4294901760
    %4888 = vmatpush1.msra.mxu0 %v4887
    %4889 = vmatprep.subr.mxu0 0.0
    %v4890 = vand.u32 %v1745, 4294901760
    %4891 = vmatpush1.msra.mxu0 %v4890
    %4892 = vmatprep.subr.mxu0 0.0
    %v4893 = vand.u32 %v1746, 4294901760
    %4894 = vmatpush1.msra.mxu0 %v4893
    %4895 = vmatprep.subr.mxu0 0.0
    %v4896 = vand.u32 %v1747, 4294901760
    %4897 = vmatpush1.msra.mxu0 %v4896
    %4898 = vmatprep.subr.mxu0 0.0
    %v4899 = vand.u32 %v1748, 4294901760
    %4900 = vmatpush1.msra.mxu0 %v4899
    %4901 = vmatprep.subr.mxu0 0.0
    %v4902 = vand.u32 %v1749, 4294901760
    %4903 = vmatpush1.msra.mxu0 %v4902
    %4904 = vmatprep.subr.mxu0 0.0
    %v4905 = vand.u32 %v1750, 4294901760
    %4906 = vmatpush1.msra.mxu0 %v4905
    %4907 = vmatprep.subr.mxu0 0.0
    %v4908 = vand.u32 %v1751, 4294901760
    %4909 = vmatpush1.msra.mxu0 %v4908
    %4910 = vmatprep.subr.mxu0 0.0
    %v4911 = vand.u32 %v1752, 4294901760
    %4912 = vmatpush1.msra.mxu0 %v4911
    %4913 = vmatprep.subr.mxu0 0.0
    %v4914 = vand.u32 %v1753, 4294901760
    %4915 = vmatpush1.msra.mxu0 %v4914
    %4916 = vmatprep.subr.mxu0 0.0
    %v4917 = vand.u32 %v1754, 4294901760
    %4918 = vmatpush1.msra.mxu0 %v4917
    %4919 = vmatprep.subr.mxu0 0.0
    %v4920 = vand.u32 %v1755, 4294901760
    %4921 = vmatpush1.msra.mxu0 %v4920
    %4922 = vmatprep.subr.mxu0 0.0
    %4923 = vmatpush1.msra.mxu0 0.0
    %4924 = vmatprep.subr.mxu0 0.0
    %4925 = vmatpush1.msra.mxu0 0.0
    %4926 = vmatprep.subr.mxu0 0.0
    %4927 = vmatpush1.msra.mxu0 0.0
    %4928 = vmatprep.subr.mxu0 0.0
    %4929 = vmatpush1.msra.mxu0 0.0
    %4930 = vmatprep.subr.mxu0 0.0
    %4931 = vmatpush1.msra.mxu0 0.0
    %4932 = vmatprep.subr.mxu0 0.0
    %4933 = vmatpush1.msra.mxu0 0.0
    %4934 = vmatprep.subr.mxu0 0.0
    %4935 = vmatpush1.msra.mxu0 0.0
    %4936 = vmatprep.subr.mxu0 0.0
    %4937 = vmatpush1.msra.mxu0 0.0
    %4938 = vmatprep.subr.mxu0 0.0
    %4939 = vmatpush1.msra.mxu0 0.0
    %4940 = vmatprep.subr.mxu0 0.0
    %4941 = vmatpush1.msra.mxu0 0.0
    %4942 = vmatprep.subr.mxu0 0.0
    %4943 = vmatpush1.msra.mxu0 0.0
    %4944 = vmatprep.subr.mxu0 0.0
    %4945 = vmatpush1.msra.mxu0 0.0
    %4946 = vmatprep.subr.mxu0 0.0
    %4947 = vmatpush1.msra.mxu0 0.0
    %4948 = vmatprep.subr.mxu0 0.0
    %4949 = vmatpush1.msra.mxu0 0.0
    %4950 = vmatprep.subr.mxu0 0.0
    %4951 = vmatpush1.msra.mxu0 0.0
    %4952 = vmatprep.subr.mxu0 0.0
    %4953 = vmatpush1.msra.mxu0 0.0
    %4954 = vmatprep.mubr.f32.mxu0 0.0
    %v4955 = vand.u32 %v1737, 4294901760
    %4956 = vmatmul.mubr.f32.gmra.mrb[0].mxu0 %v4955
    %v4957 = vpop.f32.mrb[0].mxu0
    %v4958 = vadd.f32 %v4871, %v4957
    %v4959 = vpop.f32.mrb[0].mxu0
    %4960 = vdwg.mxu0
    %v4961 = vmul.f32 %v2394, %v2394
    %v4962 = vsub.f32 %v3676, %v4961
    %v4963 = vmul.f32 %v3035, %v3035
    %v4964 = vsub.f32 %v4317, %v4963
    %v4965 = vmul.f32 %v2394, %v3035
    %v4966 = vsub.f32 %v4958, %v4965
    %v4967 = vmul.f32 %v2394, 2.0
    %v4968 = vmul.f32 %v4967, %v3035
    %v4969 = vadd.f32 %v4968, 0.0001
    %v4970 = vmul.f32 %v4966, 2.0
    %v4971 = vadd.f32 %v4970, 0.0009
    %v4972 = vmul.f32 %v4969, %v4971
    %v4973 = vadd.f32 %v4961, %v4963
    %v4974 = vadd.f32 %v4973, 0.0001
    %v4975 = vadd.f32 %v4962, %v4964
    %v4976 = vadd.f32 %v4975, 0.0009
    %v4977 = vmul.f32 %v4974, %v4976
    %v4978 = vrcp.pop %v4977
    %v4979 = vmul.f32 %v4972, %v4978
    %v4980 = vlaneseq
    %v4981 = vand.u32 %v4980, 127
    %vm4982 = vcmp.lt.s32.totalorder %v4981, 48
    %v4983 = vsel %vm4982, 1, 0
    %v4984 = vcvt.s32.f32 %v4983
    %vm4985 = vcmask 1045504
    %v4986 = vsel %vm4985, %v4979, 0.0
    %v4987 = vrot.slane %v4986, 4
    %v4988 = vadd.f32 %v4986, %v4987
    %v4989 = vrot.slane %v4988, 2
    %v4990 = vadd.f32 %v4988, %v4989
    %v4991 = vrot.slane %v4990, 1
    %v4992 = vadd.f32 %v4990, %v4991
    %v4993 = vmul.f32 %v4992, %v4984
    %v4994 = vsub.f32 %v269, %v271
    %v4995 = vsub.f32 %v270, %v272
    %v4996 = vand.u32 2147483647, %v4994
    %v4997 = vand.u32 2147483647, %v4995
    %v4998 = vadd.f32 %v4996, %v4997
    %v4999 = vrot.slane %v4998, 4
    %v5000 = vadd.f32 %v4998, %v4999
    %v5001 = vrot.slane %v5000, 2
    %v5002 = vadd.f32 %v5000, %v5001
    %v5003 = vrot.slane %v5002, 1
    %v5004 = vadd.f32 %v5002, %v5003
    %v5005 = vlaneseq
    %vm5006 = vcmp.ge.s32.totalorder %v5005, 0
    %vm5007 = vcmp.lt.s32.totalorder %v5005, 128
    %vm5008 = vmand %vm5006, %vm5007
    %5009 = vst.msk [vmem:[#allocation11] sm:$0x1] %vm5008, %v4993
    %5010 = vst.msk [vmem:[#allocation11 + $0x1] sm:$0x1] %vm5008, %v5004
    // Predicated region
    $region34: #{tpu_custom_call.1} parent=1 // pred_check
      _
    $region35: #{tpu_custom_call.1} parent=1 // pred_check_branch
      %5012 = sbr.rel (0) target = $region37
    $region36: #{tpu_custom_call.1} parent=1 // pred_region
      %s5014 = ssub.s32 32, 32
      %5015 = vsyncadd [#allocation5], %s5014
      %s5017 = sshll.u32 [#allocation11], 4
      %s5018 = int_to_ptr.vmem [resolvable:$true] %s5017
      %5020 = dma.vmem_to_hbm [thread:$0]  %s5018, 32, %s4, [#allocation5]
    $region37: #{tpu_custom_call.1} parent=1 // pred_fallthru
      _
    // Predicated region
    $region38: #{tpu_custom_call.1} parent=1 // pred_check
      _
    $region39: #{tpu_custom_call.1} parent=1 // pred_check_branch
      %5022 = sbr.rel (0) target = $region41
    $region40: #{tpu_custom_call.1} parent=1 // pred_region
      %5023 = dma.done [#allocation5], 32
    $region41: #{tpu_custom_call.1} parent=1 // pred_fallthru
      _
    %5024 = vsyncpa [#allocation4], 1
    %5025 = vsyncpa [#allocation7], 1
    %5026 = vsyncpa [#allocation10], 1
    %5027 = vsyncpa [#allocation5], 1

</llo_original>
